<compile_context>
chip_gen: v7x
topology: tpu7x:2x2x1
jax: 0.10.0
libtpu: 0.0.40
codegen_flags: <defaults>
</compile_context>

<pallas_src>
import numpy as np
import jax
import jax.numpy as jnp
from jax import lax
from jax.experimental import pallas as pl
from jax.experimental.pallas import tpu as pltpu


# Fixed module configuration (kept small so the whole module fuses in VMEM).
C0, C1 = 8, 16          # channels of branch 0 / branch 1
H0, W0 = 16, 16         # branch 0 spatial size
H1, W1 = 8, 8           # branch 1 spatial size (H0 // 2)
L0, L1 = H0 * W0, H1 * W1
NUM_BLOCKS = 2          # BasicBlocks per branch


# ----------------------------------------------------------------------------
# Fused kernel (built per B_TILE)
# ----------------------------------------------------------------------------

def _make_kernel(b_tile):
    def conv3x3(x, w, b, masks, row_w, *, residual=None, relu=False):
        """'same' 3x3 conv, channels-first.

        x     : (Cin, L)      activation, L = b_tile*H*W (samples folded on lanes)
        w     : (Cout, 9*Cin) BN-scale-folded weights, rows ordered tap-major
        b     : (Cout, 1)     folded BN bias (broadcast along lanes)
        masks : (9, L)        per-tap 0/1 validity (zero padding; also kills the
                              cyclic wrap across sample boundaries)
        row_w : per-sample row width W (tap lane offset = (dy-1)*W + (dx-1))
        """
        cin, lanes = x.shape
        pieces = []
        for dy in range(3):
            for dx in range(3):
                t = dy * 3 + dx
                off = (dy - 1) * row_w + (dx - 1)
                if off == 0:
                    pieces.append(x)                       # center tap: identity
                else:
                    shifted = pltpu.roll(x, (-off) % lanes, axis=1)  # XLU
                    pieces.append(shifted * masks[t:t + 1])
        patches = jnp.concatenate(pieces, axis=0)          # (9*Cin, L) im2col
        y = jnp.dot(w, patches, preferred_element_type=jnp.float32) + b
        if residual is not None:
            y = y + residual
        if relu:
            y = jnp.maximum(y, 0.0)
        return y

    def kernel(x0_ref, x1_ref,
               wb0_ref, bb0_ref, wb1_ref, bb1_ref,
               w01_ref, b01_ref, w10_ref, b10_ref,
               up_ref, sub_ref, m0_ref, m1_ref,
               o0_ref, o1_ref):
        m0 = m0_ref[...]                                   # (9, b_tile*256)
        m1 = m1_ref[...]                                   # (9, b_tile*64)

        def run_branch(x_ref, w_ref, b_ref, masks, row_w):
            a = x_ref[...]                                 # (C, L)
            for blk in range(NUM_BLOCKS):                  # BasicBlock: conv-bn-relu,
                t = conv3x3(a, w_ref[2 * blk], b_ref[2 * blk],   # conv-bn,+res,relu
                            masks, row_w, relu=True)
                a = conv3x3(t, w_ref[2 * blk + 1], b_ref[2 * blk + 1],
                            masks, row_w, residual=a, relu=True)
            return a

        b0 = run_branch(x0_ref, wb0_ref, bb0_ref, m0, W0)  # (C0, b_tile*256)
        b1 = run_branch(x1_ref, wb1_ref, bb1_ref, m1, W1)  # (C1, b_tile*64)

        # ---- fuse i=0 : out0 = ReLU(b0 + Upsample2x(BN(Conv1x1(b1)))) ------
        u = jnp.dot(w01_ref[...], b1,
                    preferred_element_type=jnp.float32) + b01_ref[...]   # (C0, l1)
        u_up = jnp.dot(u, up_ref[...],
                       preferred_element_type=jnp.float32)               # (C0, l0)
        o0_ref[...] = jnp.maximum(b0 + u_up, 0.0)

        # ---- fuse i=1 : out1 = ReLU(BN(Conv3x3 stride2(b0)) + b1) ----------
        # TODO(synk): full-res taps + 0/1 output subsample matmul (MXU slack);
        # a strided tap gather would remove the 4x redundant tap work.
        d_full = conv3x3(b0, w10_ref[...], b10_ref[...], m0, W0)          # (C1, l0)
        d = jnp.dot(d_full, sub_ref[...],
                    preferred_element_type=jnp.float32)                   # (C1, l1)
        o1_ref[...] = jnp.maximum(d + b1, 0.0)

    return kernel


# ----------------------------------------------------------------------------
# Host-built constants (selection matrices + border masks)
# ----------------------------------------------------------------------------

def _tap_masks(h, w, b_tile):
    """(9, b_tile*h*w) 0/1 mask: tap (dy,dx) valid at (hh,ww) iff source in-bounds."""
    m = np.zeros((9, h * w), np.float32)
    for dy in range(3):
        for dx in range(3):
            t = dy * 3 + dx
            for hh in range(h):
                for ww in range(w):
                    if 0 <= hh + dy - 1 < h and 0 <= ww + dx - 1 < w:
                        m[t, hh * w + ww] = 1.0
    return np.tile(m, (1, b_tile))


def _upsample_matrix(hc, wc, b_tile):
    """(b_tile*hc*wc, b_tile*4*hc*wc) block-diag nearest-2x selection."""
    hf, wf = 2 * hc, 2 * wc
    u = np.zeros((hc * wc, hf * wf), np.float32)
    for hh in range(hf):
        for ww in range(wf):
            u[(hh // 2) * wc + (ww // 2), hh * wf + ww] = 1.0
    return np.kron(np.eye(b_tile, dtype=np.float32), u)


def _subsample_matrix(hf, wf, b_tile):
    """(b_tile*hf*wf, b_tile*hf*wf//4) block-diag even-row/col selection."""
    hs, ws = hf // 2, wf // 2
    s = np.zeros((hf * wf, hs * ws), np.float32)
    for i in range(hs):
        for j in range(ws):
            s[(2 * i) * wf + 2 * j, i * ws + j] = 1.0
    return np.kron(np.eye(b_tile, dtype=np.float32), s)


# ----------------------------------------------------------------------------
# Parameter init (deterministic, synthetic — conv weights + folded eval BN)
# ----------------------------------------------------------------------------

def init_conv_bn(key, kh, kw, cin, cout):
    k1, k2, k3, k4, k5 = jax.random.split(key, 5)
    w = 0.1 * jax.random.normal(k1, (kh, kw, cin, cout), jnp.float32)
    gamma = 1.0 + 0.1 * jax.random.normal(k2, (cout,), jnp.float32)
    beta = 0.1 * jax.random.normal(k3, (cout,), jnp.float32)
    mean = 0.1 * jax.random.normal(k4, (cout,), jnp.float32)
    var = jax.random.uniform(k5, (cout,), jnp.float32, 0.5, 1.5)
    scale = gamma / jnp.sqrt(var + 1e-5)
    bias = beta - mean * scale
    return {"w": w, "s": scale, "b": bias}


def init_params(key, num_channels, num_blocks):
    params = {"branch": []}
    for i, c in enumerate(num_channels):
        blocks = []
        for _ in range(num_blocks[i]):
            key, k1, k2 = jax.random.split(key, 3)
            blocks.append({"conv1": init_conv_bn(k1, 3, 3, c, c),
                           "conv2": init_conv_bn(k2, 3, 3, c, c)})
        params["branch"].append(blocks)
    key, kf01, kf10 = jax.random.split(key, 3)
    params["fuse01"] = init_conv_bn(kf01, 1, 1, num_channels[1], num_channels[0])
    params["fuse10"] = init_conv_bn(kf10, 3, 3, num_channels[0], num_channels[1])
    return params


def _fold_conv_bn(p):
    """HWIO conv weight + eval-BN -> ((Cout, kh*kw*Cin) scale-folded, (Cout,1) bias)."""
    kh, kw, cin, cout = p["w"].shape
    w = jnp.transpose(p["w"].reshape(kh * kw, cin, cout), (2, 0, 1))
    w = w.reshape(cout, kh * kw * cin) * p["s"][:, None]
    return w, p["b"][:, None]


def _pack_branch(blocks):
    ws, bs = [], []
    for blk in blocks:
        for name in ("conv1", "conv2"):
            w, b = _fold_conv_bn(blk[name])
            ws.append(w)
            bs.append(b)
    return jnp.stack(ws, 0), jnp.stack(bs, 0)      # (4, C, 9C), (4, C, 1)


# ----------------------------------------------------------------------------
# Wrapper: one pallas_call for the whole module
# ----------------------------------------------------------------------------

def hrmodule_forward_pallas(params, x0_nhwc, x1_nhwc):
    """x0: (N, H0, W0, C0) NHWC, x1: (N, H1, W1, C1) NHWC.
    Returns NCHW outputs: (N, C0, H0, W0), (N, C1, H1, W1)."""
    n = x0_nhwc.shape[0]
    # Fold samples into the lane axis; even b_tile keeps the branch-1 / out1
    # blocks >= 128 lanes (dense stores) and amortises per-step overhead.
    b_tile = 2 if n % 2 == 0 else n
    grid = n // b_tile
    l0, l1 = b_tile * L0, b_tile * L1

    # Channels-first, flattened (sample, h, w) on the lane axis (layout plumbing
    # done in XLA outside the kernel).
    x0_cf = jnp.transpose(x0_nhwc, (3, 0, 1, 2)).reshape(C0, n * L0)
    x1_cf = jnp.transpose(x1_nhwc, (3, 0, 1, 2)).reshape(C1, n * L1)

    wb0, bb0 = _pack_branch(params["branch"][0])            # (4,8,72),  (4,8,1)
    wb1, bb1 = _pack_branch(params["branch"][1])            # (4,16,144),(4,16,1)
    w01, b01 = _fold_conv_bn(params["fuse01"])              # (8,16),  (8,1)
    w10, b10 = _fold_conv_bn(params["fuse10"])              # (16,72), (16,1)

    up = jnp.asarray(_upsample_matrix(H1, W1, b_tile))      # (l1, l0)
    sub = jnp.asarray(_subsample_matrix(H0, W0, b_tile))    # (l0, l1)
    m0 = jnp.asarray(_tap_masks(H0, W0, b_tile))            # (9, l0)
    m1 = jnp.asarray(_tap_masks(H1, W1, b_tile))            # (9, l1)

    batch_map = lambda i: (0, i)
    const2 = lambda i: (0, 0)
    const3 = lambda i: (0, 0, 0)

    in_specs = [
        pl.BlockSpec((C0, l0), batch_map),                  # x0 (channels-first)
        pl.BlockSpec((C1, l1), batch_map),                  # x1
        pl.BlockSpec(wb0.shape, const3),                    # branch-0 weights
        pl.BlockSpec(bb0.shape, const3),                    # branch-0 biases
        pl.BlockSpec(wb1.shape, const3),                    # branch-1 weights
        pl.BlockSpec(bb1.shape, const3),                    # branch-1 biases
        pl.BlockSpec(w01.shape, const2),                    # fuse 1x1 (16->8)
        pl.BlockSpec(b01.shape, const2),
        pl.BlockSpec(w10.shape, const2),                    # fuse 3x3 s2 (8->16)
        pl.BlockSpec(b10.shape, const2),
        pl.BlockSpec(up.shape, const2),                     # nearest-2x selection
        pl.BlockSpec(sub.shape, const2),                    # stride-2 selection
        pl.BlockSpec(m0.shape, const2),                     # border masks (16x16)
        pl.BlockSpec(m1.shape, const2),                     # border masks (8x8)
    ]
    out_specs = (
        pl.BlockSpec((C0, l0), batch_map),
        pl.BlockSpec((C1, l1), batch_map),
    )
    out_shape = (
        jax.ShapeDtypeStruct((C0, n * L0), jnp.float32),
        jax.ShapeDtypeStruct((C1, n * L1), jnp.float32),
    )

    o0, o1 = pl.pallas_call(
        _make_kernel(b_tile),
        out_shape=out_shape,
        grid=(grid,),
        in_specs=in_specs,
        out_specs=out_specs,
        compiler_params=pltpu.CompilerParams(
            dimension_semantics=("parallel",)),
    )(x0_cf, x1_cf, wb0, bb0, wb1, bb1, w01, b01, w10, b10, up, sub, m0, m1)

    out0 = o0.reshape(C0, n, H0, W0).transpose(1, 0, 2, 3)   # NCHW
    out1 = o1.reshape(C1, n, H1, W1).transpose(1, 0, 2, 3)
    return out0, out1


# ----------------------------------------------------------------------------
# Pure-JAX reference (for correctness check)
# ----------------------------------------------------------------------------

def conv_bn_ref(x, p, *, stride=1, pad=None, residual=None, relu=False):
    kh = p["w"].shape[0]
    if pad is None:
        pad = (kh - 1) // 2
    y = lax.conv_general_dilated(
        x, p["w"], (stride, stride), [(pad, pad), (pad, pad)],
        dimension_numbers=("NHWC", "HWIO", "NHWC"),
        precision=lax.Precision.HIGHEST)
    y = y * p["s"] + p["b"]
    if residual is not None:
        y = y + residual
    if relu:
        y = jnp.maximum(y, 0.0)
    return y


def hrmodule_forward_ref(params, xs):
    outs = []
    for i, x in enumerate(xs):
        for blk in params["branch"][i]:
            res = x
            y = conv_bn_ref(x, blk["conv1"], relu=True)
            x = conv_bn_ref(y, blk["conv2"], residual=res, relu=True)
        outs.append(x)
    x0, x1 = outs
    u = conv_bn_ref(x1, params["fuse01"])
    u = jnp.repeat(jnp.repeat(u, 2, axis=1), 2, axis=2)
    out0 = jnp.maximum(x0 + u, 0.0)
    d = conv_bn_ref(x0, params["fuse10"], stride=2, pad=1)
    out1 = jnp.maximum(d + x1, 0.0)
    return [out0, out1]


# ----------------------------------------------------------------------------
# main
# ----------------------------------------------------------------------------

if __name__ == "__main__":
    N = 2
    key = jax.random.PRNGKey(0)
    kx0, kx1, kp = jax.random.split(key, 3)

    # NHWC inputs; equivalent PyTorch NCHW shapes: [2,8,16,16] and [2,16,8,8]
    x0 = jax.random.normal(kx0, (N, H0, W0, C0), jnp.float32)
    x1 = jax.random.normal(kx1, (N, H1, W1, C1), jnp.float32)

    params = init_params(kp, [C0, C1], [NUM_BLOCKS, NUM_BLOCKS])

    out0, out1 = hrmodule_forward_pallas(params, x0, x1)
    out0 = jax.block_until_ready(out0)
    out1 = jax.block_until_ready(out1)

    ref0, ref1 = hrmodule_forward_ref(params, [x0, x1])
    ref0_t = jnp.transpose(ref0, (0, 3, 1, 2))               # -> NCHW
    ref1_t = jnp.transpose(ref1, (0, 3, 1, 2))

    err0 = float(jnp.max(jnp.abs(out0 - ref0_t)))
    err1 = float(jnp.max(jnp.abs(out1 - ref1_t)))
    assert err0 < 1e-3 and err1 < 1e-3, f"max abs diff too large: {err0}, {err1}"

    print("KERNEL_OK")
</pallas_src>

<mosaic_0001>
module attributes {stable_mosaic.version = 11 : i64} {
  func.func @kernel(%arg0: i32, %arg1: memref<8x512xf32, #tpu.memory_space<vmem>>, %arg2: memref<16x128xf32, #tpu.memory_space<vmem>>, %arg3: memref<4x8x72xf32, #tpu.memory_space<vmem>>, %arg4: memref<4x8x1xf32, #tpu.memory_space<vmem>>, %arg5: memref<4x16x144xf32, #tpu.memory_space<vmem>>, %arg6: memref<4x16x1xf32, #tpu.memory_space<vmem>>, %arg7: memref<8x16xf32, #tpu.memory_space<vmem>>, %arg8: memref<8x1xf32, #tpu.memory_space<vmem>>, %arg9: memref<16x72xf32, #tpu.memory_space<vmem>>, %arg10: memref<16x1xf32, #tpu.memory_space<vmem>>, %arg11: memref<128x512xf32, #tpu.memory_space<vmem>>, %arg12: memref<512x128xf32, #tpu.memory_space<vmem>>, %arg13: memref<9x512xf32, #tpu.memory_space<vmem>>, %arg14: memref<9x128xf32, #tpu.memory_space<vmem>>, %arg15: memref<8x512xf32, #tpu.memory_space<vmem>>, %arg16: memref<16x128xf32, #tpu.memory_space<vmem>>) attributes {dimension_semantics = [#tpu.dimension_semantics<parallel>], iteration_bounds = array<i64: 1>, scalar_prefetch = 0 : i64, scratch_operands = 0 : i64, tpu.core_type = #tpu.core_type<tc>, window_params = [{transform_indices = @transform_0, window_bounds = array<i64: 8, 512>}, {transform_indices = @transform_1, window_bounds = array<i64: 16, 128>}, {pipeline_mode = #tpu.pipeline_mode<synchronous>, transform_indices = @transform_2, window_bounds = array<i64: 4, 8, 72>}, {pipeline_mode = #tpu.pipeline_mode<synchronous>, transform_indices = @transform_3, window_bounds = array<i64: 4, 8, 1>}, {pipeline_mode = #tpu.pipeline_mode<synchronous>, transform_indices = @transform_4, window_bounds = array<i64: 4, 16, 144>}, {pipeline_mode = #tpu.pipeline_mode<synchronous>, transform_indices = @transform_5, window_bounds = array<i64: 4, 16, 1>}, {pipeline_mode = #tpu.pipeline_mode<synchronous>, transform_indices = @transform_6, window_bounds = array<i64: 8, 16>}, {pipeline_mode = #tpu.pipeline_mode<synchronous>, transform_indices = @transform_7, window_bounds = array<i64: 8, 1>}, {pipeline_mode = #tpu.pipeline_mode<synchronous>, transform_indices = @transform_8, window_bounds = array<i64: 16, 72>}, {pipeline_mode = #tpu.pipeline_mode<synchronous>, transform_indices = @transform_9, window_bounds = array<i64: 16, 1>}, {pipeline_mode = #tpu.pipeline_mode<synchronous>, transform_indices = @transform_10, window_bounds = array<i64: 128, 512>}, {pipeline_mode = #tpu.pipeline_mode<synchronous>, transform_indices = @transform_11, window_bounds = array<i64: 512, 128>}, {pipeline_mode = #tpu.pipeline_mode<synchronous>, transform_indices = @transform_12, window_bounds = array<i64: 9, 512>}, {pipeline_mode = #tpu.pipeline_mode<synchronous>, transform_indices = @transform_13, window_bounds = array<i64: 9, 128>}, {transform_indices = @transform_14, window_bounds = array<i64: 8, 512>}, {transform_indices = @transform_15, window_bounds = array<i64: 16, 128>}]} {
    %c0 = arith.constant 0 : index
    %c0_0 = arith.constant 0 : index
    %0 = vector.load %arg13[%c0, %c0_0] : memref<9x512xf32, #tpu.memory_space<vmem>>, vector<9x512xf32>
    %c0_1 = arith.constant 0 : index
    %c0_2 = arith.constant 0 : index
    %1 = vector.load %arg14[%c0_1, %c0_2] : memref<9x128xf32, #tpu.memory_space<vmem>>, vector<9x128xf32>
    %c0_3 = arith.constant 0 : index
    %c0_4 = arith.constant 0 : index
    %2 = vector.load %arg1[%c0_3, %c0_4] : memref<8x512xf32, #tpu.memory_space<vmem>>, vector<8x512xf32>
    %c0_5 = arith.constant 0 : index
    %c0_6 = arith.constant 0 : index
    %c0_7 = arith.constant 0 : index
    %3 = vector.load %arg3[%c0_5, %c0_6, %c0_7] : memref<4x8x72xf32, #tpu.memory_space<vmem>>, vector<1x8x72xf32>
    %4 = vector.shape_cast %3 : vector<1x8x72xf32> to vector<8x72xf32>
    %c0_8 = arith.constant 0 : index
    %c0_9 = arith.constant 0 : index
    %c0_10 = arith.constant 0 : index
    %5 = vector.load %arg4[%c0_8, %c0_9, %c0_10] : memref<4x8x1xf32, #tpu.memory_space<vmem>>, vector<1x8x1xf32>
    %6 = vector.shape_cast %5 : vector<1x8x1xf32> to vector<8x1xf32>
    %c17_i32 = arith.constant 17 : i32
    %7 = tpu.dynamic_rotate %2 by %c17_i32 dim 1 : vector<8x512xf32>, i32 -> vector<8x512xf32>
    %8 = vector.extract_strided_slice %0 {offsets = [0, 0], sizes = [1, 512], strides = [1, 1]} : vector<9x512xf32> to vector<1x512xf32>
    %9 = vector.broadcast %8 : vector<1x512xf32> to vector<8x512xf32>
    %10 = arith.mulf %7, %9 : vector<8x512xf32>
    %c16_i32 = arith.constant 16 : i32
    %11 = tpu.dynamic_rotate %2 by %c16_i32 dim 1 : vector<8x512xf32>, i32 -> vector<8x512xf32>
    %12 = vector.extract_strided_slice %0 {offsets = [1, 0], sizes = [1, 512], strides = [1, 1]} : vector<9x512xf32> to vector<1x512xf32>
    %13 = vector.broadcast %12 : vector<1x512xf32> to vector<8x512xf32>
    %14 = arith.mulf %11, %13 : vector<8x512xf32>
    %c15_i32 = arith.constant 15 : i32
    %15 = tpu.dynamic_rotate %2 by %c15_i32 dim 1 : vector<8x512xf32>, i32 -> vector<8x512xf32>
    %16 = vector.extract_strided_slice %0 {offsets = [2, 0], sizes = [1, 512], strides = [1, 1]} : vector<9x512xf32> to vector<1x512xf32>
    %17 = vector.broadcast %16 : vector<1x512xf32> to vector<8x512xf32>
    %18 = arith.mulf %15, %17 : vector<8x512xf32>
    %c1_i32 = arith.constant 1 : i32
    %19 = tpu.dynamic_rotate %2 by %c1_i32 dim 1 : vector<8x512xf32>, i32 -> vector<8x512xf32>
    %20 = vector.extract_strided_slice %0 {offsets = [3, 0], sizes = [1, 512], strides = [1, 1]} : vector<9x512xf32> to vector<1x512xf32>
    %21 = vector.broadcast %20 : vector<1x512xf32> to vector<8x512xf32>
    %22 = arith.mulf %19, %21 : vector<8x512xf32>
    %c511_i32 = arith.constant 511 : i32
    %23 = tpu.dynamic_rotate %2 by %c511_i32 dim 1 : vector<8x512xf32>, i32 -> vector<8x512xf32>
    %24 = vector.extract_strided_slice %0 {offsets = [5, 0], sizes = [1, 512], strides = [1, 1]} : vector<9x512xf32> to vector<1x512xf32>
    %25 = vector.broadcast %24 : vector<1x512xf32> to vector<8x512xf32>
    %26 = arith.mulf %23, %25 : vector<8x512xf32>
    %c497_i32 = arith.constant 497 : i32
    %27 = tpu.dynamic_rotate %2 by %c497_i32 dim 1 : vector<8x512xf32>, i32 -> vector<8x512xf32>
    %28 = vector.extract_strided_slice %0 {offsets = [6, 0], sizes = [1, 512], strides = [1, 1]} : vector<9x512xf32> to vector<1x512xf32>
    %29 = vector.broadcast %28 : vector<1x512xf32> to vector<8x512xf32>
    %30 = arith.mulf %27, %29 : vector<8x512xf32>
    %c496_i32 = arith.constant 496 : i32
    %31 = tpu.dynamic_rotate %2 by %c496_i32 dim 1 : vector<8x512xf32>, i32 -> vector<8x512xf32>
    %32 = vector.extract_strided_slice %0 {offsets = [7, 0], sizes = [1, 512], strides = [1, 1]} : vector<9x512xf32> to vector<1x512xf32>
    %33 = vector.broadcast %32 : vector<1x512xf32> to vector<8x512xf32>
    %34 = arith.mulf %31, %33 : vector<8x512xf32>
    %c495_i32 = arith.constant 495 : i32
    %35 = tpu.dynamic_rotate %2 by %c495_i32 dim 1 : vector<8x512xf32>, i32 -> vector<8x512xf32>
    %36 = vector.extract_strided_slice %0 {offsets = [8, 0], sizes = [1, 512], strides = [1, 1]} : vector<9x512xf32> to vector<1x512xf32>
    %37 = vector.broadcast %36 : vector<1x512xf32> to vector<8x512xf32>
    %38 = arith.mulf %35, %37 : vector<8x512xf32>
    %39 = tpu.concatenate %10, %14, %18, %22, %2, %26, %30, %34, %38 in 0 : vector<8x512xf32>, vector<8x512xf32>, vector<8x512xf32>, vector<8x512xf32>, vector<8x512xf32>, vector<8x512xf32>, vector<8x512xf32>, vector<8x512xf32>, vector<8x512xf32> -> vector<72x512xf32>
    %cst = arith.constant dense<0.000000e+00> : vector<8x512xf32>
    %40 = tpu.matmul %4, %39, %cst {dimension_numbers = #tpu.dot_dimension_numbers<[1], [0], [0], [1], [0, 0, 1, 1], [], []>} : vector<8x72xf32>, vector<72x512xf32>, vector<8x512xf32> -> vector<8x512xf32>
    %41 = vector.broadcast %6 : vector<8x1xf32> to vector<8x512xf32>
    %42 = arith.addf %40, %41 : vector<8x512xf32>
    %cst_11 = arith.constant 0.000000e+00 : f32
    %43 = vector.broadcast %cst_11 : f32 to vector<8x512xf32>
    %44 = arith.maximumf %42, %43 : vector<8x512xf32>
    %c1 = arith.constant 1 : index
    %c0_12 = arith.constant 0 : index
    %c0_13 = arith.constant 0 : index
    %45 = vector.load %arg3[%c1, %c0_12, %c0_13] : memref<4x8x72xf32, #tpu.memory_space<vmem>>, vector<1x8x72xf32>
    %46 = vector.shape_cast %45 : vector<1x8x72xf32> to vector<8x72xf32>
    %c1_14 = arith.constant 1 : index
    %c0_15 = arith.constant 0 : index
    %c0_16 = arith.constant 0 : index
    %47 = vector.load %arg4[%c1_14, %c0_15, %c0_16] : memref<4x8x1xf32, #tpu.memory_space<vmem>>, vector<1x8x1xf32>
    %48 = vector.shape_cast %47 : vector<1x8x1xf32> to vector<8x1xf32>
    %c17_i32_17 = arith.constant 17 : i32
    %49 = tpu.dynamic_rotate %44 by %c17_i32_17 dim 1 : vector<8x512xf32>, i32 -> vector<8x512xf32>
    %50 = vector.extract_strided_slice %0 {offsets = [0, 0], sizes = [1, 512], strides = [1, 1]} : vector<9x512xf32> to vector<1x512xf32>
    %51 = vector.broadcast %50 : vector<1x512xf32> to vector<8x512xf32>
    %52 = arith.mulf %49, %51 : vector<8x512xf32>
    %c16_i32_18 = arith.constant 16 : i32
    %53 = tpu.dynamic_rotate %44 by %c16_i32_18 dim 1 : vector<8x512xf32>, i32 -> vector<8x512xf32>
    %54 = vector.extract_strided_slice %0 {offsets = [1, 0], sizes = [1, 512], strides = [1, 1]} : vector<9x512xf32> to vector<1x512xf32>
    %55 = vector.broadcast %54 : vector<1x512xf32> to vector<8x512xf32>
    %56 = arith.mulf %53, %55 : vector<8x512xf32>
    %c15_i32_19 = arith.constant 15 : i32
    %57 = tpu.dynamic_rotate %44 by %c15_i32_19 dim 1 : vector<8x512xf32>, i32 -> vector<8x512xf32>
    %58 = vector.extract_strided_slice %0 {offsets = [2, 0], sizes = [1, 512], strides = [1, 1]} : vector<9x512xf32> to vector<1x512xf32>
    %59 = vector.broadcast %58 : vector<1x512xf32> to vector<8x512xf32>
    %60 = arith.mulf %57, %59 : vector<8x512xf32>
    %c1_i32_20 = arith.constant 1 : i32
    %61 = tpu.dynamic_rotate %44 by %c1_i32_20 dim 1 : vector<8x512xf32>, i32 -> vector<8x512xf32>
    %62 = vector.extract_strided_slice %0 {offsets = [3, 0], sizes = [1, 512], strides = [1, 1]} : vector<9x512xf32> to vector<1x512xf32>
    %63 = vector.broadcast %62 : vector<1x512xf32> to vector<8x512xf32>
    %64 = arith.mulf %61, %63 : vector<8x512xf32>
    %c511_i32_21 = arith.constant 511 : i32
    %65 = tpu.dynamic_rotate %44 by %c511_i32_21 dim 1 : vector<8x512xf32>, i32 -> vector<8x512xf32>
    %66 = vector.extract_strided_slice %0 {offsets = [5, 0], sizes = [1, 512], strides = [1, 1]} : vector<9x512xf32> to vector<1x512xf32>
    %67 = vector.broadcast %66 : vector<1x512xf32> to vector<8x512xf32>
    %68 = arith.mulf %65, %67 : vector<8x512xf32>
    %c497_i32_22 = arith.constant 497 : i32
    %69 = tpu.dynamic_rotate %44 by %c497_i32_22 dim 1 : vector<8x512xf32>, i32 -> vector<8x512xf32>
    %70 = vector.extract_strided_slice %0 {offsets = [6, 0], sizes = [1, 512], strides = [1, 1]} : vector<9x512xf32> to vector<1x512xf32>
    %71 = vector.broadcast %70 : vector<1x512xf32> to vector<8x512xf32>
    %72 = arith.mulf %69, %71 : vector<8x512xf32>
    %c496_i32_23 = arith.constant 496 : i32
    %73 = tpu.dynamic_rotate %44 by %c496_i32_23 dim 1 : vector<8x512xf32>, i32 -> vector<8x512xf32>
    %74 = vector.extract_strided_slice %0 {offsets = [7, 0], sizes = [1, 512], strides = [1, 1]} : vector<9x512xf32> to vector<1x512xf32>
    %75 = vector.broadcast %74 : vector<1x512xf32> to vector<8x512xf32>
    %76 = arith.mulf %73, %75 : vector<8x512xf32>
    %c495_i32_24 = arith.constant 495 : i32
    %77 = tpu.dynamic_rotate %44 by %c495_i32_24 dim 1 : vector<8x512xf32>, i32 -> vector<8x512xf32>
    %78 = vector.extract_strided_slice %0 {offsets = [8, 0], sizes = [1, 512], strides = [1, 1]} : vector<9x512xf32> to vector<1x512xf32>
    %79 = vector.broadcast %78 : vector<1x512xf32> to vector<8x512xf32>
    %80 = arith.mulf %77, %79 : vector<8x512xf32>
    %81 = tpu.concatenate %52, %56, %60, %64, %44, %68, %72, %76, %80 in 0 : vector<8x512xf32>, vector<8x512xf32>, vector<8x512xf32>, vector<8x512xf32>, vector<8x512xf32>, vector<8x512xf32>, vector<8x512xf32>, vector<8x512xf32>, vector<8x512xf32> -> vector<72x512xf32>
    %cst_25 = arith.constant dense<0.000000e+00> : vector<8x512xf32>
    %82 = tpu.matmul %46, %81, %cst_25 {dimension_numbers = #tpu.dot_dimension_numbers<[1], [0], [0], [1], [0, 0, 1, 1], [], []>} : vector<8x72xf32>, vector<72x512xf32>, vector<8x512xf32> -> vector<8x512xf32>
    %83 = vector.broadcast %48 : vector<8x1xf32> to vector<8x512xf32>
    %84 = arith.addf %82, %83 : vector<8x512xf32>
    %85 = arith.addf %84, %2 : vector<8x512xf32>
    %cst_26 = arith.constant 0.000000e+00 : f32
    %86 = vector.broadcast %cst_26 : f32 to vector<8x512xf32>
    %87 = arith.maximumf %85, %86 : vector<8x512xf32>
    %c2 = arith.constant 2 : index
    %c0_27 = arith.constant 0 : index
    %c0_28 = arith.constant 0 : index
    %88 = vector.load %arg3[%c2, %c0_27, %c0_28] : memref<4x8x72xf32, #tpu.memory_space<vmem>>, vector<1x8x72xf32>
    %89 = vector.shape_cast %88 : vector<1x8x72xf32> to vector<8x72xf32>
    %c2_29 = arith.constant 2 : index
    %c0_30 = arith.constant 0 : index
    %c0_31 = arith.constant 0 : index
    %90 = vector.load %arg4[%c2_29, %c0_30, %c0_31] : memref<4x8x1xf32, #tpu.memory_space<vmem>>, vector<1x8x1xf32>
    %91 = vector.shape_cast %90 : vector<1x8x1xf32> to vector<8x1xf32>
    %c17_i32_32 = arith.constant 17 : i32
    %92 = tpu.dynamic_rotate %87 by %c17_i32_32 dim 1 : vector<8x512xf32>, i32 -> vector<8x512xf32>
    %93 = vector.extract_strided_slice %0 {offsets = [0, 0], sizes = [1, 512], strides = [1, 1]} : vector<9x512xf32> to vector<1x512xf32>
    %94 = vector.broadcast %93 : vector<1x512xf32> to vector<8x512xf32>
    %95 = arith.mulf %92, %94 : vector<8x512xf32>
    %c16_i32_33 = arith.constant 16 : i32
    %96 = tpu.dynamic_rotate %87 by %c16_i32_33 dim 1 : vector<8x512xf32>, i32 -> vector<8x512xf32>
    %97 = vector.extract_strided_slice %0 {offsets = [1, 0], sizes = [1, 512], strides = [1, 1]} : vector<9x512xf32> to vector<1x512xf32>
    %98 = vector.broadcast %97 : vector<1x512xf32> to vector<8x512xf32>
    %99 = arith.mulf %96, %98 : vector<8x512xf32>
    %c15_i32_34 = arith.constant 15 : i32
    %100 = tpu.dynamic_rotate %87 by %c15_i32_34 dim 1 : vector<8x512xf32>, i32 -> vector<8x512xf32>
    %101 = vector.extract_strided_slice %0 {offsets = [2, 0], sizes = [1, 512], strides = [1, 1]} : vector<9x512xf32> to vector<1x512xf32>
    %102 = vector.broadcast %101 : vector<1x512xf32> to vector<8x512xf32>
    %103 = arith.mulf %100, %102 : vector<8x512xf32>
    %c1_i32_35 = arith.constant 1 : i32
    %104 = tpu.dynamic_rotate %87 by %c1_i32_35 dim 1 : vector<8x512xf32>, i32 -> vector<8x512xf32>
    %105 = vector.extract_strided_slice %0 {offsets = [3, 0], sizes = [1, 512], strides = [1, 1]} : vector<9x512xf32> to vector<1x512xf32>
    %106 = vector.broadcast %105 : vector<1x512xf32> to vector<8x512xf32>
    %107 = arith.mulf %104, %106 : vector<8x512xf32>
    %c511_i32_36 = arith.constant 511 : i32
    %108 = tpu.dynamic_rotate %87 by %c511_i32_36 dim 1 : vector<8x512xf32>, i32 -> vector<8x512xf32>
    %109 = vector.extract_strided_slice %0 {offsets = [5, 0], sizes = [1, 512], strides = [1, 1]} : vector<9x512xf32> to vector<1x512xf32>
    %110 = vector.broadcast %109 : vector<1x512xf32> to vector<8x512xf32>
    %111 = arith.mulf %108, %110 : vector<8x512xf32>
    %c497_i32_37 = arith.constant 497 : i32
    %112 = tpu.dynamic_rotate %87 by %c497_i32_37 dim 1 : vector<8x512xf32>, i32 -> vector<8x512xf32>
    %113 = vector.extract_strided_slice %0 {offsets = [6, 0], sizes = [1, 512], strides = [1, 1]} : vector<9x512xf32> to vector<1x512xf32>
    %114 = vector.broadcast %113 : vector<1x512xf32> to vector<8x512xf32>
    %115 = arith.mulf %112, %114 : vector<8x512xf32>
    %c496_i32_38 = arith.constant 496 : i32
    %116 = tpu.dynamic_rotate %87 by %c496_i32_38 dim 1 : vector<8x512xf32>, i32 -> vector<8x512xf32>
    %117 = vector.extract_strided_slice %0 {offsets = [7, 0], sizes = [1, 512], strides = [1, 1]} : vector<9x512xf32> to vector<1x512xf32>
    %118 = vector.broadcast %117 : vector<1x512xf32> to vector<8x512xf32>
    %119 = arith.mulf %116, %118 : vector<8x512xf32>
    %c495_i32_39 = arith.constant 495 : i32
    %120 = tpu.dynamic_rotate %87 by %c495_i32_39 dim 1 : vector<8x512xf32>, i32 -> vector<8x512xf32>
    %121 = vector.extract_strided_slice %0 {offsets = [8, 0], sizes = [1, 512], strides = [1, 1]} : vector<9x512xf32> to vector<1x512xf32>
    %122 = vector.broadcast %121 : vector<1x512xf32> to vector<8x512xf32>
    %123 = arith.mulf %120, %122 : vector<8x512xf32>
    %124 = tpu.concatenate %95, %99, %103, %107, %87, %111, %115, %119, %123 in 0 : vector<8x512xf32>, vector<8x512xf32>, vector<8x512xf32>, vector<8x512xf32>, vector<8x512xf32>, vector<8x512xf32>, vector<8x512xf32>, vector<8x512xf32>, vector<8x512xf32> -> vector<72x512xf32>
    %cst_40 = arith.constant dense<0.000000e+00> : vector<8x512xf32>
    %125 = tpu.matmul %89, %124, %cst_40 {dimension_numbers = #tpu.dot_dimension_numbers<[1], [0], [0], [1], [0, 0, 1, 1], [], []>} : vector<8x72xf32>, vector<72x512xf32>, vector<8x512xf32> -> vector<8x512xf32>
    %126 = vector.broadcast %91 : vector<8x1xf32> to vector<8x512xf32>
    %127 = arith.addf %125, %126 : vector<8x512xf32>
    %cst_41 = arith.constant 0.000000e+00 : f32
    %128 = vector.broadcast %cst_41 : f32 to vector<8x512xf32>
    %129 = arith.maximumf %127, %128 : vector<8x512xf32>
    %c3 = arith.constant 3 : index
    %c0_42 = arith.constant 0 : index
    %c0_43 = arith.constant 0 : index
    %130 = vector.load %arg3[%c3, %c0_42, %c0_43] : memref<4x8x72xf32, #tpu.memory_space<vmem>>, vector<1x8x72xf32>
    %131 = vector.shape_cast %130 : vector<1x8x72xf32> to vector<8x72xf32>
    %c3_44 = arith.constant 3 : index
    %c0_45 = arith.constant 0 : index
    %c0_46 = arith.constant 0 : index
    %132 = vector.load %arg4[%c3_44, %c0_45, %c0_46] : memref<4x8x1xf32, #tpu.memory_space<vmem>>, vector<1x8x1xf32>
    %133 = vector.shape_cast %132 : vector<1x8x1xf32> to vector<8x1xf32>
    %c17_i32_47 = arith.constant 17 : i32
    %134 = tpu.dynamic_rotate %129 by %c17_i32_47 dim 1 : vector<8x512xf32>, i32 -> vector<8x512xf32>
    %135 = vector.extract_strided_slice %0 {offsets = [0, 0], sizes = [1, 512], strides = [1, 1]} : vector<9x512xf32> to vector<1x512xf32>
    %136 = vector.broadcast %135 : vector<1x512xf32> to vector<8x512xf32>
    %137 = arith.mulf %134, %136 : vector<8x512xf32>
    %c16_i32_48 = arith.constant 16 : i32
    %138 = tpu.dynamic_rotate %129 by %c16_i32_48 dim 1 : vector<8x512xf32>, i32 -> vector<8x512xf32>
    %139 = vector.extract_strided_slice %0 {offsets = [1, 0], sizes = [1, 512], strides = [1, 1]} : vector<9x512xf32> to vector<1x512xf32>
    %140 = vector.broadcast %139 : vector<1x512xf32> to vector<8x512xf32>
    %141 = arith.mulf %138, %140 : vector<8x512xf32>
    %c15_i32_49 = arith.constant 15 : i32
    %142 = tpu.dynamic_rotate %129 by %c15_i32_49 dim 1 : vector<8x512xf32>, i32 -> vector<8x512xf32>
    %143 = vector.extract_strided_slice %0 {offsets = [2, 0], sizes = [1, 512], strides = [1, 1]} : vector<9x512xf32> to vector<1x512xf32>
    %144 = vector.broadcast %143 : vector<1x512xf32> to vector<8x512xf32>
    %145 = arith.mulf %142, %144 : vector<8x512xf32>
    %c1_i32_50 = arith.constant 1 : i32
    %146 = tpu.dynamic_rotate %129 by %c1_i32_50 dim 1 : vector<8x512xf32>, i32 -> vector<8x512xf32>
    %147 = vector.extract_strided_slice %0 {offsets = [3, 0], sizes = [1, 512], strides = [1, 1]} : vector<9x512xf32> to vector<1x512xf32>
    %148 = vector.broadcast %147 : vector<1x512xf32> to vector<8x512xf32>
    %149 = arith.mulf %146, %148 : vector<8x512xf32>
    %c511_i32_51 = arith.constant 511 : i32
    %150 = tpu.dynamic_rotate %129 by %c511_i32_51 dim 1 : vector<8x512xf32>, i32 -> vector<8x512xf32>
    %151 = vector.extract_strided_slice %0 {offsets = [5, 0], sizes = [1, 512], strides = [1, 1]} : vector<9x512xf32> to vector<1x512xf32>
    %152 = vector.broadcast %151 : vector<1x512xf32> to vector<8x512xf32>
    %153 = arith.mulf %150, %152 : vector<8x512xf32>
    %c497_i32_52 = arith.constant 497 : i32
    %154 = tpu.dynamic_rotate %129 by %c497_i32_52 dim 1 : vector<8x512xf32>, i32 -> vector<8x512xf32>
    %155 = vector.extract_strided_slice %0 {offsets = [6, 0], sizes = [1, 512], strides = [1, 1]} : vector<9x512xf32> to vector<1x512xf32>
    %156 = vector.broadcast %155 : vector<1x512xf32> to vector<8x512xf32>
    %157 = arith.mulf %154, %156 : vector<8x512xf32>
    %c496_i32_53 = arith.constant 496 : i32
    %158 = tpu.dynamic_rotate %129 by %c496_i32_53 dim 1 : vector<8x512xf32>, i32 -> vector<8x512xf32>
    %159 = vector.extract_strided_slice %0 {offsets = [7, 0], sizes = [1, 512], strides = [1, 1]} : vector<9x512xf32> to vector<1x512xf32>
    %160 = vector.broadcast %159 : vector<1x512xf32> to vector<8x512xf32>
    %161 = arith.mulf %158, %160 : vector<8x512xf32>
    %c495_i32_54 = arith.constant 495 : i32
    %162 = tpu.dynamic_rotate %129 by %c495_i32_54 dim 1 : vector<8x512xf32>, i32 -> vector<8x512xf32>
    %163 = vector.extract_strided_slice %0 {offsets = [8, 0], sizes = [1, 512], strides = [1, 1]} : vector<9x512xf32> to vector<1x512xf32>
    %164 = vector.broadcast %163 : vector<1x512xf32> to vector<8x512xf32>
    %165 = arith.mulf %162, %164 : vector<8x512xf32>
    %166 = tpu.concatenate %137, %141, %145, %149, %129, %153, %157, %161, %165 in 0 : vector<8x512xf32>, vector<8x512xf32>, vector<8x512xf32>, vector<8x512xf32>, vector<8x512xf32>, vector<8x512xf32>, vector<8x512xf32>, vector<8x512xf32>, vector<8x512xf32> -> vector<72x512xf32>
    %cst_55 = arith.constant dense<0.000000e+00> : vector<8x512xf32>
    %167 = tpu.matmul %131, %166, %cst_55 {dimension_numbers = #tpu.dot_dimension_numbers<[1], [0], [0], [1], [0, 0, 1, 1], [], []>} : vector<8x72xf32>, vector<72x512xf32>, vector<8x512xf32> -> vector<8x512xf32>
    %168 = vector.broadcast %133 : vector<8x1xf32> to vector<8x512xf32>
    %169 = arith.addf %167, %168 : vector<8x512xf32>
    %170 = arith.addf %169, %87 : vector<8x512xf32>
    %cst_56 = arith.constant 0.000000e+00 : f32
    %171 = vector.broadcast %cst_56 : f32 to vector<8x512xf32>
    %172 = arith.maximumf %170, %171 : vector<8x512xf32>
    %c0_57 = arith.constant 0 : index
    %c0_58 = arith.constant 0 : index
    %173 = vector.load %arg2[%c0_57, %c0_58] : memref<16x128xf32, #tpu.memory_space<vmem>>, vector<16x128xf32>
    %c0_59 = arith.constant 0 : index
    %c0_60 = arith.constant 0 : index
    %c0_61 = arith.constant 0 : index
    %174 = vector.load %arg5[%c0_59, %c0_60, %c0_61] : memref<4x16x144xf32, #tpu.memory_space<vmem>>, vector<1x16x144xf32>
    %175 = vector.shape_cast %174 : vector<1x16x144xf32> to vector<16x144xf32>
    %c0_62 = arith.constant 0 : index
    %c0_63 = arith.constant 0 : index
    %c0_64 = arith.constant 0 : index
    %176 = vector.load %arg6[%c0_62, %c0_63, %c0_64] : memref<4x16x1xf32, #tpu.memory_space<vmem>>, vector<1x16x1xf32>
    %177 = vector.shape_cast %176 : vector<1x16x1xf32> to vector<16x1xf32>
    %c9_i32 = arith.constant 9 : i32
    %178 = tpu.dynamic_rotate %173 by %c9_i32 dim 1 : vector<16x128xf32>, i32 -> vector<16x128xf32>
    %179 = vector.extract_strided_slice %1 {offsets = [0, 0], sizes = [1, 128], strides = [1, 1]} : vector<9x128xf32> to vector<1x128xf32>
    %180 = vector.broadcast %179 : vector<1x128xf32> to vector<16x128xf32>
    %181 = arith.mulf %178, %180 : vector<16x128xf32>
    %c8_i32 = arith.constant 8 : i32
    %182 = tpu.dynamic_rotate %173 by %c8_i32 dim 1 : vector<16x128xf32>, i32 -> vector<16x128xf32>
    %183 = vector.extract_strided_slice %1 {offsets = [1, 0], sizes = [1, 128], strides = [1, 1]} : vector<9x128xf32> to vector<1x128xf32>
    %184 = vector.broadcast %183 : vector<1x128xf32> to vector<16x128xf32>
    %185 = arith.mulf %182, %184 : vector<16x128xf32>
    %c7_i32 = arith.constant 7 : i32
    %186 = tpu.dynamic_rotate %173 by %c7_i32 dim 1 : vector<16x128xf32>, i32 -> vector<16x128xf32>
    %187 = vector.extract_strided_slice %1 {offsets = [2, 0], sizes = [1, 128], strides = [1, 1]} : vector<9x128xf32> to vector<1x128xf32>
    %188 = vector.broadcast %187 : vector<1x128xf32> to vector<16x128xf32>
    %189 = arith.mulf %186, %188 : vector<16x128xf32>
    %c1_i32_65 = arith.constant 1 : i32
    %190 = tpu.dynamic_rotate %173 by %c1_i32_65 dim 1 : vector<16x128xf32>, i32 -> vector<16x128xf32>
    %191 = vector.extract_strided_slice %1 {offsets = [3, 0], sizes = [1, 128], strides = [1, 1]} : vector<9x128xf32> to vector<1x128xf32>
    %192 = vector.broadcast %191 : vector<1x128xf32> to vector<16x128xf32>
    %193 = arith.mulf %190, %192 : vector<16x128xf32>
    %c127_i32 = arith.constant 127 : i32
    %194 = tpu.dynamic_rotate %173 by %c127_i32 dim 1 : vector<16x128xf32>, i32 -> vector<16x128xf32>
    %195 = vector.extract_strided_slice %1 {offsets = [5, 0], sizes = [1, 128], strides = [1, 1]} : vector<9x128xf32> to vector<1x128xf32>
    %196 = vector.broadcast %195 : vector<1x128xf32> to vector<16x128xf32>
    %197 = arith.mulf %194, %196 : vector<16x128xf32>
    %c121_i32 = arith.constant 121 : i32
    %198 = tpu.dynamic_rotate %173 by %c121_i32 dim 1 : vector<16x128xf32>, i32 -> vector<16x128xf32>
    %199 = vector.extract_strided_slice %1 {offsets = [6, 0], sizes = [1, 128], strides = [1, 1]} : vector<9x128xf32> to vector<1x128xf32>
    %200 = vector.broadcast %199 : vector<1x128xf32> to vector<16x128xf32>
    %201 = arith.mulf %198, %200 : vector<16x128xf32>
    %c120_i32 = arith.constant 120 : i32
    %202 = tpu.dynamic_rotate %173 by %c120_i32 dim 1 : vector<16x128xf32>, i32 -> vector<16x128xf32>
    %203 = vector.extract_strided_slice %1 {offsets = [7, 0], sizes = [1, 128], strides = [1, 1]} : vector<9x128xf32> to vector<1x128xf32>
    %204 = vector.broadcast %203 : vector<1x128xf32> to vector<16x128xf32>
    %205 = arith.mulf %202, %204 : vector<16x128xf32>
    %c119_i32 = arith.constant 119 : i32
    %206 = tpu.dynamic_rotate %173 by %c119_i32 dim 1 : vector<16x128xf32>, i32 -> vector<16x128xf32>
    %207 = vector.extract_strided_slice %1 {offsets = [8, 0], sizes = [1, 128], strides = [1, 1]} : vector<9x128xf32> to vector<1x128xf32>
    %208 = vector.broadcast %207 : vector<1x128xf32> to vector<16x128xf32>
    %209 = arith.mulf %206, %208 : vector<16x128xf32>
    %210 = tpu.concatenate %181, %185, %189, %193, %173, %197, %201, %205, %209 in 0 : vector<16x128xf32>, vector<16x128xf32>, vector<16x128xf32>, vector<16x128xf32>, vector<16x128xf32>, vector<16x128xf32>, vector<16x128xf32>, vector<16x128xf32>, vector<16x128xf32> -> vector<144x128xf32>
    %cst_66 = arith.constant dense<0.000000e+00> : vector<16x128xf32>
    %211 = tpu.matmul %175, %210, %cst_66 {dimension_numbers = #tpu.dot_dimension_numbers<[1], [0], [0], [1], [0, 0, 1, 1], [], []>} : vector<16x144xf32>, vector<144x128xf32>, vector<16x128xf32> -> vector<16x128xf32>
    %212 = vector.broadcast %177 : vector<16x1xf32> to vector<16x128xf32>
    %213 = arith.addf %211, %212 : vector<16x128xf32>
    %cst_67 = arith.constant 0.000000e+00 : f32
    %214 = vector.broadcast %cst_67 : f32 to vector<16x128xf32>
    %215 = arith.maximumf %213, %214 : vector<16x128xf32>
    %c1_68 = arith.constant 1 : index
    %c0_69 = arith.constant 0 : index
    %c0_70 = arith.constant 0 : index
    %216 = vector.load %arg5[%c1_68, %c0_69, %c0_70] : memref<4x16x144xf32, #tpu.memory_space<vmem>>, vector<1x16x144xf32>
    %217 = vector.shape_cast %216 : vector<1x16x144xf32> to vector<16x144xf32>
    %c1_71 = arith.constant 1 : index
    %c0_72 = arith.constant 0 : index
    %c0_73 = arith.constant 0 : index
    %218 = vector.load %arg6[%c1_71, %c0_72, %c0_73] : memref<4x16x1xf32, #tpu.memory_space<vmem>>, vector<1x16x1xf32>
    %219 = vector.shape_cast %218 : vector<1x16x1xf32> to vector<16x1xf32>
    %c9_i32_74 = arith.constant 9 : i32
    %220 = tpu.dynamic_rotate %215 by %c9_i32_74 dim 1 : vector<16x128xf32>, i32 -> vector<16x128xf32>
    %221 = vector.extract_strided_slice %1 {offsets = [0, 0], sizes = [1, 128], strides = [1, 1]} : vector<9x128xf32> to vector<1x128xf32>
    %222 = vector.broadcast %221 : vector<1x128xf32> to vector<16x128xf32>
    %223 = arith.mulf %220, %222 : vector<16x128xf32>
    %c8_i32_75 = arith.constant 8 : i32
    %224 = tpu.dynamic_rotate %215 by %c8_i32_75 dim 1 : vector<16x128xf32>, i32 -> vector<16x128xf32>
    %225 = vector.extract_strided_slice %1 {offsets = [1, 0], sizes = [1, 128], strides = [1, 1]} : vector<9x128xf32> to vector<1x128xf32>
    %226 = vector.broadcast %225 : vector<1x128xf32> to vector<16x128xf32>
    %227 = arith.mulf %224, %226 : vector<16x128xf32>
    %c7_i32_76 = arith.constant 7 : i32
    %228 = tpu.dynamic_rotate %215 by %c7_i32_76 dim 1 : vector<16x128xf32>, i32 -> vector<16x128xf32>
    %229 = vector.extract_strided_slice %1 {offsets = [2, 0], sizes = [1, 128], strides = [1, 1]} : vector<9x128xf32> to vector<1x128xf32>
    %230 = vector.broadcast %229 : vector<1x128xf32> to vector<16x128xf32>
    %231 = arith.mulf %228, %230 : vector<16x128xf32>
    %c1_i32_77 = arith.constant 1 : i32
    %232 = tpu.dynamic_rotate %215 by %c1_i32_77 dim 1 : vector<16x128xf32>, i32 -> vector<16x128xf32>
    %233 = vector.extract_strided_slice %1 {offsets = [3, 0], sizes = [1, 128], strides = [1, 1]} : vector<9x128xf32> to vector<1x128xf32>
    %234 = vector.broadcast %233 : vector<1x128xf32> to vector<16x128xf32>
    %235 = arith.mulf %232, %234 : vector<16x128xf32>
    %c127_i32_78 = arith.constant 127 : i32
    %236 = tpu.dynamic_rotate %215 by %c127_i32_78 dim 1 : vector<16x128xf32>, i32 -> vector<16x128xf32>
    %237 = vector.extract_strided_slice %1 {offsets = [5, 0], sizes = [1, 128], strides = [1, 1]} : vector<9x128xf32> to vector<1x128xf32>
    %238 = vector.broadcast %237 : vector<1x128xf32> to vector<16x128xf32>
    %239 = arith.mulf %236, %238 : vector<16x128xf32>
    %c121_i32_79 = arith.constant 121 : i32
    %240 = tpu.dynamic_rotate %215 by %c121_i32_79 dim 1 : vector<16x128xf32>, i32 -> vector<16x128xf32>
    %241 = vector.extract_strided_slice %1 {offsets = [6, 0], sizes = [1, 128], strides = [1, 1]} : vector<9x128xf32> to vector<1x128xf32>
    %242 = vector.broadcast %241 : vector<1x128xf32> to vector<16x128xf32>
    %243 = arith.mulf %240, %242 : vector<16x128xf32>
    %c120_i32_80 = arith.constant 120 : i32
    %244 = tpu.dynamic_rotate %215 by %c120_i32_80 dim 1 : vector<16x128xf32>, i32 -> vector<16x128xf32>
    %245 = vector.extract_strided_slice %1 {offsets = [7, 0], sizes = [1, 128], strides = [1, 1]} : vector<9x128xf32> to vector<1x128xf32>
    %246 = vector.broadcast %245 : vector<1x128xf32> to vector<16x128xf32>
    %247 = arith.mulf %244, %246 : vector<16x128xf32>
    %c119_i32_81 = arith.constant 119 : i32
    %248 = tpu.dynamic_rotate %215 by %c119_i32_81 dim 1 : vector<16x128xf32>, i32 -> vector<16x128xf32>
    %249 = vector.extract_strided_slice %1 {offsets = [8, 0], sizes = [1, 128], strides = [1, 1]} : vector<9x128xf32> to vector<1x128xf32>
    %250 = vector.broadcast %249 : vector<1x128xf32> to vector<16x128xf32>
    %251 = arith.mulf %248, %250 : vector<16x128xf32>
    %252 = tpu.concatenate %223, %227, %231, %235, %215, %239, %243, %247, %251 in 0 : vector<16x128xf32>, vector<16x128xf32>, vector<16x128xf32>, vector<16x128xf32>, vector<16x128xf32>, vector<16x128xf32>, vector<16x128xf32>, vector<16x128xf32>, vector<16x128xf32> -> vector<144x128xf32>
    %cst_82 = arith.constant dense<0.000000e+00> : vector<16x128xf32>
    %253 = tpu.matmul %217, %252, %cst_82 {dimension_numbers = #tpu.dot_dimension_numbers<[1], [0], [0], [1], [0, 0, 1, 1], [], []>} : vector<16x144xf32>, vector<144x128xf32>, vector<16x128xf32> -> vector<16x128xf32>
    %254 = vector.broadcast %219 : vector<16x1xf32> to vector<16x128xf32>
    %255 = arith.addf %253, %254 : vector<16x128xf32>
    %256 = arith.addf %255, %173 : vector<16x128xf32>
    %cst_83 = arith.constant 0.000000e+00 : f32
    %257 = vector.broadcast %cst_83 : f32 to vector<16x128xf32>
    %258 = arith.maximumf %256, %257 : vector<16x128xf32>
    %c2_84 = arith.constant 2 : index
    %c0_85 = arith.constant 0 : index
    %c0_86 = arith.constant 0 : index
    %259 = vector.load %arg5[%c2_84, %c0_85, %c0_86] : memref<4x16x144xf32, #tpu.memory_space<vmem>>, vector<1x16x144xf32>
    %260 = vector.shape_cast %259 : vector<1x16x144xf32> to vector<16x144xf32>
    %c2_87 = arith.constant 2 : index
    %c0_88 = arith.constant 0 : index
    %c0_89 = arith.constant 0 : index
    %261 = vector.load %arg6[%c2_87, %c0_88, %c0_89] : memref<4x16x1xf32, #tpu.memory_space<vmem>>, vector<1x16x1xf32>
    %262 = vector.shape_cast %261 : vector<1x16x1xf32> to vector<16x1xf32>
    %c9_i32_90 = arith.constant 9 : i32
    %263 = tpu.dynamic_rotate %258 by %c9_i32_90 dim 1 : vector<16x128xf32>, i32 -> vector<16x128xf32>
    %264 = vector.extract_strided_slice %1 {offsets = [0, 0], sizes = [1, 128], strides = [1, 1]} : vector<9x128xf32> to vector<1x128xf32>
    %265 = vector.broadcast %264 : vector<1x128xf32> to vector<16x128xf32>
    %266 = arith.mulf %263, %265 : vector<16x128xf32>
    %c8_i32_91 = arith.constant 8 : i32
    %267 = tpu.dynamic_rotate %258 by %c8_i32_91 dim 1 : vector<16x128xf32>, i32 -> vector<16x128xf32>
    %268 = vector.extract_strided_slice %1 {offsets = [1, 0], sizes = [1, 128], strides = [1, 1]} : vector<9x128xf32> to vector<1x128xf32>
    %269 = vector.broadcast %268 : vector<1x128xf32> to vector<16x128xf32>
    %270 = arith.mulf %267, %269 : vector<16x128xf32>
    %c7_i32_92 = arith.constant 7 : i32
    %271 = tpu.dynamic_rotate %258 by %c7_i32_92 dim 1 : vector<16x128xf32>, i32 -> vector<16x128xf32>
    %272 = vector.extract_strided_slice %1 {offsets = [2, 0], sizes = [1, 128], strides = [1, 1]} : vector<9x128xf32> to vector<1x128xf32>
    %273 = vector.broadcast %272 : vector<1x128xf32> to vector<16x128xf32>
    %274 = arith.mulf %271, %273 : vector<16x128xf32>
    %c1_i32_93 = arith.constant 1 : i32
    %275 = tpu.dynamic_rotate %258 by %c1_i32_93 dim 1 : vector<16x128xf32>, i32 -> vector<16x128xf32>
    %276 = vector.extract_strided_slice %1 {offsets = [3, 0], sizes = [1, 128], strides = [1, 1]} : vector<9x128xf32> to vector<1x128xf32>
    %277 = vector.broadcast %276 : vector<1x128xf32> to vector<16x128xf32>
    %278 = arith.mulf %275, %277 : vector<16x128xf32>
    %c127_i32_94 = arith.constant 127 : i32
    %279 = tpu.dynamic_rotate %258 by %c127_i32_94 dim 1 : vector<16x128xf32>, i32 -> vector<16x128xf32>
    %280 = vector.extract_strided_slice %1 {offsets = [5, 0], sizes = [1, 128], strides = [1, 1]} : vector<9x128xf32> to vector<1x128xf32>
    %281 = vector.broadcast %280 : vector<1x128xf32> to vector<16x128xf32>
    %282 = arith.mulf %279, %281 : vector<16x128xf32>
    %c121_i32_95 = arith.constant 121 : i32
    %283 = tpu.dynamic_rotate %258 by %c121_i32_95 dim 1 : vector<16x128xf32>, i32 -> vector<16x128xf32>
    %284 = vector.extract_strided_slice %1 {offsets = [6, 0], sizes = [1, 128], strides = [1, 1]} : vector<9x128xf32> to vector<1x128xf32>
    %285 = vector.broadcast %284 : vector<1x128xf32> to vector<16x128xf32>
    %286 = arith.mulf %283, %285 : vector<16x128xf32>
    %c120_i32_96 = arith.constant 120 : i32
    %287 = tpu.dynamic_rotate %258 by %c120_i32_96 dim 1 : vector<16x128xf32>, i32 -> vector<16x128xf32>
    %288 = vector.extract_strided_slice %1 {offsets = [7, 0], sizes = [1, 128], strides = [1, 1]} : vector<9x128xf32> to vector<1x128xf32>
    %289 = vector.broadcast %288 : vector<1x128xf32> to vector<16x128xf32>
    %290 = arith.mulf %287, %289 : vector<16x128xf32>
    %c119_i32_97 = arith.constant 119 : i32
    %291 = tpu.dynamic_rotate %258 by %c119_i32_97 dim 1 : vector<16x128xf32>, i32 -> vector<16x128xf32>
    %292 = vector.extract_strided_slice %1 {offsets = [8, 0], sizes = [1, 128], strides = [1, 1]} : vector<9x128xf32> to vector<1x128xf32>
    %293 = vector.broadcast %292 : vector<1x128xf32> to vector<16x128xf32>
    %294 = arith.mulf %291, %293 : vector<16x128xf32>
    %295 = tpu.concatenate %266, %270, %274, %278, %258, %282, %286, %290, %294 in 0 : vector<16x128xf32>, vector<16x128xf32>, vector<16x128xf32>, vector<16x128xf32>, vector<16x128xf32>, vector<16x128xf32>, vector<16x128xf32>, vector<16x128xf32>, vector<16x128xf32> -> vector<144x128xf32>
    %cst_98 = arith.constant dense<0.000000e+00> : vector<16x128xf32>
    %296 = tpu.matmul %260, %295, %cst_98 {dimension_numbers = #tpu.dot_dimension_numbers<[1], [0], [0], [1], [0, 0, 1, 1], [], []>} : vector<16x144xf32>, vector<144x128xf32>, vector<16x128xf32> -> vector<16x128xf32>
    %297 = vector.broadcast %262 : vector<16x1xf32> to vector<16x128xf32>
    %298 = arith.addf %296, %297 : vector<16x128xf32>
    %cst_99 = arith.constant 0.000000e+00 : f32
    %299 = vector.broadcast %cst_99 : f32 to vector<16x128xf32>
    %300 = arith.maximumf %298, %299 : vector<16x128xf32>
    %c3_100 = arith.constant 3 : index
    %c0_101 = arith.constant 0 : index
    %c0_102 = arith.constant 0 : index
    %301 = vector.load %arg5[%c3_100, %c0_101, %c0_102] : memref<4x16x144xf32, #tpu.memory_space<vmem>>, vector<1x16x144xf32>
    %302 = vector.shape_cast %301 : vector<1x16x144xf32> to vector<16x144xf32>
    %c3_103 = arith.constant 3 : index
    %c0_104 = arith.constant 0 : index
    %c0_105 = arith.constant 0 : index
    %303 = vector.load %arg6[%c3_103, %c0_104, %c0_105] : memref<4x16x1xf32, #tpu.memory_space<vmem>>, vector<1x16x1xf32>
    %304 = vector.shape_cast %303 : vector<1x16x1xf32> to vector<16x1xf32>
    %c9_i32_106 = arith.constant 9 : i32
    %305 = tpu.dynamic_rotate %300 by %c9_i32_106 dim 1 : vector<16x128xf32>, i32 -> vector<16x128xf32>
    %306 = vector.extract_strided_slice %1 {offsets = [0, 0], sizes = [1, 128], strides = [1, 1]} : vector<9x128xf32> to vector<1x128xf32>
    %307 = vector.broadcast %306 : vector<1x128xf32> to vector<16x128xf32>
    %308 = arith.mulf %305, %307 : vector<16x128xf32>
    %c8_i32_107 = arith.constant 8 : i32
    %309 = tpu.dynamic_rotate %300 by %c8_i32_107 dim 1 : vector<16x128xf32>, i32 -> vector<16x128xf32>
    %310 = vector.extract_strided_slice %1 {offsets = [1, 0], sizes = [1, 128], strides = [1, 1]} : vector<9x128xf32> to vector<1x128xf32>
    %311 = vector.broadcast %310 : vector<1x128xf32> to vector<16x128xf32>
    %312 = arith.mulf %309, %311 : vector<16x128xf32>
    %c7_i32_108 = arith.constant 7 : i32
    %313 = tpu.dynamic_rotate %300 by %c7_i32_108 dim 1 : vector<16x128xf32>, i32 -> vector<16x128xf32>
    %314 = vector.extract_strided_slice %1 {offsets = [2, 0], sizes = [1, 128], strides = [1, 1]} : vector<9x128xf32> to vector<1x128xf32>
    %315 = vector.broadcast %314 : vector<1x128xf32> to vector<16x128xf32>
    %316 = arith.mulf %313, %315 : vector<16x128xf32>
    %c1_i32_109 = arith.constant 1 : i32
    %317 = tpu.dynamic_rotate %300 by %c1_i32_109 dim 1 : vector<16x128xf32>, i32 -> vector<16x128xf32>
    %318 = vector.extract_strided_slice %1 {offsets = [3, 0], sizes = [1, 128], strides = [1, 1]} : vector<9x128xf32> to vector<1x128xf32>
    %319 = vector.broadcast %318 : vector<1x128xf32> to vector<16x128xf32>
    %320 = arith.mulf %317, %319 : vector<16x128xf32>
    %c127_i32_110 = arith.constant 127 : i32
    %321 = tpu.dynamic_rotate %300 by %c127_i32_110 dim 1 : vector<16x128xf32>, i32 -> vector<16x128xf32>
    %322 = vector.extract_strided_slice %1 {offsets = [5, 0], sizes = [1, 128], strides = [1, 1]} : vector<9x128xf32> to vector<1x128xf32>
    %323 = vector.broadcast %322 : vector<1x128xf32> to vector<16x128xf32>
    %324 = arith.mulf %321, %323 : vector<16x128xf32>
    %c121_i32_111 = arith.constant 121 : i32
    %325 = tpu.dynamic_rotate %300 by %c121_i32_111 dim 1 : vector<16x128xf32>, i32 -> vector<16x128xf32>
    %326 = vector.extract_strided_slice %1 {offsets = [6, 0], sizes = [1, 128], strides = [1, 1]} : vector<9x128xf32> to vector<1x128xf32>
    %327 = vector.broadcast %326 : vector<1x128xf32> to vector<16x128xf32>
    %328 = arith.mulf %325, %327 : vector<16x128xf32>
    %c120_i32_112 = arith.constant 120 : i32
    %329 = tpu.dynamic_rotate %300 by %c120_i32_112 dim 1 : vector<16x128xf32>, i32 -> vector<16x128xf32>
    %330 = vector.extract_strided_slice %1 {offsets = [7, 0], sizes = [1, 128], strides = [1, 1]} : vector<9x128xf32> to vector<1x128xf32>
    %331 = vector.broadcast %330 : vector<1x128xf32> to vector<16x128xf32>
    %332 = arith.mulf %329, %331 : vector<16x128xf32>
    %c119_i32_113 = arith.constant 119 : i32
    %333 = tpu.dynamic_rotate %300 by %c119_i32_113 dim 1 : vector<16x128xf32>, i32 -> vector<16x128xf32>
    %334 = vector.extract_strided_slice %1 {offsets = [8, 0], sizes = [1, 128], strides = [1, 1]} : vector<9x128xf32> to vector<1x128xf32>
    %335 = vector.broadcast %334 : vector<1x128xf32> to vector<16x128xf32>
    %336 = arith.mulf %333, %335 : vector<16x128xf32>
    %337 = tpu.concatenate %308, %312, %316, %320, %300, %324, %328, %332, %336 in 0 : vector<16x128xf32>, vector<16x128xf32>, vector<16x128xf32>, vector<16x128xf32>, vector<16x128xf32>, vector<16x128xf32>, vector<16x128xf32>, vector<16x128xf32>, vector<16x128xf32> -> vector<144x128xf32>
    %cst_114 = arith.constant dense<0.000000e+00> : vector<16x128xf32>
    %338 = tpu.matmul %302, %337, %cst_114 {dimension_numbers = #tpu.dot_dimension_numbers<[1], [0], [0], [1], [0, 0, 1, 1], [], []>} : vector<16x144xf32>, vector<144x128xf32>, vector<16x128xf32> -> vector<16x128xf32>
    %339 = vector.broadcast %304 : vector<16x1xf32> to vector<16x128xf32>
    %340 = arith.addf %338, %339 : vector<16x128xf32>
    %341 = arith.addf %340, %258 : vector<16x128xf32>
    %cst_115 = arith.constant 0.000000e+00 : f32
    %342 = vector.broadcast %cst_115 : f32 to vector<16x128xf32>
    %343 = arith.maximumf %341, %342 : vector<16x128xf32>
    %c0_116 = arith.constant 0 : index
    %c0_117 = arith.constant 0 : index
    %344 = vector.load %arg7[%c0_116, %c0_117] : memref<8x16xf32, #tpu.memory_space<vmem>>, vector<8x16xf32>
    %cst_118 = arith.constant dense<0.000000e+00> : vector<8x128xf32>
    %345 = tpu.matmul %344, %343, %cst_118 {dimension_numbers = #tpu.dot_dimension_numbers<[1], [0], [0], [1], [0, 0, 1, 1], [], []>} : vector<8x16xf32>, vector<16x128xf32>, vector<8x128xf32> -> vector<8x128xf32>
    %c0_119 = arith.constant 0 : index
    %c0_120 = arith.constant 0 : index
    %346 = vector.load %arg8[%c0_119, %c0_120] : memref<8x1xf32, #tpu.memory_space<vmem>>, vector<8x1xf32>
    %347 = vector.broadcast %346 : vector<8x1xf32> to vector<8x128xf32>
    %348 = arith.addf %345, %347 : vector<8x128xf32>
    %c0_121 = arith.constant 0 : index
    %c0_122 = arith.constant 0 : index
    %349 = vector.load %arg11[%c0_121, %c0_122] : memref<128x512xf32, #tpu.memory_space<vmem>>, vector<128x512xf32>
    %cst_123 = arith.constant dense<0.000000e+00> : vector<8x512xf32>
    %350 = tpu.matmul %348, %349, %cst_123 {dimension_numbers = #tpu.dot_dimension_numbers<[1], [0], [0], [1], [0, 0, 1, 1], [], []>} : vector<8x128xf32>, vector<128x512xf32>, vector<8x512xf32> -> vector<8x512xf32>
    %351 = arith.addf %172, %350 : vector<8x512xf32>
    %cst_124 = arith.constant 0.000000e+00 : f32
    %352 = vector.broadcast %cst_124 : f32 to vector<8x512xf32>
    %353 = arith.maximumf %351, %352 : vector<8x512xf32>
    %c0_125 = arith.constant 0 : index
    %c0_126 = arith.constant 0 : index
    %354 = vector.load %arg15[%c0_125, %c0_126] : memref<8x512xf32, #tpu.memory_space<vmem>>, vector<8x512xf32>
    tpu.vector_store %arg15[%c0_125, %c0_126], %353 {strides = array<i32>} : memref<8x512xf32, #tpu.memory_space<vmem>>, vector<8x512xf32>,
    %c0_127 = arith.constant 0 : index
    %c0_128 = arith.constant 0 : index
    %355 = vector.load %arg9[%c0_127, %c0_128] : memref<16x72xf32, #tpu.memory_space<vmem>>, vector<16x72xf32>
    %c0_129 = arith.constant 0 : index
    %c0_130 = arith.constant 0 : index
    %356 = vector.load %arg10[%c0_129, %c0_130] : memref<16x1xf32, #tpu.memory_space<vmem>>, vector<16x1xf32>
    %c17_i32_131 = arith.constant 17 : i32
    %357 = tpu.dynamic_rotate %172 by %c17_i32_131 dim 1 : vector<8x512xf32>, i32 -> vector<8x512xf32>
    %358 = vector.extract_strided_slice %0 {offsets = [0, 0], sizes = [1, 512], strides = [1, 1]} : vector<9x512xf32> to vector<1x512xf32>
    %359 = vector.broadcast %358 : vector<1x512xf32> to vector<8x512xf32>
    %360 = arith.mulf %357, %359 : vector<8x512xf32>
    %c16_i32_132 = arith.constant 16 : i32
    %361 = tpu.dynamic_rotate %172 by %c16_i32_132 dim 1 : vector<8x512xf32>, i32 -> vector<8x512xf32>
    %362 = vector.extract_strided_slice %0 {offsets = [1, 0], sizes = [1, 512], strides = [1, 1]} : vector<9x512xf32> to vector<1x512xf32>
    %363 = vector.broadcast %362 : vector<1x512xf32> to vector<8x512xf32>
    %364 = arith.mulf %361, %363 : vector<8x512xf32>
    %c15_i32_133 = arith.constant 15 : i32
    %365 = tpu.dynamic_rotate %172 by %c15_i32_133 dim 1 : vector<8x512xf32>, i32 -> vector<8x512xf32>
    %366 = vector.extract_strided_slice %0 {offsets = [2, 0], sizes = [1, 512], strides = [1, 1]} : vector<9x512xf32> to vector<1x512xf32>
    %367 = vector.broadcast %366 : vector<1x512xf32> to vector<8x512xf32>
    %368 = arith.mulf %365, %367 : vector<8x512xf32>
    %c1_i32_134 = arith.constant 1 : i32
    %369 = tpu.dynamic_rotate %172 by %c1_i32_134 dim 1 : vector<8x512xf32>, i32 -> vector<8x512xf32>
    %370 = vector.extract_strided_slice %0 {offsets = [3, 0], sizes = [1, 512], strides = [1, 1]} : vector<9x512xf32> to vector<1x512xf32>
    %371 = vector.broadcast %370 : vector<1x512xf32> to vector<8x512xf32>
    %372 = arith.mulf %369, %371 : vector<8x512xf32>
    %c511_i32_135 = arith.constant 511 : i32
    %373 = tpu.dynamic_rotate %172 by %c511_i32_135 dim 1 : vector<8x512xf32>, i32 -> vector<8x512xf32>
    %374 = vector.extract_strided_slice %0 {offsets = [5, 0], sizes = [1, 512], strides = [1, 1]} : vector<9x512xf32> to vector<1x512xf32>
    %375 = vector.broadcast %374 : vector<1x512xf32> to vector<8x512xf32>
    %376 = arith.mulf %373, %375 : vector<8x512xf32>
    %c497_i32_136 = arith.constant 497 : i32
    %377 = tpu.dynamic_rotate %172 by %c497_i32_136 dim 1 : vector<8x512xf32>, i32 -> vector<8x512xf32>
    %378 = vector.extract_strided_slice %0 {offsets = [6, 0], sizes = [1, 512], strides = [1, 1]} : vector<9x512xf32> to vector<1x512xf32>
    %379 = vector.broadcast %378 : vector<1x512xf32> to vector<8x512xf32>
    %380 = arith.mulf %377, %379 : vector<8x512xf32>
    %c496_i32_137 = arith.constant 496 : i32
    %381 = tpu.dynamic_rotate %172 by %c496_i32_137 dim 1 : vector<8x512xf32>, i32 -> vector<8x512xf32>
    %382 = vector.extract_strided_slice %0 {offsets = [7, 0], sizes = [1, 512], strides = [1, 1]} : vector<9x512xf32> to vector<1x512xf32>
    %383 = vector.broadcast %382 : vector<1x512xf32> to vector<8x512xf32>
    %384 = arith.mulf %381, %383 : vector<8x512xf32>
    %c495_i32_138 = arith.constant 495 : i32
    %385 = tpu.dynamic_rotate %172 by %c495_i32_138 dim 1 : vector<8x512xf32>, i32 -> vector<8x512xf32>
    %386 = vector.extract_strided_slice %0 {offsets = [8, 0], sizes = [1, 512], strides = [1, 1]} : vector<9x512xf32> to vector<1x512xf32>
    %387 = vector.broadcast %386 : vector<1x512xf32> to vector<8x512xf32>
    %388 = arith.mulf %385, %387 : vector<8x512xf32>
    %389 = tpu.concatenate %360, %364, %368, %372, %172, %376, %380, %384, %388 in 0 : vector<8x512xf32>, vector<8x512xf32>, vector<8x512xf32>, vector<8x512xf32>, vector<8x512xf32>, vector<8x512xf32>, vector<8x512xf32>, vector<8x512xf32>, vector<8x512xf32> -> vector<72x512xf32>
    %cst_139 = arith.constant dense<0.000000e+00> : vector<16x512xf32>
    %390 = tpu.matmul %355, %389, %cst_139 {dimension_numbers = #tpu.dot_dimension_numbers<[1], [0], [0], [1], [0, 0, 1, 1], [], []>} : vector<16x72xf32>, vector<72x512xf32>, vector<16x512xf32> -> vector<16x512xf32>
    %391 = vector.broadcast %356 : vector<16x1xf32> to vector<16x512xf32>
    %392 = arith.addf %390, %391 : vector<16x512xf32>
    %c0_140 = arith.constant 0 : index
    %c0_141 = arith.constant 0 : index
    %393 = vector.load %arg12[%c0_140, %c0_141] : memref<512x128xf32, #tpu.memory_space<vmem>>, vector<512x128xf32>
    %cst_142 = arith.constant dense<0.000000e+00> : vector<16x128xf32>
    %394 = tpu.matmul %392, %393, %cst_142 {dimension_numbers = #tpu.dot_dimension_numbers<[1], [0], [0], [1], [0, 0, 1, 1], [], []>} : vector<16x512xf32>, vector<512x128xf32>, vector<16x128xf32> -> vector<16x128xf32>
    %395 = arith.addf %394, %343 : vector<16x128xf32>
    %cst_143 = arith.constant 0.000000e+00 : f32
    %396 = vector.broadcast %cst_143 : f32 to vector<16x128xf32>
    %397 = arith.maximumf %395, %396 : vector<16x128xf32>
    %c0_144 = arith.constant 0 : index
    %c0_145 = arith.constant 0 : index
    %398 = vector.load %arg16[%c0_144, %c0_145] : memref<16x128xf32, #tpu.memory_space<vmem>>, vector<16x128xf32>
    tpu.vector_store %arg16[%c0_144, %c0_145], %397 {strides = array<i32>} : memref<16x128xf32, #tpu.memory_space<vmem>>, vector<16x128xf32>,
    return
  }
  func.func @transform_0(%arg0: i32) -> (i32, i32) {
    %c0_i32 = arith.constant 0 : i32
    %c0_i32_0 = arith.constant 0 : i32
    return %c0_i32, %arg0 : i32, i32
  }
  func.func @transform_1(%arg0: i32) -> (i32, i32) {
    %c0_i32 = arith.constant 0 : i32
    %c0_i32_0 = arith.constant 0 : i32
    return %c0_i32, %arg0 : i32, i32
  }
  func.func @transform_2(%arg0: i32) -> (i32, i32, i32) {
    %c0_i32 = arith.constant 0 : i32
    %c0_i32_0 = arith.constant 0 : i32
    %c0_i32_1 = arith.constant 0 : i32
    %c0_i32_2 = arith.constant 0 : i32
    return %c0_i32, %c0_i32_0, %c0_i32_1 : i32, i32, i32
  }
  func.func @transform_3(%arg0: i32) -> (i32, i32, i32) {
    %c0_i32 = arith.constant 0 : i32
    %c0_i32_0 = arith.constant 0 : i32
    %c0_i32_1 = arith.constant 0 : i32
    %c0_i32_2 = arith.constant 0 : i32
    return %c0_i32, %c0_i32_0, %c0_i32_1 : i32, i32, i32
  }
  func.func @transform_4(%arg0: i32) -> (i32, i32, i32) {
    %c0_i32 = arith.constant 0 : i32
    %c0_i32_0 = arith.constant 0 : i32
    %c0_i32_1 = arith.constant 0 : i32
    %c0_i32_2 = arith.constant 0 : i32
    return %c0_i32, %c0_i32_0, %c0_i32_1 : i32, i32, i32
  }
  func.func @transform_5(%arg0: i32) -> (i32, i32, i32) {
    %c0_i32 = arith.constant 0 : i32
    %c0_i32_0 = arith.constant 0 : i32
    %c0_i32_1 = arith.constant 0 : i32
    %c0_i32_2 = arith.constant 0 : i32
    return %c0_i32, %c0_i32_0, %c0_i32_1 : i32, i32, i32
  }
  func.func @transform_6(%arg0: i32) -> (i32, i32) {
    %c0_i32 = arith.constant 0 : i32
    %c0_i32_0 = arith.constant 0 : i32
    %c0_i32_1 = arith.constant 0 : i32
    return %c0_i32, %c0_i32_0 : i32, i32
  }
  func.func @transform_7(%arg0: i32) -> (i32, i32) {
    %c0_i32 = arith.constant 0 : i32
    %c0_i32_0 = arith.constant 0 : i32
    %c0_i32_1 = arith.constant 0 : i32
    return %c0_i32, %c0_i32_0 : i32, i32
  }
  func.func @transform_8(%arg0: i32) -> (i32, i32) {
    %c0_i32 = arith.constant 0 : i32
    %c0_i32_0 = arith.constant 0 : i32
    %c0_i32_1 = arith.constant 0 : i32
    return %c0_i32, %c0_i32_0 : i32, i32
  }
  func.func @transform_9(%arg0: i32) -> (i32, i32) {
    %c0_i32 = arith.constant 0 : i32
    %c0_i32_0 = arith.constant 0 : i32
    %c0_i32_1 = arith.constant 0 : i32
    return %c0_i32, %c0_i32_0 : i32, i32
  }
  func.func @transform_10(%arg0: i32) -> (i32, i32) {
    %c0_i32 = arith.constant 0 : i32
    %c0_i32_0 = arith.constant 0 : i32
    %c0_i32_1 = arith.constant 0 : i32
    return %c0_i32, %c0_i32_0 : i32, i32
  }
  func.func @transform_11(%arg0: i32) -> (i32, i32) {
    %c0_i32 = arith.constant 0 : i32
    %c0_i32_0 = arith.constant 0 : i32
    %c0_i32_1 = arith.constant 0 : i32
    return %c0_i32, %c0_i32_0 : i32, i32
  }
  func.func @transform_12(%arg0: i32) -> (i32, i32) {
    %c0_i32 = arith.constant 0 : i32
    %c0_i32_0 = arith.constant 0 : i32
    %c0_i32_1 = arith.constant 0 : i32
    return %c0_i32, %c0_i32_0 : i32, i32
  }
  func.func @transform_13(%arg0: i32) -> (i32, i32) {
    %c0_i32 = arith.constant 0 : i32
    %c0_i32_0 = arith.constant 0 : i32
    %c0_i32_1 = arith.constant 0 : i32
    return %c0_i32, %c0_i32_0 : i32, i32
  }
  func.func @transform_14(%arg0: i32) -> (i32, i32) {
    %c0_i32 = arith.constant 0 : i32
    %c0_i32_0 = arith.constant 0 : i32
    return %c0_i32, %arg0 : i32, i32
  }
  func.func @transform_15(%arg0: i32) -> (i32, i32) {
    %c0_i32 = arith.constant 0 : i32
    %c0_i32_0 = arith.constant 0 : i32
    return %c0_i32, %arg0 : i32, i32
  }
}

</mosaic_0001>

<llo_original>
// kernel: tpu_custom_call.1
$region0: #{tpu_custom_call.1}
  #allocation0 [shape = 'u32[]', space=smem, size = 0x4, offset = 0x4, fixed_abs, tag = 'smem constant byte address 0x4 - core index']
  #allocation1 [shape = 'u32[144,128]{1,0:T(1,128)}', space=vmem, size = 0x12000, scoped, tag = 'internal scratch']
  %s0 = inlined_call_operand.hbm [shape: f32[8,512], index: 0, kind: input, shape index: {}]
  %s1 = inlined_call_operand.vmem [shape: f32[16,128], index: 1, kind: input, shape index: {}]
  %s2 = inlined_call_operand.hbm [shape: f32[4,8,72], index: 2, kind: input, shape index: {}]
  %s3 = inlined_call_operand.vmem [shape: f32[4,8,1], index: 3, kind: input, shape index: {}]
  %s4 = inlined_call_operand.vmem [shape: f32[4,16,144], index: 4, kind: input, shape index: {}]
  %s5 = inlined_call_operand.vmem [shape: f32[4,16,1], index: 5, kind: input, shape index: {}]
  %s6 = inlined_call_operand.hbm [shape: f32[8,16], index: 6, kind: input, shape index: {}]
  %s7 = inlined_call_operand.vmem [shape: f32[8,1], index: 7, kind: input, shape index: {}]
  %s8 = inlined_call_operand.vmem [shape: f32[16,72], index: 8, kind: input, shape index: {}]
  %s9 = inlined_call_operand.vmem [shape: f32[16,1], index: 9, kind: input, shape index: {}]
  %s10 = inlined_call_operand.hbm [shape: f32[128,512], index: 10, kind: input, shape index: {}]
  %s11 = inlined_call_operand.hbm [shape: f32[512,128], index: 11, kind: input, shape index: {}]
  %s12 = inlined_call_operand.hbm [shape: f32[9,512], index: 12, kind: input, shape index: {}]
  %s13 = inlined_call_operand.vmem [shape: f32[9,128], index: 13, kind: input, shape index: {}]
  %s14 = inlined_call_operand.hbm [shape: f32[8,512], index: 14, kind: output, shape index: {0}]
  %s15 = inlined_call_operand.hbm [shape: f32[16,128], index: 15, kind: output, shape index: {1}]
  %16 = xla_tuple %s14, %s15
  %s17 = sld [smem:[#allocation0]]
  $region98: #{tpu_custom_call.1} parent=0
    _
  %s19 = ssub.s32 1, %s17
  %s20 = scalar_select 0, %s19, %s17
  $region1: #{tpu_custom_call.1} parent=0
    #allocation2 [shape = 'u8[16384]{0}', space=vmem, size = 0x4000, scoped, tag = 'input window, operand 0, single buffered']
    #allocation3 [shape = 's32[1]{0}', space=sflag, size = 0x4, scoped, tag = 'scoped memory for tpu_custom_call.1']
    #allocation4 [shape = 's32[1]{0}', space=sflag, size = 0x4, scoped, tag = 'scoped memory for tpu_custom_call.1']
    #allocation5 [shape = 'u8[16384]{0}', space=vmem, size = 0x4000, scoped, tag = 'input window, operand 2, single buffered']
    #allocation6 [shape = 's32[1]{0}', space=sflag, size = 0x4, scoped, tag = 'scoped memory for tpu_custom_call.1']
    #allocation7 [shape = 'u8[4096]{0}', space=vmem, size = 0x1000, scoped, tag = 'input window, operand 6, single buffered']
    #allocation8 [shape = 'u8[262144]{0}', space=vmem, size = 0x40000, scoped, tag = 'input window, operand 10, single buffered']
    #allocation9 [shape = 's32[1]{0}', space=sflag, size = 0x4, scoped, tag = 'scoped memory for tpu_custom_call.1']
    #allocation10 [shape = 'u8[262144]{0}', space=vmem, size = 0x40000, scoped, tag = 'input window, operand 11, single buffered']
    #allocation11 [shape = 'u8[32768]{0}', space=vmem, size = 0x8000, scoped, tag = 'input window, operand 12, single buffered']
    #allocation12 [shape = 's32[1]{0}', space=sflag, size = 0x4, scoped, tag = 'scoped memory for tpu_custom_call.1']
    #allocation13 [shape = 'u8[16384]{0}', space=vmem, size = 0x4000, scoped, tag = 'output window, operand 0, single buffered']
    #allocation14 [shape = 'u8[8192]{0}', space=vmem, size = 0x2000, scoped, tag = 'output window, operand 1, single buffered']
    #allocation15 [shape = 's32[1]{0}', space=sflag, size = 0x4, scoped, tag = 'scoped memory for tpu_custom_call.1']
    %21 = vsyncpa [#allocation3], 0
    %22 = vsyncpa [#allocation6], 0
    %23 = vsyncpa [#allocation9], 0
    %24 = vsyncpa [#allocation12], 0
    %25 = vsyncpa [#allocation4], 0
    %26 = vsyncpa [#allocation15], 0
    // Predicated region
    $region2: #{tpu_custom_call.1} parent=1 // pred_check
      _
    $region3: #{tpu_custom_call.1} parent=1 // pred_check_branch
      %28 = sbr.rel (0) target = $region5
    $region4: #{tpu_custom_call.1} parent=1 // pred_region
      %s30 = ssub.s32 512, 512
      %31 = vsyncadd [#allocation3], %s30
      %s33 = sshll.u32 [#allocation2], 4
      %s34 = int_to_ptr.vmem [resolvable:$true] %s33
      %36 = dma.hbm_to_vmem [thread:$0]  %s0, 512, %s34, [#allocation3]
    $region5: #{tpu_custom_call.1} parent=1 // pred_fallthru
      _
    // Predicated region
    $region6: #{tpu_custom_call.1} parent=1 // pred_check
      _
    $region7: #{tpu_custom_call.1} parent=1 // pred_check_branch
      %38 = sbr.rel (0) target = $region9
    $region8: #{tpu_custom_call.1} parent=1 // pred_region
      _
    $region9: #{tpu_custom_call.1} parent=1 // pred_fallthru
      _
    // Predicated region
    $region10: #{tpu_custom_call.1} parent=1 // pred_check
      _
    $region11: #{tpu_custom_call.1} parent=1 // pred_check_branch
      %40 = sbr.rel (0) target = $region13
    $region12: #{tpu_custom_call.1} parent=1 // pred_region
      %s42 = ssub.s32 512, 512
      %43 = vsyncadd [#allocation6], %s42
      %s44 = sshll.u32 [#allocation5], 4
      %s45 = int_to_ptr.vmem [resolvable:$true] %s44
      %50 = dma.hbm_to_vmem [thread:$0]  %s2, 512, %s45, [#allocation6], 128, 128, 8
    $region13: #{tpu_custom_call.1} parent=1 // pred_fallthru
      _
    // Predicated region
    $region14: #{tpu_custom_call.1} parent=1 // pred_check
      _
    $region15: #{tpu_custom_call.1} parent=1 // pred_check_branch
      %52 = sbr.rel (0) target = $region17
    $region16: #{tpu_custom_call.1} parent=1 // pred_region
      _
    $region17: #{tpu_custom_call.1} parent=1 // pred_fallthru
      _
    // Predicated region
    $region18: #{tpu_custom_call.1} parent=1 // pred_check
      _
    $region19: #{tpu_custom_call.1} parent=1 // pred_check_branch
      %54 = sbr.rel (0) target = $region21
    $region20: #{tpu_custom_call.1} parent=1 // pred_region
      _
    $region21: #{tpu_custom_call.1} parent=1 // pred_fallthru
      _
    // Predicated region
    $region22: #{tpu_custom_call.1} parent=1 // pred_check
      _
    $region23: #{tpu_custom_call.1} parent=1 // pred_check_branch
      %56 = sbr.rel (0) target = $region25
    $region24: #{tpu_custom_call.1} parent=1 // pred_region
      _
    $region25: #{tpu_custom_call.1} parent=1 // pred_fallthru
      _
    // Predicated region
    $region26: #{tpu_custom_call.1} parent=1 // pred_check
      _
    $region27: #{tpu_custom_call.1} parent=1 // pred_check_branch
      %58 = sbr.rel (0) target = $region29
    $region28: #{tpu_custom_call.1} parent=1 // pred_region
      %s60 = ssub.s32 128, 128
      %61 = vsyncadd [#allocation6], %s60
      %s63 = sshll.u32 [#allocation7], 4
      %s64 = int_to_ptr.vmem [resolvable:$true] %s63
      %66 = dma.hbm_to_vmem [thread:$0]  %s6, 128, %s64, [#allocation6]
    $region29: #{tpu_custom_call.1} parent=1 // pred_fallthru
      _
    // Predicated region
    $region30: #{tpu_custom_call.1} parent=1 // pred_check
      _
    $region31: #{tpu_custom_call.1} parent=1 // pred_check_branch
      %68 = sbr.rel (0) target = $region33
    $region32: #{tpu_custom_call.1} parent=1 // pred_region
      _
    $region33: #{tpu_custom_call.1} parent=1 // pred_fallthru
      _
    // Predicated region
    $region34: #{tpu_custom_call.1} parent=1 // pred_check
      _
    $region35: #{tpu_custom_call.1} parent=1 // pred_check_branch
      %70 = sbr.rel (0) target = $region37
    $region36: #{tpu_custom_call.1} parent=1 // pred_region
      _
    $region37: #{tpu_custom_call.1} parent=1 // pred_fallthru
      _
    // Predicated region
    $region38: #{tpu_custom_call.1} parent=1 // pred_check
      _
    $region39: #{tpu_custom_call.1} parent=1 // pred_check_branch
      %72 = sbr.rel (0) target = $region41
    $region40: #{tpu_custom_call.1} parent=1 // pred_region
      _
    $region41: #{tpu_custom_call.1} parent=1 // pred_fallthru
      _
    // Predicated region
    $region42: #{tpu_custom_call.1} parent=1 // pred_check
      _
    $region43: #{tpu_custom_call.1} parent=1 // pred_check_branch
      %74 = sbr.rel (0) target = $region45
    $region44: #{tpu_custom_call.1} parent=1 // pred_region
      %s76 = ssub.s32 8192, 8192
      %77 = vsyncadd [#allocation9], %s76
      %s78 = sshll.u32 [#allocation8], 4
      %s79 = int_to_ptr.vmem [resolvable:$true] %s78
      %84 = dma.hbm_to_vmem [thread:$0]  %s10, 8192, %s79, [#allocation9], 512, 512, 32
    $region45: #{tpu_custom_call.1} parent=1 // pred_fallthru
      _
    // Predicated region
    $region46: #{tpu_custom_call.1} parent=1 // pred_check
      _
    $region47: #{tpu_custom_call.1} parent=1 // pred_check_branch
      %86 = sbr.rel (0) target = $region49
    $region48: #{tpu_custom_call.1} parent=1 // pred_region
      %s88 = ssub.s32 8192, 8192
      %89 = vsyncadd [#allocation9], %s88
      %s90 = sshll.u32 [#allocation10], 4
      %s91 = int_to_ptr.vmem [resolvable:$true] %s90
      %96 = dma.hbm_to_vmem [thread:$0]  %s11, 8192, %s91, [#allocation9], 128, 128, 8
    $region49: #{tpu_custom_call.1} parent=1 // pred_fallthru
      _
    // Predicated region
    $region50: #{tpu_custom_call.1} parent=1 // pred_check
      _
    $region51: #{tpu_custom_call.1} parent=1 // pred_check_branch
      %98 = sbr.rel (0) target = $region53
    $region52: #{tpu_custom_call.1} parent=1 // pred_region
      %s100 = ssub.s32 1024, 1024
      %101 = vsyncadd [#allocation12], %s100
      %s102 = sshll.u32 [#allocation11], 4
      %s103 = int_to_ptr.vmem [resolvable:$true] %s102
      %108 = dma.hbm_to_vmem [thread:$0]  %s12, 1024, %s103, [#allocation12], 512, 512, 32
    $region53: #{tpu_custom_call.1} parent=1 // pred_fallthru
      _
    // Predicated region
    $region54: #{tpu_custom_call.1} parent=1 // pred_check
      _
    $region55: #{tpu_custom_call.1} parent=1 // pred_check_branch
      %110 = sbr.rel (0) target = $region57
    $region56: #{tpu_custom_call.1} parent=1 // pred_region
      _
    $region57: #{tpu_custom_call.1} parent=1 // pred_fallthru
      _
    // Predicated region
    $region58: #{tpu_custom_call.1} parent=1 // pred_check
      _
    $region59: #{tpu_custom_call.1} parent=1 // pred_check_branch
      %112 = sbr.rel (0) target = $region61
    $region60: #{tpu_custom_call.1} parent=1 // pred_region
      %113 = dma.done [#allocation3], 512
    $region61: #{tpu_custom_call.1} parent=1 // pred_fallthru
      _
    // Predicated region
    $region62: #{tpu_custom_call.1} parent=1 // pred_check
      _
    $region63: #{tpu_custom_call.1} parent=1 // pred_check_branch
      %115 = sbr.rel (0) target = $region65
    $region64: #{tpu_custom_call.1} parent=1 // pred_region
      %116 = dma.done [#allocation6], 512
    $region65: #{tpu_custom_call.1} parent=1 // pred_fallthru
      _
    // Predicated region
    $region66: #{tpu_custom_call.1} parent=1 // pred_check
      _
    $region67: #{tpu_custom_call.1} parent=1 // pred_check_branch
      %118 = sbr.rel (0) target = $region69
    $region68: #{tpu_custom_call.1} parent=1 // pred_region
      %119 = dma.done [#allocation6], 128
    $region69: #{tpu_custom_call.1} parent=1 // pred_fallthru
      _
    // Predicated region
    $region70: #{tpu_custom_call.1} parent=1 // pred_check
      _
    $region71: #{tpu_custom_call.1} parent=1 // pred_check_branch
      %121 = sbr.rel (0) target = $region73
    $region72: #{tpu_custom_call.1} parent=1 // pred_region
      %122 = dma.done [#allocation9], 8192
    $region73: #{tpu_custom_call.1} parent=1 // pred_fallthru
      _
    // Predicated region
    $region74: #{tpu_custom_call.1} parent=1 // pred_check
      _
    $region75: #{tpu_custom_call.1} parent=1 // pred_check_branch
      %124 = sbr.rel (0) target = $region77
    $region76: #{tpu_custom_call.1} parent=1 // pred_region
      %125 = dma.done [#allocation9], 8192
    $region77: #{tpu_custom_call.1} parent=1 // pred_fallthru
      _
    // Predicated region
    $region78: #{tpu_custom_call.1} parent=1 // pred_check
      _
    $region79: #{tpu_custom_call.1} parent=1 // pred_check_branch
      %127 = sbr.rel (0) target = $region81
    $region80: #{tpu_custom_call.1} parent=1 // pred_region
      %128 = dma.done [#allocation12], 1024
    $region81: #{tpu_custom_call.1} parent=1 // pred_fallthru
      _
    %v129 = vld [vmem:[#allocation11] sm:$0xff]
    %v130 = vld [vmem:[#allocation11 + $0x8] sm:$0xff]
    %v131 = vld [vmem:[#allocation11 + $0x10] sm:$0xff]
    %v132 = vld [vmem:[#allocation11 + $0x18] sm:$0xff]
    %v133 = vld [vmem:[#allocation11 + $0x20] sm:$0x1]
    %v134 = vld [vmem:[#allocation11 + $0x28] sm:$0x1]
    %v135 = vld [vmem:[#allocation11 + $0x30] sm:$0x1]
    %v136 = vld [vmem:[#allocation11 + $0x38] sm:$0x1]
    %v137 = vld [vmem:[%s13] sm:$0xff]
    %v138 = vld [vmem:[%s13 + $0x8] sm:$0x1]
    %v139 = vld [vmem:[#allocation2] sm:$0xff]
    %v140 = vld [vmem:[#allocation2 + $0x8] sm:$0xff]
    %v141 = vld [vmem:[#allocation2 + $0x10] sm:$0xff]
    %v142 = vld [vmem:[#allocation2 + $0x18] sm:$0xff]
    %v143 = vld [vmem:[#allocation5] sm:$0xff]
    %v144 = vld [vmem:[%s3] sm:$0xff]
    %145 = vrot.lane.b32.xlu0 %v139, 17
    %v146 = vpop.permute.xlu0 %145
    %147 = vrot.lane.b32.xlu0 %v140, 17
    %v148 = vpop.permute.xlu0 %147
    %149 = vrot.lane.b32.xlu0 %v141, 17
    %v150 = vpop.permute.xlu0 %149
    %151 = vrot.lane.b32.xlu0 %v142, 17
    %v152 = vpop.permute.xlu0 %151
    %v153 = vlaneseq
    %v154 = vand.u32 %v153, 127
    %vm155 = vcmp.lt.s32.totalorder %v154, 17
    %v156 = vsel %vm155, %v150, %v152
    %v157 = vsel %vm155, %v148, %v150
    %v158 = vsel %vm155, %v146, %v148
    %v159 = vsel %vm155, %v152, %v146
    %v160 = vlaneseq
    %v161 = vshrl.u32 %v160, 7
    %v162 = vsub.s32 0, %v161
    %v163 = vrot.slane %v129, %v162
    %v164 = vlaneseq
    %v165 = vshrl.u32 %v164, 7
    %v166 = vsub.s32 0, %v165
    %v167 = vrot.slane %v130, %v166
    %v168 = vlaneseq
    %v169 = vshrl.u32 %v168, 7
    %v170 = vsub.s32 0, %v169
    %v171 = vrot.slane %v131, %v170
    %v172 = vlaneseq
    %v173 = vshrl.u32 %v172, 7
    %v174 = vsub.s32 0, %v173
    %v175 = vrot.slane %v132, %v174
    %v176 = vmul.f32 %v159, %v163
    %v177 = vmul.f32 %v158, %v167
    %v178 = vmul.f32 %v157, %v171
    %v179 = vmul.f32 %v156, %v175
    %180 = vrot.lane.b32.xlu0 %v139, 16
    %v181 = vpop.permute.xlu0 %180
    %182 = vrot.lane.b32.xlu0 %v140, 16
    %v183 = vpop.permute.xlu0 %182
    %184 = vrot.lane.b32.xlu0 %v141, 16
    %v185 = vpop.permute.xlu0 %184
    %186 = vrot.lane.b32.xlu0 %v142, 16
    %v187 = vpop.permute.xlu0 %186
    %vm188 = vcmp.lt.s32.totalorder %v154, 16
    %v189 = vsel %vm188, %v185, %v187
    %v190 = vsel %vm188, %v183, %v185
    %v191 = vsel %vm188, %v181, %v183
    %v192 = vsel %vm188, %v187, %v181
    %v193 = vlaneseq
    %v194 = vshrl.u32 %v193, 7
    %v195 = vsub.s32 1, %v194
    %v196 = vrot.slane %v129, %v195
    %v197 = vlaneseq
    %v198 = vshrl.u32 %v197, 7
    %v199 = vsub.s32 1, %v198
    %v200 = vrot.slane %v130, %v199
    %v201 = vlaneseq
    %v202 = vshrl.u32 %v201, 7
    %v203 = vsub.s32 1, %v202
    %v204 = vrot.slane %v131, %v203
    %v205 = vlaneseq
    %v206 = vshrl.u32 %v205, 7
    %v207 = vsub.s32 1, %v206
    %v208 = vrot.slane %v132, %v207
    %v209 = vmul.f32 %v192, %v196
    %v210 = vmul.f32 %v191, %v200
    %v211 = vmul.f32 %v190, %v204
    %v212 = vmul.f32 %v189, %v208
    %213 = vrot.lane.b32.xlu0 %v139, 15
    %v214 = vpop.permute.xlu0 %213
    %215 = vrot.lane.b32.xlu0 %v140, 15
    %v216 = vpop.permute.xlu0 %215
    %217 = vrot.lane.b32.xlu0 %v141, 15
    %v218 = vpop.permute.xlu0 %217
    %219 = vrot.lane.b32.xlu0 %v142, 15
    %v220 = vpop.permute.xlu0 %219
    %vm221 = vcmp.lt.s32.totalorder %v154, 15
    %v222 = vsel %vm221, %v218, %v220
    %v223 = vsel %vm221, %v216, %v218
    %v224 = vsel %vm221, %v214, %v216
    %v225 = vsel %vm221, %v220, %v214
    %v226 = vlaneseq
    %v227 = vshrl.u32 %v226, 7
    %v228 = vsub.s32 2, %v227
    %v229 = vrot.slane %v129, %v228
    %v230 = vlaneseq
    %v231 = vshrl.u32 %v230, 7
    %v232 = vsub.s32 2, %v231
    %v233 = vrot.slane %v130, %v232
    %v234 = vlaneseq
    %v235 = vshrl.u32 %v234, 7
    %v236 = vsub.s32 2, %v235
    %v237 = vrot.slane %v131, %v236
    %v238 = vlaneseq
    %v239 = vshrl.u32 %v238, 7
    %v240 = vsub.s32 2, %v239
    %v241 = vrot.slane %v132, %v240
    %v242 = vmul.f32 %v225, %v229
    %v243 = vmul.f32 %v224, %v233
    %v244 = vmul.f32 %v223, %v237
    %v245 = vmul.f32 %v222, %v241
    %246 = vrot.lane.b32.xlu0 %v139, 1
    %v247 = vpop.permute.xlu0 %246
    %248 = vrot.lane.b32.xlu0 %v140, 1
    %v249 = vpop.permute.xlu0 %248
    %250 = vrot.lane.b32.xlu0 %v141, 1
    %v251 = vpop.permute.xlu0 %250
    %252 = vrot.lane.b32.xlu0 %v142, 1
    %v253 = vpop.permute.xlu0 %252
    %vm254 = vcmp.lt.s32.totalorder %v154, 1
    %v255 = vsel %vm254, %v251, %v253
    %v256 = vsel %vm254, %v249, %v251
    %v257 = vsel %vm254, %v247, %v249
    %v258 = vsel %vm254, %v253, %v247
    %v259 = vlaneseq
    %v260 = vshrl.u32 %v259, 7
    %v261 = vsub.s32 3, %v260
    %v262 = vrot.slane %v129, %v261
    %v263 = vlaneseq
    %v264 = vshrl.u32 %v263, 7
    %v265 = vsub.s32 3, %v264
    %v266 = vrot.slane %v130, %v265
    %v267 = vlaneseq
    %v268 = vshrl.u32 %v267, 7
    %v269 = vsub.s32 3, %v268
    %v270 = vrot.slane %v131, %v269
    %v271 = vlaneseq
    %v272 = vshrl.u32 %v271, 7
    %v273 = vsub.s32 3, %v272
    %v274 = vrot.slane %v132, %v273
    %v275 = vmul.f32 %v258, %v262
    %v276 = vmul.f32 %v257, %v266
    %v277 = vmul.f32 %v256, %v270
    %v278 = vmul.f32 %v255, %v274
    %279 = vrot.lane.b32.xlu0 %v139, 127
    %v280 = vpop.permute.xlu0 %279
    %281 = vrot.lane.b32.xlu0 %v140, 127
    %v282 = vpop.permute.xlu0 %281
    %283 = vrot.lane.b32.xlu0 %v141, 127
    %v284 = vpop.permute.xlu0 %283
    %285 = vrot.lane.b32.xlu0 %v142, 127
    %v286 = vpop.permute.xlu0 %285
    %vm287 = vcmp.lt.s32.totalorder %v154, 127
    %v288 = vsel %vm287, %v284, %v286
    %v289 = vsel %vm287, %v282, %v284
    %v290 = vsel %vm287, %v280, %v282
    %v291 = vsel %vm287, %v286, %v280
    %v292 = vlaneseq
    %v293 = vshrl.u32 %v292, 7
    %v294 = vsub.s32 5, %v293
    %v295 = vrot.slane %v129, %v294
    %v296 = vlaneseq
    %v297 = vshrl.u32 %v296, 7
    %v298 = vsub.s32 5, %v297
    %v299 = vrot.slane %v130, %v298
    %v300 = vlaneseq
    %v301 = vshrl.u32 %v300, 7
    %v302 = vsub.s32 5, %v301
    %v303 = vrot.slane %v131, %v302
    %v304 = vlaneseq
    %v305 = vshrl.u32 %v304, 7
    %v306 = vsub.s32 5, %v305
    %v307 = vrot.slane %v132, %v306
    %v308 = vmul.f32 %v290, %v295
    %v309 = vmul.f32 %v289, %v299
    %v310 = vmul.f32 %v288, %v303
    %v311 = vmul.f32 %v291, %v307
    %312 = vrot.lane.b32.xlu0 %v139, 113
    %v313 = vpop.permute.xlu0 %312
    %314 = vrot.lane.b32.xlu0 %v140, 113
    %v315 = vpop.permute.xlu0 %314
    %316 = vrot.lane.b32.xlu0 %v141, 113
    %v317 = vpop.permute.xlu0 %316
    %318 = vrot.lane.b32.xlu0 %v142, 113
    %v319 = vpop.permute.xlu0 %318
    %vm320 = vcmp.lt.s32.totalorder %v154, 113
    %v321 = vsel %vm320, %v317, %v319
    %v322 = vsel %vm320, %v315, %v317
    %v323 = vsel %vm320, %v313, %v315
    %v324 = vsel %vm320, %v319, %v313
    %v325 = vlaneseq
    %v326 = vshrl.u32 %v325, 7
    %v327 = vsub.s32 6, %v326
    %v328 = vrot.slane %v129, %v327
    %v329 = vlaneseq
    %v330 = vshrl.u32 %v329, 7
    %v331 = vsub.s32 6, %v330
    %v332 = vrot.slane %v130, %v331
    %v333 = vlaneseq
    %v334 = vshrl.u32 %v333, 7
    %v335 = vsub.s32 6, %v334
    %v336 = vrot.slane %v131, %v335
    %v337 = vlaneseq
    %v338 = vshrl.u32 %v337, 7
    %v339 = vsub.s32 6, %v338
    %v340 = vrot.slane %v132, %v339
    %v341 = vmul.f32 %v323, %v328
    %v342 = vmul.f32 %v322, %v332
    %v343 = vmul.f32 %v321, %v336
    %v344 = vmul.f32 %v324, %v340
    %345 = vrot.lane.b32.xlu0 %v139, 112
    %v346 = vpop.permute.xlu0 %345
    %347 = vrot.lane.b32.xlu0 %v140, 112
    %v348 = vpop.permute.xlu0 %347
    %349 = vrot.lane.b32.xlu0 %v141, 112
    %v350 = vpop.permute.xlu0 %349
    %351 = vrot.lane.b32.xlu0 %v142, 112
    %v352 = vpop.permute.xlu0 %351
    %vm353 = vcmp.lt.s32.totalorder %v154, 112
    %v354 = vsel %vm353, %v350, %v352
    %v355 = vsel %vm353, %v348, %v350
    %v356 = vsel %vm353, %v346, %v348
    %v357 = vsel %vm353, %v352, %v346
    %v358 = vlaneseq
    %v359 = vshrl.u32 %v358, 7
    %v360 = vsub.s32 7, %v359
    %v361 = vrot.slane %v129, %v360
    %v362 = vlaneseq
    %v363 = vshrl.u32 %v362, 7
    %v364 = vsub.s32 7, %v363
    %v365 = vrot.slane %v130, %v364
    %v366 = vlaneseq
    %v367 = vshrl.u32 %v366, 7
    %v368 = vsub.s32 7, %v367
    %v369 = vrot.slane %v131, %v368
    %v370 = vlaneseq
    %v371 = vshrl.u32 %v370, 7
    %v372 = vsub.s32 7, %v371
    %v373 = vrot.slane %v132, %v372
    %v374 = vmul.f32 %v356, %v361
    %v375 = vmul.f32 %v355, %v365
    %v376 = vmul.f32 %v354, %v369
    %v377 = vmul.f32 %v357, %v373
    %378 = vrot.lane.b32.xlu0 %v139, 111
    %v379 = vpop.permute.xlu0 %378
    %380 = vrot.lane.b32.xlu0 %v140, 111
    %v381 = vpop.permute.xlu0 %380
    %382 = vrot.lane.b32.xlu0 %v141, 111
    %v383 = vpop.permute.xlu0 %382
    %384 = vrot.lane.b32.xlu0 %v142, 111
    %v385 = vpop.permute.xlu0 %384
    %vm386 = vcmp.lt.s32.totalorder %v154, 111
    %v387 = vsel %vm386, %v383, %v385
    %v388 = vsel %vm386, %v381, %v383
    %v389 = vsel %vm386, %v379, %v381
    %v390 = vsel %vm386, %v385, %v379
    %v391 = vlaneseq
    %v392 = vshrl.u32 %v391, 7
    %v393 = vsub.s32 0, %v392
    %v394 = vrot.slane %v133, %v393
    %v395 = vlaneseq
    %v396 = vshrl.u32 %v395, 7
    %v397 = vsub.s32 0, %v396
    %v398 = vrot.slane %v134, %v397
    %v399 = vlaneseq
    %v400 = vshrl.u32 %v399, 7
    %v401 = vsub.s32 0, %v400
    %v402 = vrot.slane %v135, %v401
    %v403 = vlaneseq
    %v404 = vshrl.u32 %v403, 7
    %v405 = vsub.s32 0, %v404
    %v406 = vrot.slane %v136, %v405
    %v407 = vmul.f32 %v389, %v394
    %v408 = vmul.f32 %v388, %v398
    %v409 = vmul.f32 %v387, %v402
    %v410 = vmul.f32 %v390, %v406
    %412 = vset.pattern.permute.xlu0 0
    %413 = vperm.xlu0 %412, %v144
    %v414 = vpop.permute.xlu0 %413
    %vm416 = vcmask 588800
    %v418 = vsel %vm416, %v143, 0
    %420 = vmatprep.subr.mxu0 %v177
    %421 = vmatpush1.msra.mxu0 %v176
    %422 = vmatprep.subr.mxu0 %v210
    %423 = vmatpush1.msra.mxu0 %v209
    %424 = vmatprep.subr.mxu0 %v243
    %425 = vmatpush1.msra.mxu0 %v242
    %426 = vmatprep.subr.mxu0 %v276
    %427 = vmatpush1.msra.mxu0 %v275
    %428 = vmatprep.subr.mxu0 %v140
    %429 = vmatpush1.msra.mxu0 %v139
    %430 = vmatprep.subr.mxu0 %v309
    %431 = vmatpush1.msra.mxu0 %v308
    %432 = vmatprep.subr.mxu0 %v342
    %433 = vmatpush1.msra.mxu0 %v341
    %434 = vmatprep.subr.mxu0 %v375
    %435 = vmatpush1.msra.mxu0 %v374
    %436 = vmatprep.subr.mxu0 %v408
    %437 = vmatpush1.msra.mxu0 %v407
    %438 = vmatprep.subr.mxu0 0.0
    %439 = vmatpush1.msra.mxu0 0.0
    %440 = vmatprep.subr.mxu0 0.0
    %441 = vmatpush1.msra.mxu0 0.0
    %442 = vmatprep.subr.mxu0 0.0
    %443 = vmatpush1.msra.mxu0 0.0
    %444 = vmatprep.subr.mxu0 0.0
    %445 = vmatpush1.msra.mxu0 0.0
    %446 = vmatprep.subr.mxu0 0.0
    %447 = vmatpush1.msra.mxu0 0.0
    %448 = vmatprep.subr.mxu0 0.0
    %449 = vmatpush1.msra.mxu0 0.0
    %450 = vmatprep.subr.mxu0 0.0
    %451 = vmatpush1.msra.mxu0 0.0
    %452 = vmatprep.subr.mxu0 0.0
    %453 = vmatpush1.msra.mxu0 0.0
    %454 = vmatprep.subr.mxu0 0.0
    %455 = vmatpush1.msra.mxu0 0.0
    %456 = vmatprep.subr.mxu0 0.0
    %457 = vmatpush1.msra.mxu0 0.0
    %458 = vmatprep.subr.mxu0 0.0
    %459 = vmatpush1.msra.mxu0 0.0
    %460 = vmatprep.subr.mxu0 0.0
    %461 = vmatpush1.msra.mxu0 0.0
    %462 = vmatprep.subr.mxu0 0.0
    %463 = vmatpush1.msra.mxu0 0.0
    %464 = vmatprep.subr.mxu0 0.0
    %465 = vmatpush1.msra.mxu0 0.0
    %466 = vmatprep.subr.mxu0 0.0
    %467 = vmatpush1.msra.mxu0 0.0
    %468 = vmatprep.subr.mxu0 0.0
    %469 = vmatpush1.msra.mxu0 0.0
    %470 = vmatprep.subr.mxu0 0.0
    %471 = vmatpush1.msra.mxu0 0.0
    %472 = vmatprep.subr.mxu0 0.0
    %473 = vmatpush1.msra.mxu0 0.0
    %474 = vmatprep.subr.mxu0 0.0
    %475 = vmatpush1.msra.mxu0 0.0
    %476 = vmatprep.subr.mxu0 0.0
    %477 = vmatpush1.msra.mxu0 0.0
    %478 = vmatprep.subr.mxu0 0.0
    %479 = vmatpush1.msra.mxu0 0.0
    %480 = vmatprep.subr.mxu0 0.0
    %481 = vmatpush1.msra.mxu0 0.0
    %482 = vmatprep.subr.mxu0 0.0
    %483 = vmatpush1.msra.mxu0 0.0
    %484 = vmatprep.mubr.f32.mxu0 0.0
    %485 = vmatmul.mubr.f32.gmra.mrb[0].mxu0 %v418
    %v486 = vpop.f32.mrb[0].mxu0
    %v487 = vadd.f32 %v414, %v486
    %v488 = vpop.f32.mrb[0].mxu0
    %v489 = vadd.f32 %v414, %v488
    %490 = vdwg.mxu0
    %491 = vmatprep.subr.mxu0 %v179
    %492 = vmatpush1.msra.mxu0 %v178
    %493 = vmatprep.subr.mxu0 %v212
    %494 = vmatpush1.msra.mxu0 %v211
    %495 = vmatprep.subr.mxu0 %v245
    %496 = vmatpush1.msra.mxu0 %v244
    %497 = vmatprep.subr.mxu0 %v278
    %498 = vmatpush1.msra.mxu0 %v277
    %499 = vmatprep.subr.mxu0 %v142
    %500 = vmatpush1.msra.mxu0 %v141
    %501 = vmatprep.subr.mxu0 %v311
    %502 = vmatpush1.msra.mxu0 %v310
    %503 = vmatprep.subr.mxu0 %v344
    %504 = vmatpush1.msra.mxu0 %v343
    %505 = vmatprep.subr.mxu0 %v377
    %506 = vmatpush1.msra.mxu0 %v376
    %507 = vmatprep.subr.mxu0 %v410
    %508 = vmatpush1.msra.mxu0 %v409
    %509 = vmatprep.subr.mxu0 0.0
    %510 = vmatpush1.msra.mxu0 0.0
    %511 = vmatprep.subr.mxu0 0.0
    %512 = vmatpush1.msra.mxu0 0.0
    %513 = vmatprep.subr.mxu0 0.0
    %514 = vmatpush1.msra.mxu0 0.0
    %515 = vmatprep.subr.mxu0 0.0
    %516 = vmatpush1.msra.mxu0 0.0
    %517 = vmatprep.subr.mxu0 0.0
    %518 = vmatpush1.msra.mxu0 0.0
    %519 = vmatprep.subr.mxu0 0.0
    %520 = vmatpush1.msra.mxu0 0.0
    %521 = vmatprep.subr.mxu0 0.0
    %522 = vmatpush1.msra.mxu0 0.0
    %523 = vmatprep.subr.mxu0 0.0
    %524 = vmatpush1.msra.mxu0 0.0
    %525 = vmatprep.subr.mxu0 0.0
    %526 = vmatpush1.msra.mxu0 0.0
    %527 = vmatprep.subr.mxu0 0.0
    %528 = vmatpush1.msra.mxu0 0.0
    %529 = vmatprep.subr.mxu0 0.0
    %530 = vmatpush1.msra.mxu0 0.0
    %531 = vmatprep.subr.mxu0 0.0
    %532 = vmatpush1.msra.mxu0 0.0
    %533 = vmatprep.subr.mxu0 0.0
    %534 = vmatpush1.msra.mxu0 0.0
    %535 = vmatprep.subr.mxu0 0.0
    %536 = vmatpush1.msra.mxu0 0.0
    %537 = vmatprep.subr.mxu0 0.0
    %538 = vmatpush1.msra.mxu0 0.0
    %539 = vmatprep.subr.mxu0 0.0
    %540 = vmatpush1.msra.mxu0 0.0
    %541 = vmatprep.subr.mxu0 0.0
    %542 = vmatpush1.msra.mxu0 0.0
    %543 = vmatprep.subr.mxu0 0.0
    %544 = vmatpush1.msra.mxu0 0.0
    %545 = vmatprep.subr.mxu0 0.0
    %546 = vmatpush1.msra.mxu0 0.0
    %547 = vmatprep.subr.mxu0 0.0
    %548 = vmatpush1.msra.mxu0 0.0
    %549 = vmatprep.subr.mxu0 0.0
    %550 = vmatpush1.msra.mxu0 0.0
    %551 = vmatprep.subr.mxu0 0.0
    %552 = vmatpush1.msra.mxu0 0.0
    %553 = vmatprep.subr.mxu0 0.0
    %554 = vmatpush1.msra.mxu0 0.0
    %555 = vmatprep.mubr.f32.mxu0 0.0
    %556 = vmatmul.mubr.f32.gmra.mrb[0].mxu0 %v418
    %v557 = vpop.f32.mrb[0].mxu0
    %v558 = vadd.f32 %v414, %v557
    %v559 = vpop.f32.mrb[0].mxu0
    %v560 = vadd.f32 %v414, %v559
    %561 = vdwg.mxu0
    %v562 = vmax.f32 %v487, 0.0
    %v563 = vmax.f32 %v489, 0.0
    %v564 = vmax.f32 %v558, 0.0
    %v565 = vmax.f32 %v560, 0.0
    %s566 = scalar_lea.vmem [#allocation5], 8
    %v567 = vld [vmem:[%s566] sm:$0xff]
    %s568 = scalar_lea.vmem %s3, 8
    %v569 = vld [vmem:[%s568] sm:$0xff]
    %570 = vrot.lane.b32.xlu0 %v562, 17
    %v571 = vpop.permute.xlu0 %570
    %572 = vrot.lane.b32.xlu0 %v563, 17
    %v573 = vpop.permute.xlu0 %572
    %574 = vrot.lane.b32.xlu0 %v564, 17
    %v575 = vpop.permute.xlu0 %574
    %576 = vrot.lane.b32.xlu0 %v565, 17
    %v577 = vpop.permute.xlu0 %576
    %v578 = vsel %vm155, %v575, %v577
    %v579 = vsel %vm155, %v573, %v575
    %v580 = vsel %vm155, %v571, %v573
    %v581 = vsel %vm155, %v577, %v571
    %v582 = vmul.f32 %v581, %v163
    %v583 = vmul.f32 %v580, %v167
    %v584 = vmul.f32 %v579, %v171
    %v585 = vmul.f32 %v578, %v175
    %586 = vrot.lane.b32.xlu0 %v562, 16
    %v587 = vpop.permute.xlu0 %586
    %588 = vrot.lane.b32.xlu0 %v563, 16
    %v589 = vpop.permute.xlu0 %588
    %590 = vrot.lane.b32.xlu0 %v564, 16
    %v591 = vpop.permute.xlu0 %590
    %592 = vrot.lane.b32.xlu0 %v565, 16
    %v593 = vpop.permute.xlu0 %592
    %v594 = vsel %vm188, %v591, %v593
    %v595 = vsel %vm188, %v589, %v591
    %v596 = vsel %vm188, %v587, %v589
    %v597 = vsel %vm188, %v593, %v587
    %v598 = vmul.f32 %v597, %v196
    %v599 = vmul.f32 %v596, %v200
    %v600 = vmul.f32 %v595, %v204
    %v601 = vmul.f32 %v594, %v208
    %602 = vrot.lane.b32.xlu0 %v562, 15
    %v603 = vpop.permute.xlu0 %602
    %604 = vrot.lane.b32.xlu0 %v563, 15
    %v605 = vpop.permute.xlu0 %604
    %606 = vrot.lane.b32.xlu0 %v564, 15
    %v607 = vpop.permute.xlu0 %606
    %608 = vrot.lane.b32.xlu0 %v565, 15
    %v609 = vpop.permute.xlu0 %608
    %v610 = vsel %vm221, %v607, %v609
    %v611 = vsel %vm221, %v605, %v607
    %v612 = vsel %vm221, %v603, %v605
    %v613 = vsel %vm221, %v609, %v603
    %v614 = vmul.f32 %v613, %v229
    %v615 = vmul.f32 %v612, %v233
    %v616 = vmul.f32 %v611, %v237
    %v617 = vmul.f32 %v610, %v241
    %618 = vrot.lane.b32.xlu0 %v562, 1
    %v619 = vpop.permute.xlu0 %618
    %620 = vrot.lane.b32.xlu0 %v563, 1
    %v621 = vpop.permute.xlu0 %620
    %622 = vrot.lane.b32.xlu0 %v564, 1
    %v623 = vpop.permute.xlu0 %622
    %624 = vrot.lane.b32.xlu0 %v565, 1
    %v625 = vpop.permute.xlu0 %624
    %v626 = vsel %vm254, %v623, %v625
    %v627 = vsel %vm254, %v621, %v623
    %v628 = vsel %vm254, %v619, %v621
    %v629 = vsel %vm254, %v625, %v619
    %v630 = vmul.f32 %v629, %v262
    %v631 = vmul.f32 %v628, %v266
    %v632 = vmul.f32 %v627, %v270
    %v633 = vmul.f32 %v626, %v274
    %634 = vrot.lane.b32.xlu0 %v562, 127
    %v635 = vpop.permute.xlu0 %634
    %636 = vrot.lane.b32.xlu0 %v563, 127
    %v637 = vpop.permute.xlu0 %636
    %638 = vrot.lane.b32.xlu0 %v564, 127
    %v639 = vpop.permute.xlu0 %638
    %640 = vrot.lane.b32.xlu0 %v565, 127
    %v641 = vpop.permute.xlu0 %640
    %v642 = vsel %vm287, %v639, %v641
    %v643 = vsel %vm287, %v637, %v639
    %v644 = vsel %vm287, %v635, %v637
    %v645 = vsel %vm287, %v641, %v635
    %v646 = vmul.f32 %v644, %v295
    %v647 = vmul.f32 %v643, %v299
    %v648 = vmul.f32 %v642, %v303
    %v649 = vmul.f32 %v645, %v307
    %650 = vrot.lane.b32.xlu0 %v562, 113
    %v651 = vpop.permute.xlu0 %650
    %652 = vrot.lane.b32.xlu0 %v563, 113
    %v653 = vpop.permute.xlu0 %652
    %654 = vrot.lane.b32.xlu0 %v564, 113
    %v655 = vpop.permute.xlu0 %654
    %656 = vrot.lane.b32.xlu0 %v565, 113
    %v657 = vpop.permute.xlu0 %656
    %v658 = vsel %vm320, %v655, %v657
    %v659 = vsel %vm320, %v653, %v655
    %v660 = vsel %vm320, %v651, %v653
    %v661 = vsel %vm320, %v657, %v651
    %v662 = vmul.f32 %v660, %v328
    %v663 = vmul.f32 %v659, %v332
    %v664 = vmul.f32 %v658, %v336
    %v665 = vmul.f32 %v661, %v340
    %666 = vrot.lane.b32.xlu0 %v562, 112
    %v667 = vpop.permute.xlu0 %666
    %668 = vrot.lane.b32.xlu0 %v563, 112
    %v669 = vpop.permute.xlu0 %668
    %670 = vrot.lane.b32.xlu0 %v564, 112
    %v671 = vpop.permute.xlu0 %670
    %672 = vrot.lane.b32.xlu0 %v565, 112
    %v673 = vpop.permute.xlu0 %672
    %v674 = vsel %vm353, %v671, %v673
    %v675 = vsel %vm353, %v669, %v671
    %v676 = vsel %vm353, %v667, %v669
    %v677 = vsel %vm353, %v673, %v667
    %v678 = vmul.f32 %v676, %v361
    %v679 = vmul.f32 %v675, %v365
    %v680 = vmul.f32 %v674, %v369
    %v681 = vmul.f32 %v677, %v373
    %682 = vrot.lane.b32.xlu0 %v562, 111
    %v683 = vpop.permute.xlu0 %682
    %684 = vrot.lane.b32.xlu0 %v563, 111
    %v685 = vpop.permute.xlu0 %684
    %686 = vrot.lane.b32.xlu0 %v564, 111
    %v687 = vpop.permute.xlu0 %686
    %688 = vrot.lane.b32.xlu0 %v565, 111
    %v689 = vpop.permute.xlu0 %688
    %v690 = vsel %vm386, %v687, %v689
    %v691 = vsel %vm386, %v685, %v687
    %v692 = vsel %vm386, %v683, %v685
    %v693 = vsel %vm386, %v689, %v683
    %v694 = vmul.f32 %v692, %v394
    %v695 = vmul.f32 %v691, %v398
    %v696 = vmul.f32 %v690, %v402
    %v697 = vmul.f32 %v693, %v406
    %699 = vset.pattern.permute.xlu0 0
    %700 = vperm.xlu0 %699, %v569
    %v701 = vpop.permute.xlu0 %700
    %v704 = vsel %vm416, %v567, 0
    %706 = vmatprep.subr.mxu0 %v583
    %707 = vmatpush1.msra.mxu0 %v582
    %708 = vmatprep.subr.mxu0 %v599
    %709 = vmatpush1.msra.mxu0 %v598
    %710 = vmatprep.subr.mxu0 %v615
    %711 = vmatpush1.msra.mxu0 %v614
    %712 = vmatprep.subr.mxu0 %v631
    %713 = vmatpush1.msra.mxu0 %v630
    %714 = vmatprep.subr.mxu0 %v563
    %715 = vmatpush1.msra.mxu0 %v562
    %716 = vmatprep.subr.mxu0 %v647
    %717 = vmatpush1.msra.mxu0 %v646
    %718 = vmatprep.subr.mxu0 %v663
    %719 = vmatpush1.msra.mxu0 %v662
    %720 = vmatprep.subr.mxu0 %v679
    %721 = vmatpush1.msra.mxu0 %v678
    %722 = vmatprep.subr.mxu0 %v695
    %723 = vmatpush1.msra.mxu0 %v694
    %724 = vmatprep.subr.mxu0 0.0
    %725 = vmatpush1.msra.mxu0 0.0
    %726 = vmatprep.subr.mxu0 0.0
    %727 = vmatpush1.msra.mxu0 0.0
    %728 = vmatprep.subr.mxu0 0.0
    %729 = vmatpush1.msra.mxu0 0.0
    %730 = vmatprep.subr.mxu0 0.0
    %731 = vmatpush1.msra.mxu0 0.0
    %732 = vmatprep.subr.mxu0 0.0
    %733 = vmatpush1.msra.mxu0 0.0
    %734 = vmatprep.subr.mxu0 0.0
    %735 = vmatpush1.msra.mxu0 0.0
    %736 = vmatprep.subr.mxu0 0.0
    %737 = vmatpush1.msra.mxu0 0.0
    %738 = vmatprep.subr.mxu0 0.0
    %739 = vmatpush1.msra.mxu0 0.0
    %740 = vmatprep.subr.mxu0 0.0
    %741 = vmatpush1.msra.mxu0 0.0
    %742 = vmatprep.subr.mxu0 0.0
    %743 = vmatpush1.msra.mxu0 0.0
    %744 = vmatprep.subr.mxu0 0.0
    %745 = vmatpush1.msra.mxu0 0.0
    %746 = vmatprep.subr.mxu0 0.0
    %747 = vmatpush1.msra.mxu0 0.0
    %748 = vmatprep.subr.mxu0 0.0
    %749 = vmatpush1.msra.mxu0 0.0
    %750 = vmatprep.subr.mxu0 0.0
    %751 = vmatpush1.msra.mxu0 0.0
    %752 = vmatprep.subr.mxu0 0.0
    %753 = vmatpush1.msra.mxu0 0.0
    %754 = vmatprep.subr.mxu0 0.0
    %755 = vmatpush1.msra.mxu0 0.0
    %756 = vmatprep.subr.mxu0 0.0
    %757 = vmatpush1.msra.mxu0 0.0
    %758 = vmatprep.subr.mxu0 0.0
    %759 = vmatpush1.msra.mxu0 0.0
    %760 = vmatprep.subr.mxu0 0.0
    %761 = vmatpush1.msra.mxu0 0.0
    %762 = vmatprep.subr.mxu0 0.0
    %763 = vmatpush1.msra.mxu0 0.0
    %764 = vmatprep.subr.mxu0 0.0
    %765 = vmatpush1.msra.mxu0 0.0
    %766 = vmatprep.subr.mxu0 0.0
    %767 = vmatpush1.msra.mxu0 0.0
    %768 = vmatprep.subr.mxu0 0.0
    %769 = vmatpush1.msra.mxu0 0.0
    %770 = vmatprep.mubr.f32.mxu0 0.0
    %771 = vmatmul.mubr.f32.gmra.mrb[0].mxu0 %v704
    %v772 = vpop.f32.mrb[0].mxu0
    %v773 = vadd.f32 %v701, %v772
    %v774 = vpop.f32.mrb[0].mxu0
    %v775 = vadd.f32 %v701, %v774
    %776 = vdwg.mxu0
    %777 = vmatprep.subr.mxu0 %v585
    %778 = vmatpush1.msra.mxu0 %v584
    %779 = vmatprep.subr.mxu0 %v601
    %780 = vmatpush1.msra.mxu0 %v600
    %781 = vmatprep.subr.mxu0 %v617
    %782 = vmatpush1.msra.mxu0 %v616
    %783 = vmatprep.subr.mxu0 %v633
    %784 = vmatpush1.msra.mxu0 %v632
    %785 = vmatprep.subr.mxu0 %v565
    %786 = vmatpush1.msra.mxu0 %v564
    %787 = vmatprep.subr.mxu0 %v649
    %788 = vmatpush1.msra.mxu0 %v648
    %789 = vmatprep.subr.mxu0 %v665
    %790 = vmatpush1.msra.mxu0 %v664
    %791 = vmatprep.subr.mxu0 %v681
    %792 = vmatpush1.msra.mxu0 %v680
    %793 = vmatprep.subr.mxu0 %v697
    %794 = vmatpush1.msra.mxu0 %v696
    %795 = vmatprep.subr.mxu0 0.0
    %796 = vmatpush1.msra.mxu0 0.0
    %797 = vmatprep.subr.mxu0 0.0
    %798 = vmatpush1.msra.mxu0 0.0
    %799 = vmatprep.subr.mxu0 0.0
    %800 = vmatpush1.msra.mxu0 0.0
    %801 = vmatprep.subr.mxu0 0.0
    %802 = vmatpush1.msra.mxu0 0.0
    %803 = vmatprep.subr.mxu0 0.0
    %804 = vmatpush1.msra.mxu0 0.0
    %805 = vmatprep.subr.mxu0 0.0
    %806 = vmatpush1.msra.mxu0 0.0
    %807 = vmatprep.subr.mxu0 0.0
    %808 = vmatpush1.msra.mxu0 0.0
    %809 = vmatprep.subr.mxu0 0.0
    %810 = vmatpush1.msra.mxu0 0.0
    %811 = vmatprep.subr.mxu0 0.0
    %812 = vmatpush1.msra.mxu0 0.0
    %813 = vmatprep.subr.mxu0 0.0
    %814 = vmatpush1.msra.mxu0 0.0
    %815 = vmatprep.subr.mxu0 0.0
    %816 = vmatpush1.msra.mxu0 0.0
    %817 = vmatprep.subr.mxu0 0.0
    %818 = vmatpush1.msra.mxu0 0.0
    %819 = vmatprep.subr.mxu0 0.0
    %820 = vmatpush1.msra.mxu0 0.0
    %821 = vmatprep.subr.mxu0 0.0
    %822 = vmatpush1.msra.mxu0 0.0
    %823 = vmatprep.subr.mxu0 0.0
    %824 = vmatpush1.msra.mxu0 0.0
    %825 = vmatprep.subr.mxu0 0.0
    %826 = vmatpush1.msra.mxu0 0.0
    %827 = vmatprep.subr.mxu0 0.0
    %828 = vmatpush1.msra.mxu0 0.0
    %829 = vmatprep.subr.mxu0 0.0
    %830 = vmatpush1.msra.mxu0 0.0
    %831 = vmatprep.subr.mxu0 0.0
    %832 = vmatpush1.msra.mxu0 0.0
    %833 = vmatprep.subr.mxu0 0.0
    %834 = vmatpush1.msra.mxu0 0.0
    %835 = vmatprep.subr.mxu0 0.0
    %836 = vmatpush1.msra.mxu0 0.0
    %837 = vmatprep.subr.mxu0 0.0
    %838 = vmatpush1.msra.mxu0 0.0
    %839 = vmatprep.subr.mxu0 0.0
    %840 = vmatpush1.msra.mxu0 0.0
    %841 = vmatprep.mubr.f32.mxu0 0.0
    %842 = vmatmul.mubr.f32.gmra.mrb[0].mxu0 %v704
    %v843 = vpop.f32.mrb[0].mxu0
    %v844 = vadd.f32 %v701, %v843
    %v845 = vpop.f32.mrb[0].mxu0
    %v846 = vadd.f32 %v701, %v845
    %847 = vdwg.mxu0
    %v848 = vadd.f32 %v773, %v139
    %v849 = vadd.f32 %v775, %v140
    %v850 = vadd.f32 %v844, %v141
    %v851 = vadd.f32 %v846, %v142
    %v852 = vmax.f32 %v848, 0.0
    %v853 = vmax.f32 %v849, 0.0
    %v854 = vmax.f32 %v850, 0.0
    %v855 = vmax.f32 %v851, 0.0
    %s856 = scalar_lea.vmem [#allocation5], 16
    %v857 = vld [vmem:[%s856] sm:$0xff]
    %s858 = scalar_lea.vmem %s3, 16
    %v859 = vld [vmem:[%s858] sm:$0xff]
    %860 = vrot.lane.b32.xlu0 %v852, 17
    %v861 = vpop.permute.xlu0 %860
    %862 = vrot.lane.b32.xlu0 %v853, 17
    %v863 = vpop.permute.xlu0 %862
    %864 = vrot.lane.b32.xlu0 %v854, 17
    %v865 = vpop.permute.xlu0 %864
    %866 = vrot.lane.b32.xlu0 %v855, 17
    %v867 = vpop.permute.xlu0 %866
    %v868 = vsel %vm155, %v865, %v867
    %v869 = vsel %vm155, %v863, %v865
    %v870 = vsel %vm155, %v861, %v863
    %v871 = vsel %vm155, %v867, %v861
    %v872 = vmul.f32 %v871, %v163
    %v873 = vmul.f32 %v870, %v167
    %v874 = vmul.f32 %v869, %v171
    %v875 = vmul.f32 %v868, %v175
    %876 = vrot.lane.b32.xlu0 %v852, 16
    %v877 = vpop.permute.xlu0 %876
    %878 = vrot.lane.b32.xlu0 %v853, 16
    %v879 = vpop.permute.xlu0 %878
    %880 = vrot.lane.b32.xlu0 %v854, 16
    %v881 = vpop.permute.xlu0 %880
    %882 = vrot.lane.b32.xlu0 %v855, 16
    %v883 = vpop.permute.xlu0 %882
    %v884 = vsel %vm188, %v881, %v883
    %v885 = vsel %vm188, %v879, %v881
    %v886 = vsel %vm188, %v877, %v879
    %v887 = vsel %vm188, %v883, %v877
    %v888 = vmul.f32 %v887, %v196
    %v889 = vmul.f32 %v886, %v200
    %v890 = vmul.f32 %v885, %v204
    %v891 = vmul.f32 %v884, %v208
    %892 = vrot.lane.b32.xlu0 %v852, 15
    %v893 = vpop.permute.xlu0 %892
    %894 = vrot.lane.b32.xlu0 %v853, 15
    %v895 = vpop.permute.xlu0 %894
    %896 = vrot.lane.b32.xlu0 %v854, 15
    %v897 = vpop.permute.xlu0 %896
    %898 = vrot.lane.b32.xlu0 %v855, 15
    %v899 = vpop.permute.xlu0 %898
    %v900 = vsel %vm221, %v897, %v899
    %v901 = vsel %vm221, %v895, %v897
    %v902 = vsel %vm221, %v893, %v895
    %v903 = vsel %vm221, %v899, %v893
    %v904 = vmul.f32 %v903, %v229
    %v905 = vmul.f32 %v902, %v233
    %v906 = vmul.f32 %v901, %v237
    %v907 = vmul.f32 %v900, %v241
    %908 = vrot.lane.b32.xlu0 %v852, 1
    %v909 = vpop.permute.xlu0 %908
    %910 = vrot.lane.b32.xlu0 %v853, 1
    %v911 = vpop.permute.xlu0 %910
    %912 = vrot.lane.b32.xlu0 %v854, 1
    %v913 = vpop.permute.xlu0 %912
    %914 = vrot.lane.b32.xlu0 %v855, 1
    %v915 = vpop.permute.xlu0 %914
    %v916 = vsel %vm254, %v913, %v915
    %v917 = vsel %vm254, %v911, %v913
    %v918 = vsel %vm254, %v909, %v911
    %v919 = vsel %vm254, %v915, %v909
    %v920 = vmul.f32 %v919, %v262
    %v921 = vmul.f32 %v918, %v266
    %v922 = vmul.f32 %v917, %v270
    %v923 = vmul.f32 %v916, %v274
    %924 = vrot.lane.b32.xlu0 %v852, 127
    %v925 = vpop.permute.xlu0 %924
    %926 = vrot.lane.b32.xlu0 %v853, 127
    %v927 = vpop.permute.xlu0 %926
    %928 = vrot.lane.b32.xlu0 %v854, 127
    %v929 = vpop.permute.xlu0 %928
    %930 = vrot.lane.b32.xlu0 %v855, 127
    %v931 = vpop.permute.xlu0 %930
    %v932 = vsel %vm287, %v929, %v931
    %v933 = vsel %vm287, %v927, %v929
    %v934 = vsel %vm287, %v925, %v927
    %v935 = vsel %vm287, %v931, %v925
    %v936 = vmul.f32 %v934, %v295
    %v937 = vmul.f32 %v933, %v299
    %v938 = vmul.f32 %v932, %v303
    %v939 = vmul.f32 %v935, %v307
    %940 = vrot.lane.b32.xlu0 %v852, 113
    %v941 = vpop.permute.xlu0 %940
    %942 = vrot.lane.b32.xlu0 %v853, 113
    %v943 = vpop.permute.xlu0 %942
    %944 = vrot.lane.b32.xlu0 %v854, 113
    %v945 = vpop.permute.xlu0 %944
    %946 = vrot.lane.b32.xlu0 %v855, 113
    %v947 = vpop.permute.xlu0 %946
    %v948 = vsel %vm320, %v945, %v947
    %v949 = vsel %vm320, %v943, %v945
    %v950 = vsel %vm320, %v941, %v943
    %v951 = vsel %vm320, %v947, %v941
    %v952 = vmul.f32 %v950, %v328
    %v953 = vmul.f32 %v949, %v332
    %v954 = vmul.f32 %v948, %v336
    %v955 = vmul.f32 %v951, %v340
    %956 = vrot.lane.b32.xlu0 %v852, 112
    %v957 = vpop.permute.xlu0 %956
    %958 = vrot.lane.b32.xlu0 %v853, 112
    %v959 = vpop.permute.xlu0 %958
    %960 = vrot.lane.b32.xlu0 %v854, 112
    %v961 = vpop.permute.xlu0 %960
    %962 = vrot.lane.b32.xlu0 %v855, 112
    %v963 = vpop.permute.xlu0 %962
    %v964 = vsel %vm353, %v961, %v963
    %v965 = vsel %vm353, %v959, %v961
    %v966 = vsel %vm353, %v957, %v959
    %v967 = vsel %vm353, %v963, %v957
    %v968 = vmul.f32 %v966, %v361
    %v969 = vmul.f32 %v965, %v365
    %v970 = vmul.f32 %v964, %v369
    %v971 = vmul.f32 %v967, %v373
    %972 = vrot.lane.b32.xlu0 %v852, 111
    %v973 = vpop.permute.xlu0 %972
    %974 = vrot.lane.b32.xlu0 %v853, 111
    %v975 = vpop.permute.xlu0 %974
    %976 = vrot.lane.b32.xlu0 %v854, 111
    %v977 = vpop.permute.xlu0 %976
    %978 = vrot.lane.b32.xlu0 %v855, 111
    %v979 = vpop.permute.xlu0 %978
    %v980 = vsel %vm386, %v977, %v979
    %v981 = vsel %vm386, %v975, %v977
    %v982 = vsel %vm386, %v973, %v975
    %v983 = vsel %vm386, %v979, %v973
    %v984 = vmul.f32 %v982, %v394
    %v985 = vmul.f32 %v981, %v398
    %v986 = vmul.f32 %v980, %v402
    %v987 = vmul.f32 %v983, %v406
    %989 = vset.pattern.permute.xlu0 0
    %990 = vperm.xlu0 %989, %v859
    %v991 = vpop.permute.xlu0 %990
    %v994 = vsel %vm416, %v857, 0
    %996 = vmatprep.subr.mxu0 %v873
    %997 = vmatpush1.msra.mxu0 %v872
    %998 = vmatprep.subr.mxu0 %v889
    %999 = vmatpush1.msra.mxu0 %v888
    %1000 = vmatprep.subr.mxu0 %v905
    %1001 = vmatpush1.msra.mxu0 %v904
    %1002 = vmatprep.subr.mxu0 %v921
    %1003 = vmatpush1.msra.mxu0 %v920
    %1004 = vmatprep.subr.mxu0 %v853
    %1005 = vmatpush1.msra.mxu0 %v852
    %1006 = vmatprep.subr.mxu0 %v937
    %1007 = vmatpush1.msra.mxu0 %v936
    %1008 = vmatprep.subr.mxu0 %v953
    %1009 = vmatpush1.msra.mxu0 %v952
    %1010 = vmatprep.subr.mxu0 %v969
    %1011 = vmatpush1.msra.mxu0 %v968
    %1012 = vmatprep.subr.mxu0 %v985
    %1013 = vmatpush1.msra.mxu0 %v984
    %1014 = vmatprep.subr.mxu0 0.0
    %1015 = vmatpush1.msra.mxu0 0.0
    %1016 = vmatprep.subr.mxu0 0.0
    %1017 = vmatpush1.msra.mxu0 0.0
    %1018 = vmatprep.subr.mxu0 0.0
    %1019 = vmatpush1.msra.mxu0 0.0
    %1020 = vmatprep.subr.mxu0 0.0
    %1021 = vmatpush1.msra.mxu0 0.0
    %1022 = vmatprep.subr.mxu0 0.0
    %1023 = vmatpush1.msra.mxu0 0.0
    %1024 = vmatprep.subr.mxu0 0.0
    %1025 = vmatpush1.msra.mxu0 0.0
    %1026 = vmatprep.subr.mxu0 0.0
    %1027 = vmatpush1.msra.mxu0 0.0
    %1028 = vmatprep.subr.mxu0 0.0
    %1029 = vmatpush1.msra.mxu0 0.0
    %1030 = vmatprep.subr.mxu0 0.0
    %1031 = vmatpush1.msra.mxu0 0.0
    %1032 = vmatprep.subr.mxu0 0.0
    %1033 = vmatpush1.msra.mxu0 0.0
    %1034 = vmatprep.subr.mxu0 0.0
    %1035 = vmatpush1.msra.mxu0 0.0
    %1036 = vmatprep.subr.mxu0 0.0
    %1037 = vmatpush1.msra.mxu0 0.0
    %1038 = vmatprep.subr.mxu0 0.0
    %1039 = vmatpush1.msra.mxu0 0.0
    %1040 = vmatprep.subr.mxu0 0.0
    %1041 = vmatpush1.msra.mxu0 0.0
    %1042 = vmatprep.subr.mxu0 0.0
    %1043 = vmatpush1.msra.mxu0 0.0
    %1044 = vmatprep.subr.mxu0 0.0
    %1045 = vmatpush1.msra.mxu0 0.0
    %1046 = vmatprep.subr.mxu0 0.0
    %1047 = vmatpush1.msra.mxu0 0.0
    %1048 = vmatprep.subr.mxu0 0.0
    %1049 = vmatpush1.msra.mxu0 0.0
    %1050 = vmatprep.subr.mxu0 0.0
    %1051 = vmatpush1.msra.mxu0 0.0
    %1052 = vmatprep.subr.mxu0 0.0
    %1053 = vmatpush1.msra.mxu0 0.0
    %1054 = vmatprep.subr.mxu0 0.0
    %1055 = vmatpush1.msra.mxu0 0.0
    %1056 = vmatprep.subr.mxu0 0.0
    %1057 = vmatpush1.msra.mxu0 0.0
    %1058 = vmatprep.subr.mxu0 0.0
    %1059 = vmatpush1.msra.mxu0 0.0
    %1060 = vmatprep.mubr.f32.mxu0 0.0
    %1061 = vmatmul.mubr.f32.gmra.mrb[0].mxu0 %v994
    %v1062 = vpop.f32.mrb[0].mxu0
    %v1063 = vadd.f32 %v991, %v1062
    %v1064 = vpop.f32.mrb[0].mxu0
    %v1065 = vadd.f32 %v991, %v1064
    %1066 = vdwg.mxu0
    %1067 = vmatprep.subr.mxu0 %v875
    %1068 = vmatpush1.msra.mxu0 %v874
    %1069 = vmatprep.subr.mxu0 %v891
    %1070 = vmatpush1.msra.mxu0 %v890
    %1071 = vmatprep.subr.mxu0 %v907
    %1072 = vmatpush1.msra.mxu0 %v906
    %1073 = vmatprep.subr.mxu0 %v923
    %1074 = vmatpush1.msra.mxu0 %v922
    %1075 = vmatprep.subr.mxu0 %v855
    %1076 = vmatpush1.msra.mxu0 %v854
    %1077 = vmatprep.subr.mxu0 %v939
    %1078 = vmatpush1.msra.mxu0 %v938
    %1079 = vmatprep.subr.mxu0 %v955
    %1080 = vmatpush1.msra.mxu0 %v954
    %1081 = vmatprep.subr.mxu0 %v971
    %1082 = vmatpush1.msra.mxu0 %v970
    %1083 = vmatprep.subr.mxu0 %v987
    %1084 = vmatpush1.msra.mxu0 %v986
    %1085 = vmatprep.subr.mxu0 0.0
    %1086 = vmatpush1.msra.mxu0 0.0
    %1087 = vmatprep.subr.mxu0 0.0
    %1088 = vmatpush1.msra.mxu0 0.0
    %1089 = vmatprep.subr.mxu0 0.0
    %1090 = vmatpush1.msra.mxu0 0.0
    %1091 = vmatprep.subr.mxu0 0.0
    %1092 = vmatpush1.msra.mxu0 0.0
    %1093 = vmatprep.subr.mxu0 0.0
    %1094 = vmatpush1.msra.mxu0 0.0
    %1095 = vmatprep.subr.mxu0 0.0
    %1096 = vmatpush1.msra.mxu0 0.0
    %1097 = vmatprep.subr.mxu0 0.0
    %1098 = vmatpush1.msra.mxu0 0.0
    %1099 = vmatprep.subr.mxu0 0.0
    %1100 = vmatpush1.msra.mxu0 0.0
    %1101 = vmatprep.subr.mxu0 0.0
    %1102 = vmatpush1.msra.mxu0 0.0
    %1103 = vmatprep.subr.mxu0 0.0
    %1104 = vmatpush1.msra.mxu0 0.0
    %1105 = vmatprep.subr.mxu0 0.0
    %1106 = vmatpush1.msra.mxu0 0.0
    %1107 = vmatprep.subr.mxu0 0.0
    %1108 = vmatpush1.msra.mxu0 0.0
    %1109 = vmatprep.subr.mxu0 0.0
    %1110 = vmatpush1.msra.mxu0 0.0
    %1111 = vmatprep.subr.mxu0 0.0
    %1112 = vmatpush1.msra.mxu0 0.0
    %1113 = vmatprep.subr.mxu0 0.0
    %1114 = vmatpush1.msra.mxu0 0.0
    %1115 = vmatprep.subr.mxu0 0.0
    %1116 = vmatpush1.msra.mxu0 0.0
    %1117 = vmatprep.subr.mxu0 0.0
    %1118 = vmatpush1.msra.mxu0 0.0
    %1119 = vmatprep.subr.mxu0 0.0
    %1120 = vmatpush1.msra.mxu0 0.0
    %1121 = vmatprep.subr.mxu0 0.0
    %1122 = vmatpush1.msra.mxu0 0.0
    %1123 = vmatprep.subr.mxu0 0.0
    %1124 = vmatpush1.msra.mxu0 0.0
    %1125 = vmatprep.subr.mxu0 0.0
    %1126 = vmatpush1.msra.mxu0 0.0
    %1127 = vmatprep.subr.mxu0 0.0
    %1128 = vmatpush1.msra.mxu0 0.0
    %1129 = vmatprep.subr.mxu0 0.0
    %1130 = vmatpush1.msra.mxu0 0.0
    %1131 = vmatprep.mubr.f32.mxu0 0.0
    %1132 = vmatmul.mubr.f32.gmra.mrb[0].mxu0 %v994
    %v1133 = vpop.f32.mrb[0].mxu0
    %v1134 = vadd.f32 %v991, %v1133
    %v1135 = vpop.f32.mrb[0].mxu0
    %v1136 = vadd.f32 %v991, %v1135
    %1137 = vdwg.mxu0
    %v1138 = vmax.f32 %v1063, 0.0
    %v1139 = vmax.f32 %v1065, 0.0
    %v1140 = vmax.f32 %v1134, 0.0
    %v1141 = vmax.f32 %v1136, 0.0
    %s1142 = scalar_lea.vmem [#allocation5], 24
    %v1143 = vld [vmem:[%s1142] sm:$0xff]
    %s1144 = scalar_lea.vmem %s3, 24
    %v1145 = vld [vmem:[%s1144] sm:$0xff]
    %1146 = vrot.lane.b32.xlu0 %v1138, 17
    %v1147 = vpop.permute.xlu0 %1146
    %1148 = vrot.lane.b32.xlu0 %v1139, 17
    %v1149 = vpop.permute.xlu0 %1148
    %1150 = vrot.lane.b32.xlu0 %v1140, 17
    %v1151 = vpop.permute.xlu0 %1150
    %1152 = vrot.lane.b32.xlu0 %v1141, 17
    %v1153 = vpop.permute.xlu0 %1152
    %v1154 = vsel %vm155, %v1151, %v1153
    %v1155 = vsel %vm155, %v1149, %v1151
    %v1156 = vsel %vm155, %v1147, %v1149
    %v1157 = vsel %vm155, %v1153, %v1147
    %v1158 = vmul.f32 %v1157, %v163
    %v1159 = vmul.f32 %v1156, %v167
    %v1160 = vmul.f32 %v1155, %v171
    %v1161 = vmul.f32 %v1154, %v175
    %1162 = vrot.lane.b32.xlu0 %v1138, 16
    %v1163 = vpop.permute.xlu0 %1162
    %1164 = vrot.lane.b32.xlu0 %v1139, 16
    %v1165 = vpop.permute.xlu0 %1164
    %1166 = vrot.lane.b32.xlu0 %v1140, 16
    %v1167 = vpop.permute.xlu0 %1166
    %1168 = vrot.lane.b32.xlu0 %v1141, 16
    %v1169 = vpop.permute.xlu0 %1168
    %v1170 = vsel %vm188, %v1167, %v1169
    %v1171 = vsel %vm188, %v1165, %v1167
    %v1172 = vsel %vm188, %v1163, %v1165
    %v1173 = vsel %vm188, %v1169, %v1163
    %v1174 = vmul.f32 %v1173, %v196
    %v1175 = vmul.f32 %v1172, %v200
    %v1176 = vmul.f32 %v1171, %v204
    %v1177 = vmul.f32 %v1170, %v208
    %1178 = vrot.lane.b32.xlu0 %v1138, 15
    %v1179 = vpop.permute.xlu0 %1178
    %1180 = vrot.lane.b32.xlu0 %v1139, 15
    %v1181 = vpop.permute.xlu0 %1180
    %1182 = vrot.lane.b32.xlu0 %v1140, 15
    %v1183 = vpop.permute.xlu0 %1182
    %1184 = vrot.lane.b32.xlu0 %v1141, 15
    %v1185 = vpop.permute.xlu0 %1184
    %v1186 = vsel %vm221, %v1183, %v1185
    %v1187 = vsel %vm221, %v1181, %v1183
    %v1188 = vsel %vm221, %v1179, %v1181
    %v1189 = vsel %vm221, %v1185, %v1179
    %v1190 = vmul.f32 %v1189, %v229
    %v1191 = vmul.f32 %v1188, %v233
    %v1192 = vmul.f32 %v1187, %v237
    %v1193 = vmul.f32 %v1186, %v241
    %1194 = vrot.lane.b32.xlu0 %v1138, 1
    %v1195 = vpop.permute.xlu0 %1194
    %1196 = vrot.lane.b32.xlu0 %v1139, 1
    %v1197 = vpop.permute.xlu0 %1196
    %1198 = vrot.lane.b32.xlu0 %v1140, 1
    %v1199 = vpop.permute.xlu0 %1198
    %1200 = vrot.lane.b32.xlu0 %v1141, 1
    %v1201 = vpop.permute.xlu0 %1200
    %v1202 = vsel %vm254, %v1199, %v1201
    %v1203 = vsel %vm254, %v1197, %v1199
    %v1204 = vsel %vm254, %v1195, %v1197
    %v1205 = vsel %vm254, %v1201, %v1195
    %v1206 = vmul.f32 %v1205, %v262
    %v1207 = vmul.f32 %v1204, %v266
    %v1208 = vmul.f32 %v1203, %v270
    %v1209 = vmul.f32 %v1202, %v274
    %1210 = vrot.lane.b32.xlu0 %v1138, 127
    %v1211 = vpop.permute.xlu0 %1210
    %1212 = vrot.lane.b32.xlu0 %v1139, 127
    %v1213 = vpop.permute.xlu0 %1212
    %1214 = vrot.lane.b32.xlu0 %v1140, 127
    %v1215 = vpop.permute.xlu0 %1214
    %1216 = vrot.lane.b32.xlu0 %v1141, 127
    %v1217 = vpop.permute.xlu0 %1216
    %v1218 = vsel %vm287, %v1215, %v1217
    %v1219 = vsel %vm287, %v1213, %v1215
    %v1220 = vsel %vm287, %v1211, %v1213
    %v1221 = vsel %vm287, %v1217, %v1211
    %v1222 = vmul.f32 %v1220, %v295
    %v1223 = vmul.f32 %v1219, %v299
    %v1224 = vmul.f32 %v1218, %v303
    %v1225 = vmul.f32 %v1221, %v307
    %1226 = vrot.lane.b32.xlu0 %v1138, 113
    %v1227 = vpop.permute.xlu0 %1226
    %1228 = vrot.lane.b32.xlu0 %v1139, 113
    %v1229 = vpop.permute.xlu0 %1228
    %1230 = vrot.lane.b32.xlu0 %v1140, 113
    %v1231 = vpop.permute.xlu0 %1230
    %1232 = vrot.lane.b32.xlu0 %v1141, 113
    %v1233 = vpop.permute.xlu0 %1232
    %v1234 = vsel %vm320, %v1231, %v1233
    %v1235 = vsel %vm320, %v1229, %v1231
    %v1236 = vsel %vm320, %v1227, %v1229
    %v1237 = vsel %vm320, %v1233, %v1227
    %v1238 = vmul.f32 %v1236, %v328
    %v1239 = vmul.f32 %v1235, %v332
    %v1240 = vmul.f32 %v1234, %v336
    %v1241 = vmul.f32 %v1237, %v340
    %1242 = vrot.lane.b32.xlu0 %v1138, 112
    %v1243 = vpop.permute.xlu0 %1242
    %1244 = vrot.lane.b32.xlu0 %v1139, 112
    %v1245 = vpop.permute.xlu0 %1244
    %1246 = vrot.lane.b32.xlu0 %v1140, 112
    %v1247 = vpop.permute.xlu0 %1246
    %1248 = vrot.lane.b32.xlu0 %v1141, 112
    %v1249 = vpop.permute.xlu0 %1248
    %v1250 = vsel %vm353, %v1247, %v1249
    %v1251 = vsel %vm353, %v1245, %v1247
    %v1252 = vsel %vm353, %v1243, %v1245
    %v1253 = vsel %vm353, %v1249, %v1243
    %v1254 = vmul.f32 %v1252, %v361
    %v1255 = vmul.f32 %v1251, %v365
    %v1256 = vmul.f32 %v1250, %v369
    %v1257 = vmul.f32 %v1253, %v373
    %1258 = vrot.lane.b32.xlu0 %v1138, 111
    %v1259 = vpop.permute.xlu0 %1258
    %1260 = vrot.lane.b32.xlu0 %v1139, 111
    %v1261 = vpop.permute.xlu0 %1260
    %1262 = vrot.lane.b32.xlu0 %v1140, 111
    %v1263 = vpop.permute.xlu0 %1262
    %1264 = vrot.lane.b32.xlu0 %v1141, 111
    %v1265 = vpop.permute.xlu0 %1264
    %v1266 = vsel %vm386, %v1263, %v1265
    %v1267 = vsel %vm386, %v1261, %v1263
    %v1268 = vsel %vm386, %v1259, %v1261
    %v1269 = vsel %vm386, %v1265, %v1259
    %v1270 = vmul.f32 %v1268, %v394
    %v1271 = vmul.f32 %v1267, %v398
    %v1272 = vmul.f32 %v1266, %v402
    %v1273 = vmul.f32 %v1269, %v406
    %1275 = vset.pattern.permute.xlu0 0
    %1276 = vperm.xlu0 %1275, %v1145
    %v1277 = vpop.permute.xlu0 %1276
    %v1280 = vsel %vm416, %v1143, 0
    %1282 = vmatprep.subr.mxu0 %v1159
    %1283 = vmatpush1.msra.mxu0 %v1158
    %1284 = vmatprep.subr.mxu0 %v1175
    %1285 = vmatpush1.msra.mxu0 %v1174
    %1286 = vmatprep.subr.mxu0 %v1191
    %1287 = vmatpush1.msra.mxu0 %v1190
    %1288 = vmatprep.subr.mxu0 %v1207
    %1289 = vmatpush1.msra.mxu0 %v1206
    %1290 = vmatprep.subr.mxu0 %v1139
    %1291 = vmatpush1.msra.mxu0 %v1138
    %1292 = vmatprep.subr.mxu0 %v1223
    %1293 = vmatpush1.msra.mxu0 %v1222
    %1294 = vmatprep.subr.mxu0 %v1239
    %1295 = vmatpush1.msra.mxu0 %v1238
    %1296 = vmatprep.subr.mxu0 %v1255
    %1297 = vmatpush1.msra.mxu0 %v1254
    %1298 = vmatprep.subr.mxu0 %v1271
    %1299 = vmatpush1.msra.mxu0 %v1270
    %1300 = vmatprep.subr.mxu0 0.0
    %1301 = vmatpush1.msra.mxu0 0.0
    %1302 = vmatprep.subr.mxu0 0.0
    %1303 = vmatpush1.msra.mxu0 0.0
    %1304 = vmatprep.subr.mxu0 0.0
    %1305 = vmatpush1.msra.mxu0 0.0
    %1306 = vmatprep.subr.mxu0 0.0
    %1307 = vmatpush1.msra.mxu0 0.0
    %1308 = vmatprep.subr.mxu0 0.0
    %1309 = vmatpush1.msra.mxu0 0.0
    %1310 = vmatprep.subr.mxu0 0.0
    %1311 = vmatpush1.msra.mxu0 0.0
    %1312 = vmatprep.subr.mxu0 0.0
    %1313 = vmatpush1.msra.mxu0 0.0
    %1314 = vmatprep.subr.mxu0 0.0
    %1315 = vmatpush1.msra.mxu0 0.0
    %1316 = vmatprep.subr.mxu0 0.0
    %1317 = vmatpush1.msra.mxu0 0.0
    %1318 = vmatprep.subr.mxu0 0.0
    %1319 = vmatpush1.msra.mxu0 0.0
    %1320 = vmatprep.subr.mxu0 0.0
    %1321 = vmatpush1.msra.mxu0 0.0
    %1322 = vmatprep.subr.mxu0 0.0
    %1323 = vmatpush1.msra.mxu0 0.0
    %1324 = vmatprep.subr.mxu0 0.0
    %1325 = vmatpush1.msra.mxu0 0.0
    %1326 = vmatprep.subr.mxu0 0.0
    %1327 = vmatpush1.msra.mxu0 0.0
    %1328 = vmatprep.subr.mxu0 0.0
    %1329 = vmatpush1.msra.mxu0 0.0
    %1330 = vmatprep.subr.mxu0 0.0
    %1331 = vmatpush1.msra.mxu0 0.0
    %1332 = vmatprep.subr.mxu0 0.0
    %1333 = vmatpush1.msra.mxu0 0.0
    %1334 = vmatprep.subr.mxu0 0.0
    %1335 = vmatpush1.msra.mxu0 0.0
    %1336 = vmatprep.subr.mxu0 0.0
    %1337 = vmatpush1.msra.mxu0 0.0
    %1338 = vmatprep.subr.mxu0 0.0
    %1339 = vmatpush1.msra.mxu0 0.0
    %1340 = vmatprep.subr.mxu0 0.0
    %1341 = vmatpush1.msra.mxu0 0.0
    %1342 = vmatprep.subr.mxu0 0.0
    %1343 = vmatpush1.msra.mxu0 0.0
    %1344 = vmatprep.subr.mxu0 0.0
    %1345 = vmatpush1.msra.mxu0 0.0
    %1346 = vmatprep.mubr.f32.mxu0 0.0
    %1347 = vmatmul.mubr.f32.gmra.mrb[0].mxu0 %v1280
    %v1348 = vpop.f32.mrb[0].mxu0
    %v1349 = vadd.f32 %v1277, %v1348
    %v1350 = vpop.f32.mrb[0].mxu0
    %v1351 = vadd.f32 %v1277, %v1350
    %1352 = vdwg.mxu0
    %1353 = vmatprep.subr.mxu0 %v1161
    %1354 = vmatpush1.msra.mxu0 %v1160
    %1355 = vmatprep.subr.mxu0 %v1177
    %1356 = vmatpush1.msra.mxu0 %v1176
    %1357 = vmatprep.subr.mxu0 %v1193
    %1358 = vmatpush1.msra.mxu0 %v1192
    %1359 = vmatprep.subr.mxu0 %v1209
    %1360 = vmatpush1.msra.mxu0 %v1208
    %1361 = vmatprep.subr.mxu0 %v1141
    %1362 = vmatpush1.msra.mxu0 %v1140
    %1363 = vmatprep.subr.mxu0 %v1225
    %1364 = vmatpush1.msra.mxu0 %v1224
    %1365 = vmatprep.subr.mxu0 %v1241
    %1366 = vmatpush1.msra.mxu0 %v1240
    %1367 = vmatprep.subr.mxu0 %v1257
    %1368 = vmatpush1.msra.mxu0 %v1256
    %1369 = vmatprep.subr.mxu0 %v1273
    %1370 = vmatpush1.msra.mxu0 %v1272
    %1371 = vmatprep.subr.mxu0 0.0
    %1372 = vmatpush1.msra.mxu0 0.0
    %1373 = vmatprep.subr.mxu0 0.0
    %1374 = vmatpush1.msra.mxu0 0.0
    %1375 = vmatprep.subr.mxu0 0.0
    %1376 = vmatpush1.msra.mxu0 0.0
    %1377 = vmatprep.subr.mxu0 0.0
    %1378 = vmatpush1.msra.mxu0 0.0
    %1379 = vmatprep.subr.mxu0 0.0
    %1380 = vmatpush1.msra.mxu0 0.0
    %1381 = vmatprep.subr.mxu0 0.0
    %1382 = vmatpush1.msra.mxu0 0.0
    %1383 = vmatprep.subr.mxu0 0.0
    %1384 = vmatpush1.msra.mxu0 0.0
    %1385 = vmatprep.subr.mxu0 0.0
    %1386 = vmatpush1.msra.mxu0 0.0
    %1387 = vmatprep.subr.mxu0 0.0
    %1388 = vmatpush1.msra.mxu0 0.0
    %1389 = vmatprep.subr.mxu0 0.0
    %1390 = vmatpush1.msra.mxu0 0.0
    %1391 = vmatprep.subr.mxu0 0.0
    %1392 = vmatpush1.msra.mxu0 0.0
    %1393 = vmatprep.subr.mxu0 0.0
    %1394 = vmatpush1.msra.mxu0 0.0
    %1395 = vmatprep.subr.mxu0 0.0
    %1396 = vmatpush1.msra.mxu0 0.0
    %1397 = vmatprep.subr.mxu0 0.0
    %1398 = vmatpush1.msra.mxu0 0.0
    %1399 = vmatprep.subr.mxu0 0.0
    %1400 = vmatpush1.msra.mxu0 0.0
    %1401 = vmatprep.subr.mxu0 0.0
    %1402 = vmatpush1.msra.mxu0 0.0
    %1403 = vmatprep.subr.mxu0 0.0
    %1404 = vmatpush1.msra.mxu0 0.0
    %1405 = vmatprep.subr.mxu0 0.0
    %1406 = vmatpush1.msra.mxu0 0.0
    %1407 = vmatprep.subr.mxu0 0.0
    %1408 = vmatpush1.msra.mxu0 0.0
    %1409 = vmatprep.subr.mxu0 0.0
    %1410 = vmatpush1.msra.mxu0 0.0
    %1411 = vmatprep.subr.mxu0 0.0
    %1412 = vmatpush1.msra.mxu0 0.0
    %1413 = vmatprep.subr.mxu0 0.0
    %1414 = vmatpush1.msra.mxu0 0.0
    %1415 = vmatprep.subr.mxu0 0.0
    %1416 = vmatpush1.msra.mxu0 0.0
    %1417 = vmatprep.mubr.f32.mxu0 0.0
    %1418 = vmatmul.mubr.f32.gmra.mrb[0].mxu0 %v1280
    %v1419 = vpop.f32.mrb[0].mxu0
    %v1420 = vadd.f32 %v1277, %v1419
    %v1421 = vpop.f32.mrb[0].mxu0
    %v1422 = vadd.f32 %v1277, %v1421
    %1423 = vdwg.mxu0
    %v1424 = vadd.f32 %v1349, %v852
    %v1425 = vadd.f32 %v1351, %v853
    %v1426 = vadd.f32 %v1420, %v854
    %v1427 = vadd.f32 %v1422, %v855
    %v1428 = vmax.f32 %v1424, 0.0
    %v1429 = vmax.f32 %v1425, 0.0
    %v1430 = vmax.f32 %v1426, 0.0
    %v1431 = vmax.f32 %v1427, 0.0
    %v1432 = vld [vmem:[%s1] sm:$0xff]
    %v1433 = vld [vmem:[%s1 + $0x8] sm:$0xff]
    %v1434 = vld [vmem:[%s4] sm:$0xff]
    %v1435 = vld [vmem:[%s4 + $0x8] sm:$0xff]
    %v1436 = vld [vmem:[%s4 + $0x10] sm:$0xff]
    %v1437 = vld [vmem:[%s4 + $0x18] sm:$0xff]
    %v1438 = vld [vmem:[%s5] sm:$0xff]
    %v1439 = vld [vmem:[%s5 + $0x8] sm:$0xff]
    %1440 = vrot.lane.b32.xlu0 %v1432, 9
    %v1441 = vpop.permute.xlu0 %1440
    %1442 = vrot.lane.b32.xlu0 %v1433, 9
    %v1443 = vpop.permute.xlu0 %1442
    %v1444 = vlaneseq
    %v1445 = vshrl.u32 %v1444, 7
    %v1446 = vsub.s32 0, %v1445
    %v1447 = vrot.slane %v137, %v1446
    %v1448 = vmul.f32 %v1441, %v1447
    %v1449 = vmul.f32 %v1443, %v1447
    %1450 = vrot.lane.b32.xlu0 %v1432, 8
    %v1451 = vpop.permute.xlu0 %1450
    %1452 = vrot.lane.b32.xlu0 %v1433, 8
    %v1453 = vpop.permute.xlu0 %1452
    %v1454 = vlaneseq
    %v1455 = vshrl.u32 %v1454, 7
    %v1456 = vsub.s32 1, %v1455
    %v1457 = vrot.slane %v137, %v1456
    %v1458 = vmul.f32 %v1451, %v1457
    %v1459 = vmul.f32 %v1453, %v1457
    %1460 = vrot.lane.b32.xlu0 %v1432, 7
    %v1461 = vpop.permute.xlu0 %1460
    %1462 = vrot.lane.b32.xlu0 %v1433, 7
    %v1463 = vpop.permute.xlu0 %1462
    %v1464 = vlaneseq
    %v1465 = vshrl.u32 %v1464, 7
    %v1466 = vsub.s32 2, %v1465
    %v1467 = vrot.slane %v137, %v1466
    %v1468 = vmul.f32 %v1461, %v1467
    %v1469 = vmul.f32 %v1463, %v1467
    %1470 = vrot.lane.b32.xlu0 %v1432, 1
    %v1471 = vpop.permute.xlu0 %1470
    %1472 = vrot.lane.b32.xlu0 %v1433, 1
    %v1473 = vpop.permute.xlu0 %1472
    %v1474 = vlaneseq
    %v1475 = vshrl.u32 %v1474, 7
    %v1476 = vsub.s32 3, %v1475
    %v1477 = vrot.slane %v137, %v1476
    %v1478 = vmul.f32 %v1471, %v1477
    %v1479 = vmul.f32 %v1473, %v1477
    %1480 = vrot.lane.b32.xlu0 %v1432, 127
    %v1481 = vpop.permute.xlu0 %1480
    %1482 = vrot.lane.b32.xlu0 %v1433, 127
    %v1483 = vpop.permute.xlu0 %1482
    %v1484 = vlaneseq
    %v1485 = vshrl.u32 %v1484, 7
    %v1486 = vsub.s32 5, %v1485
    %v1487 = vrot.slane %v137, %v1486
    %v1488 = vmul.f32 %v1481, %v1487
    %v1489 = vmul.f32 %v1483, %v1487
    %1490 = vrot.lane.b32.xlu0 %v1432, 121
    %v1491 = vpop.permute.xlu0 %1490
    %1492 = vrot.lane.b32.xlu0 %v1433, 121
    %v1493 = vpop.permute.xlu0 %1492
    %v1494 = vlaneseq
    %v1495 = vshrl.u32 %v1494, 7
    %v1496 = vsub.s32 6, %v1495
    %v1497 = vrot.slane %v137, %v1496
    %v1498 = vmul.f32 %v1491, %v1497
    %v1499 = vmul.f32 %v1493, %v1497
    %1500 = vrot.lane.b32.xlu0 %v1432, 120
    %v1501 = vpop.permute.xlu0 %1500
    %1502 = vrot.lane.b32.xlu0 %v1433, 120
    %v1503 = vpop.permute.xlu0 %1502
    %v1504 = vlaneseq
    %v1505 = vshrl.u32 %v1504, 7
    %v1506 = vsub.s32 7, %v1505
    %v1507 = vrot.slane %v137, %v1506
    %v1508 = vmul.f32 %v1501, %v1507
    %v1509 = vmul.f32 %v1503, %v1507
    %1510 = vrot.lane.b32.xlu0 %v1432, 119
    %v1511 = vpop.permute.xlu0 %1510
    %1512 = vrot.lane.b32.xlu0 %v1433, 119
    %v1513 = vpop.permute.xlu0 %1512
    %v1514 = vlaneseq
    %v1515 = vshrl.u32 %v1514, 7
    %v1516 = vsub.s32 0, %v1515
    %v1517 = vrot.slane %v138, %v1516
    %v1518 = vmul.f32 %v1511, %v1517
    %v1519 = vmul.f32 %v1513, %v1517
    %1521 = vset.pattern.permute.xlu0 0
    %1522 = vperm.xlu0 %1521, %v1438
    %v1523 = vpop.permute.xlu0 %1522
    %1526 = vset.pattern.permute.xlu0 0
    %1527 = vperm.xlu0 %1526, %v1439
    %v1528 = vpop.permute.xlu0 %1527
    %vm1530 = vcmask 130048
    %v1532 = vsel %vm1530, %v1435, 0
    %v1535 = vsel %vm1530, %v1437, 0
    %1537 = vmatprep.subr.mxu0 0.0
    %1538 = vmatpush1.msra.mxu0 %v1448
    %1539 = vmatprep.subr.mxu0 0.0
    %1540 = vmatpush1.msra.mxu0 %v1449
    %1541 = vmatprep.subr.mxu0 0.0
    %1542 = vmatpush1.msra.mxu0 %v1458
    %1543 = vmatprep.subr.mxu0 0.0
    %1544 = vmatpush1.msra.mxu0 %v1459
    %1545 = vmatprep.subr.mxu0 0.0
    %1546 = vmatpush1.msra.mxu0 %v1468
    %1547 = vmatprep.subr.mxu0 0.0
    %1548 = vmatpush1.msra.mxu0 %v1469
    %1549 = vmatprep.subr.mxu0 0.0
    %1550 = vmatpush1.msra.mxu0 %v1478
    %1551 = vmatprep.subr.mxu0 0.0
    %1552 = vmatpush1.msra.mxu0 %v1479
    %1553 = vmatprep.subr.mxu0 0.0
    %1554 = vmatpush1.msra.mxu0 %v1432
    %1555 = vmatprep.subr.mxu0 0.0
    %1556 = vmatpush1.msra.mxu0 %v1433
    %1557 = vmatprep.subr.mxu0 0.0
    %1558 = vmatpush1.msra.mxu0 %v1488
    %1559 = vmatprep.subr.mxu0 0.0
    %1560 = vmatpush1.msra.mxu0 %v1489
    %1561 = vmatprep.subr.mxu0 0.0
    %1562 = vmatpush1.msra.mxu0 %v1498
    %1563 = vmatprep.subr.mxu0 0.0
    %1564 = vmatpush1.msra.mxu0 %v1499
    %1565 = vmatprep.subr.mxu0 0.0
    %1566 = vmatpush1.msra.mxu0 %v1508
    %1567 = vmatprep.subr.mxu0 0.0
    %1568 = vmatpush1.msra.mxu0 %v1509
    %1569 = vmatprep.subr.mxu0 0.0
    %1570 = vmatpush1.msra.mxu0 %v1518
    %1571 = vmatprep.subr.mxu0 0.0
    %1572 = vmatpush1.msra.mxu0 %v1519
    %1573 = vmatprep.subr.mxu0 0.0
    %1574 = vmatpush1.msra.mxu0 0.0
    %1575 = vmatprep.subr.mxu0 0.0
    %1576 = vmatpush1.msra.mxu0 0.0
    %1577 = vmatprep.subr.mxu0 0.0
    %1578 = vmatpush1.msra.mxu0 0.0
    %1579 = vmatprep.subr.mxu0 0.0
    %1580 = vmatpush1.msra.mxu0 0.0
    %1581 = vmatprep.subr.mxu0 0.0
    %1582 = vmatpush1.msra.mxu0 0.0
    %1583 = vmatprep.subr.mxu0 0.0
    %1584 = vmatpush1.msra.mxu0 0.0
    %1585 = vmatprep.subr.mxu0 0.0
    %1586 = vmatpush1.msra.mxu0 0.0
    %1587 = vmatprep.subr.mxu0 0.0
    %1588 = vmatpush1.msra.mxu0 0.0
    %1589 = vmatprep.subr.mxu0 0.0
    %1590 = vmatpush1.msra.mxu0 0.0
    %1591 = vmatprep.subr.mxu0 0.0
    %1592 = vmatpush1.msra.mxu0 0.0
    %1593 = vmatprep.subr.mxu0 0.0
    %1594 = vmatpush1.msra.mxu0 0.0
    %1595 = vmatprep.subr.mxu0 0.0
    %1596 = vmatpush1.msra.mxu0 0.0
    %1597 = vmatprep.subr.mxu0 0.0
    %1598 = vmatpush1.msra.mxu0 0.0
    %1599 = vmatprep.subr.mxu0 0.0
    %1600 = vmatpush1.msra.mxu0 0.0
    %1601 = vmatprep.mubr.f32.mxu0 %v1532
    %1602 = vmatmul.mubr.f32.gmra.mrb[0].mxu0 %v1434
    %v1603 = vpop.f32.mrb[0].mxu0
    %v1604 = vadd.f32 %v1523, %v1603
    %v1605 = vpop.f32.mrb[0].mxu0
    %1606 = vmatprep.mubr.f32.mxu0 %v1535
    %1607 = vmatmul.mubr.f32.gmra.mrb[0].mxu0 %v1436
    %v1608 = vpop.f32.mrb[0].mxu0
    %v1609 = vadd.f32 %v1528, %v1608
    %v1610 = vpop.f32.mrb[0].mxu0
    %1611 = vdwg.mxu0
    %v1612 = vmax.f32 %v1604, 0.0
    %v1613 = vmax.f32 %v1609, 0.0
    %s1614 = scalar_lea.vmem %s4, 32
    %v1615 = vld [vmem:[%s1614] sm:$0xff]
    %v1616 = vld [vmem:[%s1614 + $0x8] sm:$0xff]
    %v1617 = vld [vmem:[%s1614 + $0x10] sm:$0xff]
    %v1618 = vld [vmem:[%s1614 + $0x18] sm:$0xff]
    %s1619 = scalar_lea.vmem %s5, 16
    %v1620 = vld [vmem:[%s1619] sm:$0xff]
    %v1621 = vld [vmem:[%s1619 + $0x8] sm:$0xff]
    %1622 = vrot.lane.b32.xlu0 %v1612, 9
    %v1623 = vpop.permute.xlu0 %1622
    %1624 = vrot.lane.b32.xlu0 %v1613, 9
    %v1625 = vpop.permute.xlu0 %1624
    %v1626 = vmul.f32 %v1623, %v1447
    %v1627 = vmul.f32 %v1625, %v1447
    %1628 = vrot.lane.b32.xlu0 %v1612, 8
    %v1629 = vpop.permute.xlu0 %1628
    %1630 = vrot.lane.b32.xlu0 %v1613, 8
    %v1631 = vpop.permute.xlu0 %1630
    %v1632 = vmul.f32 %v1629, %v1457
    %v1633 = vmul.f32 %v1631, %v1457
    %1634 = vrot.lane.b32.xlu0 %v1612, 7
    %v1635 = vpop.permute.xlu0 %1634
    %1636 = vrot.lane.b32.xlu0 %v1613, 7
    %v1637 = vpop.permute.xlu0 %1636
    %v1638 = vmul.f32 %v1635, %v1467
    %v1639 = vmul.f32 %v1637, %v1467
    %1640 = vrot.lane.b32.xlu0 %v1612, 1
    %v1641 = vpop.permute.xlu0 %1640
    %1642 = vrot.lane.b32.xlu0 %v1613, 1
    %v1643 = vpop.permute.xlu0 %1642
    %v1644 = vmul.f32 %v1641, %v1477
    %v1645 = vmul.f32 %v1643, %v1477
    %1646 = vrot.lane.b32.xlu0 %v1612, 127
    %v1647 = vpop.permute.xlu0 %1646
    %1648 = vrot.lane.b32.xlu0 %v1613, 127
    %v1649 = vpop.permute.xlu0 %1648
    %v1650 = vmul.f32 %v1647, %v1487
    %v1651 = vmul.f32 %v1649, %v1487
    %1652 = vrot.lane.b32.xlu0 %v1612, 121
    %v1653 = vpop.permute.xlu0 %1652
    %1654 = vrot.lane.b32.xlu0 %v1613, 121
    %v1655 = vpop.permute.xlu0 %1654
    %v1656 = vmul.f32 %v1653, %v1497
    %v1657 = vmul.f32 %v1655, %v1497
    %1658 = vrot.lane.b32.xlu0 %v1612, 120
    %v1659 = vpop.permute.xlu0 %1658
    %1660 = vrot.lane.b32.xlu0 %v1613, 120
    %v1661 = vpop.permute.xlu0 %1660
    %v1662 = vmul.f32 %v1659, %v1507
    %v1663 = vmul.f32 %v1661, %v1507
    %1664 = vrot.lane.b32.xlu0 %v1612, 119
    %v1665 = vpop.permute.xlu0 %1664
    %1666 = vrot.lane.b32.xlu0 %v1613, 119
    %v1667 = vpop.permute.xlu0 %1666
    %v1668 = vmul.f32 %v1665, %v1517
    %v1669 = vmul.f32 %v1667, %v1517
    %1671 = vset.pattern.permute.xlu0 0
    %1672 = vperm.xlu0 %1671, %v1620
    %v1673 = vpop.permute.xlu0 %1672
    %1676 = vset.pattern.permute.xlu0 0
    %1677 = vperm.xlu0 %1676, %v1621
    %v1678 = vpop.permute.xlu0 %1677
    %v1681 = vsel %vm1530, %v1616, 0
    %v1684 = vsel %vm1530, %v1618, 0
    %1686 = vmatprep.subr.mxu0 0.0
    %1687 = vmatpush1.msra.mxu0 %v1626
    %1688 = vmatprep.subr.mxu0 0.0
    %1689 = vmatpush1.msra.mxu0 %v1627
    %1690 = vmatprep.subr.mxu0 0.0
    %1691 = vmatpush1.msra.mxu0 %v1632
    %1692 = vmatprep.subr.mxu0 0.0
    %1693 = vmatpush1.msra.mxu0 %v1633
    %1694 = vmatprep.subr.mxu0 0.0
    %1695 = vmatpush1.msra.mxu0 %v1638
    %1696 = vmatprep.subr.mxu0 0.0
    %1697 = vmatpush1.msra.mxu0 %v1639
    %1698 = vmatprep.subr.mxu0 0.0
    %1699 = vmatpush1.msra.mxu0 %v1644
    %1700 = vmatprep.subr.mxu0 0.0
    %1701 = vmatpush1.msra.mxu0 %v1645
    %1702 = vmatprep.subr.mxu0 0.0
    %1703 = vmatpush1.msra.mxu0 %v1612
    %1704 = vmatprep.subr.mxu0 0.0
    %1705 = vmatpush1.msra.mxu0 %v1613
    %1706 = vmatprep.subr.mxu0 0.0
    %1707 = vmatpush1.msra.mxu0 %v1650
    %1708 = vmatprep.subr.mxu0 0.0
    %1709 = vmatpush1.msra.mxu0 %v1651
    %1710 = vmatprep.subr.mxu0 0.0
    %1711 = vmatpush1.msra.mxu0 %v1656
    %1712 = vmatprep.subr.mxu0 0.0
    %1713 = vmatpush1.msra.mxu0 %v1657
    %1714 = vmatprep.subr.mxu0 0.0
    %1715 = vmatpush1.msra.mxu0 %v1662
    %1716 = vmatprep.subr.mxu0 0.0
    %1717 = vmatpush1.msra.mxu0 %v1663
    %1718 = vmatprep.subr.mxu0 0.0
    %1719 = vmatpush1.msra.mxu0 %v1668
    %1720 = vmatprep.subr.mxu0 0.0
    %1721 = vmatpush1.msra.mxu0 %v1669
    %1722 = vmatprep.subr.mxu0 0.0
    %1723 = vmatpush1.msra.mxu0 0.0
    %1724 = vmatprep.subr.mxu0 0.0
    %1725 = vmatpush1.msra.mxu0 0.0
    %1726 = vmatprep.subr.mxu0 0.0
    %1727 = vmatpush1.msra.mxu0 0.0
    %1728 = vmatprep.subr.mxu0 0.0
    %1729 = vmatpush1.msra.mxu0 0.0
    %1730 = vmatprep.subr.mxu0 0.0
    %1731 = vmatpush1.msra.mxu0 0.0
    %1732 = vmatprep.subr.mxu0 0.0
    %1733 = vmatpush1.msra.mxu0 0.0
    %1734 = vmatprep.subr.mxu0 0.0
    %1735 = vmatpush1.msra.mxu0 0.0
    %1736 = vmatprep.subr.mxu0 0.0
    %1737 = vmatpush1.msra.mxu0 0.0
    %1738 = vmatprep.subr.mxu0 0.0
    %1739 = vmatpush1.msra.mxu0 0.0
    %1740 = vmatprep.subr.mxu0 0.0
    %1741 = vmatpush1.msra.mxu0 0.0
    %1742 = vmatprep.subr.mxu0 0.0
    %1743 = vmatpush1.msra.mxu0 0.0
    %1744 = vmatprep.subr.mxu0 0.0
    %1745 = vmatpush1.msra.mxu0 0.0
    %1746 = vmatprep.subr.mxu0 0.0
    %1747 = vmatpush1.msra.mxu0 0.0
    %1748 = vmatprep.subr.mxu0 0.0
    %1749 = vmatpush1.msra.mxu0 0.0
    %1750 = vmatprep.mubr.f32.mxu0 %v1681
    %1751 = vmatmul.mubr.f32.gmra.mrb[0].mxu0 %v1615
    %v1752 = vpop.f32.mrb[0].mxu0
    %v1753 = vadd.f32 %v1673, %v1752
    %v1754 = vpop.f32.mrb[0].mxu0
    %1755 = vmatprep.mubr.f32.mxu0 %v1684
    %1756 = vmatmul.mubr.f32.gmra.mrb[0].mxu0 %v1617
    %v1757 = vpop.f32.mrb[0].mxu0
    %v1758 = vadd.f32 %v1678, %v1757
    %v1759 = vpop.f32.mrb[0].mxu0
    %1760 = vdwg.mxu0
    %v1761 = vadd.f32 %v1753, %v1432
    %v1762 = vadd.f32 %v1758, %v1433
    %v1763 = vmax.f32 %v1761, 0.0
    %v1764 = vmax.f32 %v1762, 0.0
    %s1765 = scalar_lea.vmem %s4, 64
    %v1766 = vld [vmem:[%s1765] sm:$0xff]
    %v1767 = vld [vmem:[%s1765 + $0x8] sm:$0xff]
    %v1768 = vld [vmem:[%s1765 + $0x10] sm:$0xff]
    %v1769 = vld [vmem:[%s1765 + $0x18] sm:$0xff]
    %s1770 = scalar_lea.vmem %s5, 32
    %v1771 = vld [vmem:[%s1770] sm:$0xff]
    %v1772 = vld [vmem:[%s1770 + $0x8] sm:$0xff]
    %1773 = vrot.lane.b32.xlu0 %v1763, 9
    %v1774 = vpop.permute.xlu0 %1773
    %1775 = vrot.lane.b32.xlu0 %v1764, 9
    %v1776 = vpop.permute.xlu0 %1775
    %v1777 = vmul.f32 %v1774, %v1447
    %v1778 = vmul.f32 %v1776, %v1447
    %1779 = vrot.lane.b32.xlu0 %v1763, 8
    %v1780 = vpop.permute.xlu0 %1779
    %1781 = vrot.lane.b32.xlu0 %v1764, 8
    %v1782 = vpop.permute.xlu0 %1781
    %v1783 = vmul.f32 %v1780, %v1457
    %v1784 = vmul.f32 %v1782, %v1457
    %1785 = vrot.lane.b32.xlu0 %v1763, 7
    %v1786 = vpop.permute.xlu0 %1785
    %1787 = vrot.lane.b32.xlu0 %v1764, 7
    %v1788 = vpop.permute.xlu0 %1787
    %v1789 = vmul.f32 %v1786, %v1467
    %v1790 = vmul.f32 %v1788, %v1467
    %1791 = vrot.lane.b32.xlu0 %v1763, 1
    %v1792 = vpop.permute.xlu0 %1791
    %1793 = vrot.lane.b32.xlu0 %v1764, 1
    %v1794 = vpop.permute.xlu0 %1793
    %v1795 = vmul.f32 %v1792, %v1477
    %v1796 = vmul.f32 %v1794, %v1477
    %1797 = vrot.lane.b32.xlu0 %v1763, 127
    %v1798 = vpop.permute.xlu0 %1797
    %1799 = vrot.lane.b32.xlu0 %v1764, 127
    %v1800 = vpop.permute.xlu0 %1799
    %v1801 = vmul.f32 %v1798, %v1487
    %v1802 = vmul.f32 %v1800, %v1487
    %1803 = vrot.lane.b32.xlu0 %v1763, 121
    %v1804 = vpop.permute.xlu0 %1803
    %1805 = vrot.lane.b32.xlu0 %v1764, 121
    %v1806 = vpop.permute.xlu0 %1805
    %v1807 = vmul.f32 %v1804, %v1497
    %v1808 = vmul.f32 %v1806, %v1497
    %1809 = vrot.lane.b32.xlu0 %v1763, 120
    %v1810 = vpop.permute.xlu0 %1809
    %1811 = vrot.lane.b32.xlu0 %v1764, 120
    %v1812 = vpop.permute.xlu0 %1811
    %v1813 = vmul.f32 %v1810, %v1507
    %v1814 = vmul.f32 %v1812, %v1507
    %1815 = vrot.lane.b32.xlu0 %v1763, 119
    %v1816 = vpop.permute.xlu0 %1815
    %1817 = vrot.lane.b32.xlu0 %v1764, 119
    %v1818 = vpop.permute.xlu0 %1817
    %v1819 = vmul.f32 %v1816, %v1517
    %v1820 = vmul.f32 %v1818, %v1517
    %1822 = vset.pattern.permute.xlu0 0
    %1823 = vperm.xlu0 %1822, %v1771
    %v1824 = vpop.permute.xlu0 %1823
    %1827 = vset.pattern.permute.xlu0 0
    %1828 = vperm.xlu0 %1827, %v1772
    %v1829 = vpop.permute.xlu0 %1828
    %v1832 = vsel %vm1530, %v1767, 0
    %v1835 = vsel %vm1530, %v1769, 0
    %1837 = vmatprep.subr.mxu0 0.0
    %1838 = vmatpush1.msra.mxu0 %v1777
    %1839 = vmatprep.subr.mxu0 0.0
    %1840 = vmatpush1.msra.mxu0 %v1778
    %1841 = vmatprep.subr.mxu0 0.0
    %1842 = vmatpush1.msra.mxu0 %v1783
    %1843 = vmatprep.subr.mxu0 0.0
    %1844 = vmatpush1.msra.mxu0 %v1784
    %1845 = vmatprep.subr.mxu0 0.0
    %1846 = vmatpush1.msra.mxu0 %v1789
    %1847 = vmatprep.subr.mxu0 0.0
    %1848 = vmatpush1.msra.mxu0 %v1790
    %1849 = vmatprep.subr.mxu0 0.0
    %1850 = vmatpush1.msra.mxu0 %v1795
    %1851 = vmatprep.subr.mxu0 0.0
    %1852 = vmatpush1.msra.mxu0 %v1796
    %1853 = vmatprep.subr.mxu0 0.0
    %1854 = vmatpush1.msra.mxu0 %v1763
    %1855 = vmatprep.subr.mxu0 0.0
    %1856 = vmatpush1.msra.mxu0 %v1764
    %1857 = vmatprep.subr.mxu0 0.0
    %1858 = vmatpush1.msra.mxu0 %v1801
    %1859 = vmatprep.subr.mxu0 0.0
    %1860 = vmatpush1.msra.mxu0 %v1802
    %1861 = vmatprep.subr.mxu0 0.0
    %1862 = vmatpush1.msra.mxu0 %v1807
    %1863 = vmatprep.subr.mxu0 0.0
    %1864 = vmatpush1.msra.mxu0 %v1808
    %1865 = vmatprep.subr.mxu0 0.0
    %1866 = vmatpush1.msra.mxu0 %v1813
    %1867 = vmatprep.subr.mxu0 0.0
    %1868 = vmatpush1.msra.mxu0 %v1814
    %1869 = vmatprep.subr.mxu0 0.0
    %1870 = vmatpush1.msra.mxu0 %v1819
    %1871 = vmatprep.subr.mxu0 0.0
    %1872 = vmatpush1.msra.mxu0 %v1820
    %1873 = vmatprep.subr.mxu0 0.0
    %1874 = vmatpush1.msra.mxu0 0.0
    %1875 = vmatprep.subr.mxu0 0.0
    %1876 = vmatpush1.msra.mxu0 0.0
    %1877 = vmatprep.subr.mxu0 0.0
    %1878 = vmatpush1.msra.mxu0 0.0
    %1879 = vmatprep.subr.mxu0 0.0
    %1880 = vmatpush1.msra.mxu0 0.0
    %1881 = vmatprep.subr.mxu0 0.0
    %1882 = vmatpush1.msra.mxu0 0.0
    %1883 = vmatprep.subr.mxu0 0.0
    %1884 = vmatpush1.msra.mxu0 0.0
    %1885 = vmatprep.subr.mxu0 0.0
    %1886 = vmatpush1.msra.mxu0 0.0
    %1887 = vmatprep.subr.mxu0 0.0
    %1888 = vmatpush1.msra.mxu0 0.0
    %1889 = vmatprep.subr.mxu0 0.0
    %1890 = vmatpush1.msra.mxu0 0.0
    %1891 = vmatprep.subr.mxu0 0.0
    %1892 = vmatpush1.msra.mxu0 0.0
    %1893 = vmatprep.subr.mxu0 0.0
    %1894 = vmatpush1.msra.mxu0 0.0
    %1895 = vmatprep.subr.mxu0 0.0
    %1896 = vmatpush1.msra.mxu0 0.0
    %1897 = vmatprep.subr.mxu0 0.0
    %1898 = vmatpush1.msra.mxu0 0.0
    %1899 = vmatprep.subr.mxu0 0.0
    %1900 = vmatpush1.msra.mxu0 0.0
    %1901 = vmatprep.mubr.f32.mxu0 %v1832
    %1902 = vmatmul.mubr.f32.gmra.mrb[0].mxu0 %v1766
    %v1903 = vpop.f32.mrb[0].mxu0
    %v1904 = vadd.f32 %v1824, %v1903
    %v1905 = vpop.f32.mrb[0].mxu0
    %1906 = vmatprep.mubr.f32.mxu0 %v1835
    %1907 = vmatmul.mubr.f32.gmra.mrb[0].mxu0 %v1768
    %v1908 = vpop.f32.mrb[0].mxu0
    %v1909 = vadd.f32 %v1829, %v1908
    %v1910 = vpop.f32.mrb[0].mxu0
    %1911 = vdwg.mxu0
    %v1912 = vmax.f32 %v1904, 0.0
    %v1913 = vmax.f32 %v1909, 0.0
    %s1914 = scalar_lea.vmem %s4, 96
    %v1915 = vld [vmem:[%s1914] sm:$0xff]
    %v1916 = vld [vmem:[%s1914 + $0x8] sm:$0xff]
    %v1917 = vld [vmem:[%s1914 + $0x10] sm:$0xff]
    %v1918 = vld [vmem:[%s1914 + $0x18] sm:$0xff]
    %s1919 = scalar_lea.vmem %s5, 48
    %v1920 = vld [vmem:[%s1919] sm:$0xff]
    %v1921 = vld [vmem:[%s1919 + $0x8] sm:$0xff]
    %1922 = vrot.lane.b32.xlu0 %v1912, 9
    %v1923 = vpop.permute.xlu0 %1922
    %1924 = vrot.lane.b32.xlu0 %v1913, 9
    %v1925 = vpop.permute.xlu0 %1924
    %v1926 = vmul.f32 %v1923, %v1447
    %v1927 = vmul.f32 %v1925, %v1447
    %1928 = vrot.lane.b32.xlu0 %v1912, 8
    %v1929 = vpop.permute.xlu0 %1928
    %1930 = vrot.lane.b32.xlu0 %v1913, 8
    %v1931 = vpop.permute.xlu0 %1930
    %v1932 = vmul.f32 %v1929, %v1457
    %v1933 = vmul.f32 %v1931, %v1457
    %1934 = vrot.lane.b32.xlu0 %v1912, 7
    %v1935 = vpop.permute.xlu0 %1934
    %1936 = vrot.lane.b32.xlu0 %v1913, 7
    %v1937 = vpop.permute.xlu0 %1936
    %v1938 = vmul.f32 %v1935, %v1467
    %v1939 = vmul.f32 %v1937, %v1467
    %1940 = vrot.lane.b32.xlu0 %v1912, 1
    %v1941 = vpop.permute.xlu0 %1940
    %1942 = vrot.lane.b32.xlu0 %v1913, 1
    %v1943 = vpop.permute.xlu0 %1942
    %v1944 = vmul.f32 %v1941, %v1477
    %v1945 = vmul.f32 %v1943, %v1477
    %1946 = vrot.lane.b32.xlu0 %v1912, 127
    %v1947 = vpop.permute.xlu0 %1946
    %1948 = vrot.lane.b32.xlu0 %v1913, 127
    %v1949 = vpop.permute.xlu0 %1948
    %v1950 = vmul.f32 %v1947, %v1487
    %v1951 = vmul.f32 %v1949, %v1487
    %1952 = vrot.lane.b32.xlu0 %v1912, 121
    %v1953 = vpop.permute.xlu0 %1952
    %1954 = vrot.lane.b32.xlu0 %v1913, 121
    %v1955 = vpop.permute.xlu0 %1954
    %v1956 = vmul.f32 %v1953, %v1497
    %v1957 = vmul.f32 %v1955, %v1497
    %1958 = vrot.lane.b32.xlu0 %v1912, 120
    %v1959 = vpop.permute.xlu0 %1958
    %1960 = vrot.lane.b32.xlu0 %v1913, 120
    %v1961 = vpop.permute.xlu0 %1960
    %v1962 = vmul.f32 %v1959, %v1507
    %v1963 = vmul.f32 %v1961, %v1507
    %1964 = vrot.lane.b32.xlu0 %v1912, 119
    %v1965 = vpop.permute.xlu0 %1964
    %1966 = vrot.lane.b32.xlu0 %v1913, 119
    %v1967 = vpop.permute.xlu0 %1966
    %v1968 = vmul.f32 %v1965, %v1517
    %v1969 = vmul.f32 %v1967, %v1517
    %1971 = vset.pattern.permute.xlu0 0
    %1972 = vperm.xlu0 %1971, %v1920
    %v1973 = vpop.permute.xlu0 %1972
    %1976 = vset.pattern.permute.xlu0 0
    %1977 = vperm.xlu0 %1976, %v1921
    %v1978 = vpop.permute.xlu0 %1977
    %v1981 = vsel %vm1530, %v1916, 0
    %v1984 = vsel %vm1530, %v1918, 0
    %1986 = vmatprep.subr.mxu0 0.0
    %1987 = vmatpush1.msra.mxu0 %v1926
    %1988 = vmatprep.subr.mxu0 0.0
    %1989 = vmatpush1.msra.mxu0 %v1927
    %1990 = vmatprep.subr.mxu0 0.0
    %1991 = vmatpush1.msra.mxu0 %v1932
    %1992 = vmatprep.subr.mxu0 0.0
    %1993 = vmatpush1.msra.mxu0 %v1933
    %1994 = vmatprep.subr.mxu0 0.0
    %1995 = vmatpush1.msra.mxu0 %v1938
    %1996 = vmatprep.subr.mxu0 0.0
    %1997 = vmatpush1.msra.mxu0 %v1939
    %1998 = vmatprep.subr.mxu0 0.0
    %1999 = vmatpush1.msra.mxu0 %v1944
    %2000 = vmatprep.subr.mxu0 0.0
    %2001 = vmatpush1.msra.mxu0 %v1945
    %2002 = vmatprep.subr.mxu0 0.0
    %2003 = vmatpush1.msra.mxu0 %v1912
    %2004 = vmatprep.subr.mxu0 0.0
    %2005 = vmatpush1.msra.mxu0 %v1913
    %2006 = vmatprep.subr.mxu0 0.0
    %2007 = vmatpush1.msra.mxu0 %v1950
    %2008 = vmatprep.subr.mxu0 0.0
    %2009 = vmatpush1.msra.mxu0 %v1951
    %2010 = vmatprep.subr.mxu0 0.0
    %2011 = vmatpush1.msra.mxu0 %v1956
    %2012 = vmatprep.subr.mxu0 0.0
    %2013 = vmatpush1.msra.mxu0 %v1957
    %2014 = vmatprep.subr.mxu0 0.0
    %2015 = vmatpush1.msra.mxu0 %v1962
    %2016 = vmatprep.subr.mxu0 0.0
    %2017 = vmatpush1.msra.mxu0 %v1963
    %2018 = vmatprep.subr.mxu0 0.0
    %2019 = vmatpush1.msra.mxu0 %v1968
    %2020 = vmatprep.subr.mxu0 0.0
    %2021 = vmatpush1.msra.mxu0 %v1969
    %2022 = vmatprep.subr.mxu0 0.0
    %2023 = vmatpush1.msra.mxu0 0.0
    %2024 = vmatprep.subr.mxu0 0.0
    %2025 = vmatpush1.msra.mxu0 0.0
    %2026 = vmatprep.subr.mxu0 0.0
    %2027 = vmatpush1.msra.mxu0 0.0
    %2028 = vmatprep.subr.mxu0 0.0
    %2029 = vmatpush1.msra.mxu0 0.0
    %2030 = vmatprep.subr.mxu0 0.0
    %2031 = vmatpush1.msra.mxu0 0.0
    %2032 = vmatprep.subr.mxu0 0.0
    %2033 = vmatpush1.msra.mxu0 0.0
    %2034 = vmatprep.subr.mxu0 0.0
    %2035 = vmatpush1.msra.mxu0 0.0
    %2036 = vmatprep.subr.mxu0 0.0
    %2037 = vmatpush1.msra.mxu0 0.0
    %2038 = vmatprep.subr.mxu0 0.0
    %2039 = vmatpush1.msra.mxu0 0.0
    %2040 = vmatprep.subr.mxu0 0.0
    %2041 = vmatpush1.msra.mxu0 0.0
    %2042 = vmatprep.subr.mxu0 0.0
    %2043 = vmatpush1.msra.mxu0 0.0
    %2044 = vmatprep.subr.mxu0 0.0
    %2045 = vmatpush1.msra.mxu0 0.0
    %2046 = vmatprep.subr.mxu0 0.0
    %2047 = vmatpush1.msra.mxu0 0.0
    %2048 = vmatprep.subr.mxu0 0.0
    %2049 = vmatpush1.msra.mxu0 0.0
    %2050 = vmatprep.mubr.f32.mxu0 %v1981
    %2051 = vmatmul.mubr.f32.gmra.mrb[0].mxu0 %v1915
    %v2052 = vpop.f32.mrb[0].mxu0
    %v2053 = vadd.f32 %v1973, %v2052
    %v2054 = vpop.f32.mrb[0].mxu0
    %2055 = vmatprep.mubr.f32.mxu0 %v1984
    %2056 = vmatmul.mubr.f32.gmra.mrb[0].mxu0 %v1917
    %v2057 = vpop.f32.mrb[0].mxu0
    %v2058 = vadd.f32 %v1978, %v2057
    %v2059 = vpop.f32.mrb[0].mxu0
    %2060 = vdwg.mxu0
    %v2061 = vadd.f32 %v2053, %v1763
    %v2062 = vadd.f32 %v2058, %v1764
    %v2063 = vmax.f32 %v2061, 0.0
    %v2064 = vmax.f32 %v2062, 0.0
    %v2065 = vld [vmem:[#allocation7] sm:$0xff]
    %v2066 = vld [vmem:[%s7] sm:$0xff]
    %2068 = vset.pattern.permute.xlu0 0
    %2069 = vperm.xlu0 %2068, %v2066
    %v2070 = vpop.permute.xlu0 %2069
    %v2073 = vsel %vm1530, %v2065, 0
    %2075 = vmatprep.subr.mxu0 0.0
    %2076 = vmatpush1.msra.mxu0 %v2063
    %2077 = vmatprep.subr.mxu0 0.0
    %2078 = vmatpush1.msra.mxu0 %v2064
    %2079 = vmatprep.subr.mxu0 0.0
    %2080 = vmatpush1.msra.mxu0 0.0
    %2081 = vmatprep.subr.mxu0 0.0
    %2082 = vmatpush1.msra.mxu0 0.0
    %2083 = vmatprep.subr.mxu0 0.0
    %2084 = vmatpush1.msra.mxu0 0.0
    %2085 = vmatprep.subr.mxu0 0.0
    %2086 = vmatpush1.msra.mxu0 0.0
    %2087 = vmatprep.subr.mxu0 0.0
    %2088 = vmatpush1.msra.mxu0 0.0
    %2089 = vmatprep.subr.mxu0 0.0
    %2090 = vmatpush1.msra.mxu0 0.0
    %2091 = vmatprep.subr.mxu0 0.0
    %2092 = vmatpush1.msra.mxu0 0.0
    %2093 = vmatprep.subr.mxu0 0.0
    %2094 = vmatpush1.msra.mxu0 0.0
    %2095 = vmatprep.subr.mxu0 0.0
    %2096 = vmatpush1.msra.mxu0 0.0
    %2097 = vmatprep.subr.mxu0 0.0
    %2098 = vmatpush1.msra.mxu0 0.0
    %2099 = vmatprep.subr.mxu0 0.0
    %2100 = vmatpush1.msra.mxu0 0.0
    %2101 = vmatprep.subr.mxu0 0.0
    %2102 = vmatpush1.msra.mxu0 0.0
    %2103 = vmatprep.subr.mxu0 0.0
    %2104 = vmatpush1.msra.mxu0 0.0
    %2105 = vmatprep.subr.mxu0 0.0
    %2106 = vmatpush1.msra.mxu0 0.0
    %2107 = vmatprep.subr.mxu0 0.0
    %2108 = vmatpush1.msra.mxu0 0.0
    %2109 = vmatprep.subr.mxu0 0.0
    %2110 = vmatpush1.msra.mxu0 0.0
    %2111 = vmatprep.subr.mxu0 0.0
    %2112 = vmatpush1.msra.mxu0 0.0
    %2113 = vmatprep.subr.mxu0 0.0
    %2114 = vmatpush1.msra.mxu0 0.0
    %2115 = vmatprep.subr.mxu0 0.0
    %2116 = vmatpush1.msra.mxu0 0.0
    %2117 = vmatprep.subr.mxu0 0.0
    %2118 = vmatpush1.msra.mxu0 0.0
    %2119 = vmatprep.subr.mxu0 0.0
    %2120 = vmatpush1.msra.mxu0 0.0
    %2121 = vmatprep.subr.mxu0 0.0
    %2122 = vmatpush1.msra.mxu0 0.0
    %2123 = vmatprep.subr.mxu0 0.0
    %2124 = vmatpush1.msra.mxu0 0.0
    %2125 = vmatprep.subr.mxu0 0.0
    %2126 = vmatpush1.msra.mxu0 0.0
    %2127 = vmatprep.subr.mxu0 0.0
    %2128 = vmatpush1.msra.mxu0 0.0
    %2129 = vmatprep.subr.mxu0 0.0
    %2130 = vmatpush1.msra.mxu0 0.0
    %2131 = vmatprep.subr.mxu0 0.0
    %2132 = vmatpush1.msra.mxu0 0.0
    %2133 = vmatprep.subr.mxu0 0.0
    %2134 = vmatpush1.msra.mxu0 0.0
    %2135 = vmatprep.subr.mxu0 0.0
    %2136 = vmatpush1.msra.mxu0 0.0
    %2137 = vmatprep.subr.mxu0 0.0
    %2138 = vmatpush1.msra.mxu0 0.0
    %2139 = vmatprep.mubr.f32.mxu0 0.0
    %2140 = vmatmul.mubr.f32.gmra.mrb[0].mxu0 %v2073
    %v2141 = vpop.f32.mrb[0].mxu0
    %v2142 = vadd.f32 %v2070, %v2141
    %v2143 = vpop.f32.mrb[0].mxu0
    %2144 = vdwg.mxu0
    %v2145 = vld [vmem:[#allocation8] sm:$0xff]
    %v2146 = vld [vmem:[#allocation8 + $0x8] sm:$0xff]
    %v2147 = vld [vmem:[#allocation8 + $0x10] sm:$0xff]
    %v2148 = vld [vmem:[#allocation8 + $0x18] sm:$0xff]
    %v2149 = vld [vmem:[#allocation8 + $0x20] sm:$0xff]
    %v2150 = vld [vmem:[#allocation8 + $0x28] sm:$0xff]
    %v2151 = vld [vmem:[#allocation8 + $0x30] sm:$0xff]
    %v2152 = vld [vmem:[#allocation8 + $0x38] sm:$0xff]
    %v2153 = vld [vmem:[#allocation8 + $0x40] sm:$0xff]
    %v2154 = vld [vmem:[#allocation8 + $0x48] sm:$0xff]
    %v2155 = vld [vmem:[#allocation8 + $0x50] sm:$0xff]
    %v2156 = vld [vmem:[#allocation8 + $0x58] sm:$0xff]
    %v2157 = vld [vmem:[#allocation8 + $0x60] sm:$0xff]
    %v2158 = vld [vmem:[#allocation8 + $0x68] sm:$0xff]
    %v2159 = vld [vmem:[#allocation8 + $0x70] sm:$0xff]
    %v2160 = vld [vmem:[#allocation8 + $0x78] sm:$0xff]
    %v2161 = vld [vmem:[#allocation8 + $0x80] sm:$0xff]
    %v2162 = vld [vmem:[#allocation8 + $0x88] sm:$0xff]
    %v2163 = vld [vmem:[#allocation8 + $0x90] sm:$0xff]
    %v2164 = vld [vmem:[#allocation8 + $0x98] sm:$0xff]
    %v2165 = vld [vmem:[#allocation8 + $0xa0] sm:$0xff]
    %v2166 = vld [vmem:[#allocation8 + $0xa8] sm:$0xff]
    %v2167 = vld [vmem:[#allocation8 + $0xb0] sm:$0xff]
    %v2168 = vld [vmem:[#allocation8 + $0xb8] sm:$0xff]
    %v2169 = vld [vmem:[#allocation8 + $0xc0] sm:$0xff]
    %v2170 = vld [vmem:[#allocation8 + $0xc8] sm:$0xff]
    %v2171 = vld [vmem:[#allocation8 + $0xd0] sm:$0xff]
    %v2172 = vld [vmem:[#allocation8 + $0xd8] sm:$0xff]
    %v2173 = vld [vmem:[#allocation8 + $0xe0] sm:$0xff]
    %v2174 = vld [vmem:[#allocation8 + $0xe8] sm:$0xff]
    %v2175 = vld [vmem:[#allocation8 + $0xf0] sm:$0xff]
    %v2176 = vld [vmem:[#allocation8 + $0xf8] sm:$0xff]
    %v2177 = vld [vmem:[#allocation8 + $0x100] sm:$0xff]
    %v2178 = vld [vmem:[#allocation8 + $0x108] sm:$0xff]
    %v2179 = vld [vmem:[#allocation8 + $0x110] sm:$0xff]
    %v2180 = vld [vmem:[#allocation8 + $0x118] sm:$0xff]
    %v2181 = vld [vmem:[#allocation8 + $0x120] sm:$0xff]
    %v2182 = vld [vmem:[#allocation8 + $0x128] sm:$0xff]
    %v2183 = vld [vmem:[#allocation8 + $0x130] sm:$0xff]
    %v2184 = vld [vmem:[#allocation8 + $0x138] sm:$0xff]
    %v2185 = vld [vmem:[#allocation8 + $0x140] sm:$0xff]
    %v2186 = vld [vmem:[#allocation8 + $0x148] sm:$0xff]
    %v2187 = vld [vmem:[#allocation8 + $0x150] sm:$0xff]
    %v2188 = vld [vmem:[#allocation8 + $0x158] sm:$0xff]
    %v2189 = vld [vmem:[#allocation8 + $0x160] sm:$0xff]
    %v2190 = vld [vmem:[#allocation8 + $0x168] sm:$0xff]
    %v2191 = vld [vmem:[#allocation8 + $0x170] sm:$0xff]
    %v2192 = vld [vmem:[#allocation8 + $0x178] sm:$0xff]
    %v2193 = vld [vmem:[#allocation8 + $0x180] sm:$0xff]
    %v2194 = vld [vmem:[#allocation8 + $0x188] sm:$0xff]
    %v2195 = vld [vmem:[#allocation8 + $0x190] sm:$0xff]
    %v2196 = vld [vmem:[#allocation8 + $0x198] sm:$0xff]
    %v2197 = vld [vmem:[#allocation8 + $0x1a0] sm:$0xff]
    %v2198 = vld [vmem:[#allocation8 + $0x1a8] sm:$0xff]
    %v2199 = vld [vmem:[#allocation8 + $0x1b0] sm:$0xff]
    %v2200 = vld [vmem:[#allocation8 + $0x1b8] sm:$0xff]
    %v2201 = vld [vmem:[#allocation8 + $0x1c0] sm:$0xff]
    %v2202 = vld [vmem:[#allocation8 + $0x1c8] sm:$0xff]
    %v2203 = vld [vmem:[#allocation8 + $0x1d0] sm:$0xff]
    %v2204 = vld [vmem:[#allocation8 + $0x1d8] sm:$0xff]
    %v2205 = vld [vmem:[#allocation8 + $0x1e0] sm:$0xff]
    %v2206 = vld [vmem:[#allocation8 + $0x1e8] sm:$0xff]
    %v2207 = vld [vmem:[#allocation8 + $0x1f0] sm:$0xff]
    %v2208 = vld [vmem:[#allocation8 + $0x1f8] sm:$0xff]
    %2209 = vmatprep.subr.mxu0 %v2146
    %2210 = vmatpush1.msra.mxu0 %v2145
    %2211 = vmatprep.subr.mxu0 %v2150
    %2212 = vmatpush1.msra.mxu0 %v2149
    %2213 = vmatprep.subr.mxu0 %v2154
    %2214 = vmatpush1.msra.mxu0 %v2153
    %2215 = vmatprep.subr.mxu0 %v2158
    %2216 = vmatpush1.msra.mxu0 %v2157
    %2217 = vmatprep.subr.mxu0 %v2162
    %2218 = vmatpush1.msra.mxu0 %v2161
    %2219 = vmatprep.subr.mxu0 %v2166
    %2220 = vmatpush1.msra.mxu0 %v2165
    %2221 = vmatprep.subr.mxu0 %v2170
    %2222 = vmatpush1.msra.mxu0 %v2169
    %2223 = vmatprep.subr.mxu0 %v2174
    %2224 = vmatpush1.msra.mxu0 %v2173
    %2225 = vmatprep.subr.mxu0 %v2178
    %2226 = vmatpush1.msra.mxu0 %v2177
    %2227 = vmatprep.subr.mxu0 %v2182
    %2228 = vmatpush1.msra.mxu0 %v2181
    %2229 = vmatprep.subr.mxu0 %v2186
    %2230 = vmatpush1.msra.mxu0 %v2185
    %2231 = vmatprep.subr.mxu0 %v2190
    %2232 = vmatpush1.msra.mxu0 %v2189
    %2233 = vmatprep.subr.mxu0 %v2194
    %2234 = vmatpush1.msra.mxu0 %v2193
    %2235 = vmatprep.subr.mxu0 %v2198
    %2236 = vmatpush1.msra.mxu0 %v2197
    %2237 = vmatprep.subr.mxu0 %v2202
    %2238 = vmatpush1.msra.mxu0 %v2201
    %2239 = vmatprep.subr.mxu0 %v2206
    %2240 = vmatpush1.msra.mxu0 %v2205
    %2241 = vmatprep.subr.mxu0 0.0
    %2242 = vmatpush1.msra.mxu0 0.0
    %2243 = vmatprep.subr.mxu0 0.0
    %2244 = vmatpush1.msra.mxu0 0.0
    %2245 = vmatprep.subr.mxu0 0.0
    %2246 = vmatpush1.msra.mxu0 0.0
    %2247 = vmatprep.subr.mxu0 0.0
    %2248 = vmatpush1.msra.mxu0 0.0
    %2249 = vmatprep.subr.mxu0 0.0
    %2250 = vmatpush1.msra.mxu0 0.0
    %2251 = vmatprep.subr.mxu0 0.0
    %2252 = vmatpush1.msra.mxu0 0.0
    %2253 = vmatprep.subr.mxu0 0.0
    %2254 = vmatpush1.msra.mxu0 0.0
    %2255 = vmatprep.subr.mxu0 0.0
    %2256 = vmatpush1.msra.mxu0 0.0
    %2257 = vmatprep.subr.mxu0 0.0
    %2258 = vmatpush1.msra.mxu0 0.0
    %2259 = vmatprep.subr.mxu0 0.0
    %2260 = vmatpush1.msra.mxu0 0.0
    %2261 = vmatprep.subr.mxu0 0.0
    %2262 = vmatpush1.msra.mxu0 0.0
    %2263 = vmatprep.subr.mxu0 0.0
    %2264 = vmatpush1.msra.mxu0 0.0
    %2265 = vmatprep.subr.mxu0 0.0
    %2266 = vmatpush1.msra.mxu0 0.0
    %2267 = vmatprep.subr.mxu0 0.0
    %2268 = vmatpush1.msra.mxu0 0.0
    %2269 = vmatprep.subr.mxu0 0.0
    %2270 = vmatpush1.msra.mxu0 0.0
    %2271 = vmatprep.subr.mxu0 0.0
    %2272 = vmatpush1.msra.mxu0 0.0
    %2273 = vmatprep.mubr.f32.mxu0 0.0
    %2274 = vmatmul.mubr.f32.gmra.mrb[0].mxu0 %v2142
    %v2275 = vpop.f32.mrb[0].mxu0
    %v2276 = vadd.f32 0.0, %v2275
    %v2277 = vpop.f32.mrb[0].mxu0
    %v2278 = vadd.f32 0.0, %v2277
    %2279 = vdwg.mxu0
    %2280 = vmatprep.subr.mxu0 %v2148
    %2281 = vmatpush1.msra.mxu0 %v2147
    %2282 = vmatprep.subr.mxu0 %v2152
    %2283 = vmatpush1.msra.mxu0 %v2151
    %2284 = vmatprep.subr.mxu0 %v2156
    %2285 = vmatpush1.msra.mxu0 %v2155
    %2286 = vmatprep.subr.mxu0 %v2160
    %2287 = vmatpush1.msra.mxu0 %v2159
    %2288 = vmatprep.subr.mxu0 %v2164
    %2289 = vmatpush1.msra.mxu0 %v2163
    %2290 = vmatprep.subr.mxu0 %v2168
    %2291 = vmatpush1.msra.mxu0 %v2167
    %2292 = vmatprep.subr.mxu0 %v2172
    %2293 = vmatpush1.msra.mxu0 %v2171
    %2294 = vmatprep.subr.mxu0 %v2176
    %2295 = vmatpush1.msra.mxu0 %v2175
    %2296 = vmatprep.subr.mxu0 %v2180
    %2297 = vmatpush1.msra.mxu0 %v2179
    %2298 = vmatprep.subr.mxu0 %v2184
    %2299 = vmatpush1.msra.mxu0 %v2183
    %2300 = vmatprep.subr.mxu0 %v2188
    %2301 = vmatpush1.msra.mxu0 %v2187
    %2302 = vmatprep.subr.mxu0 %v2192
    %2303 = vmatpush1.msra.mxu0 %v2191
    %2304 = vmatprep.subr.mxu0 %v2196
    %2305 = vmatpush1.msra.mxu0 %v2195
    %2306 = vmatprep.subr.mxu0 %v2200
    %2307 = vmatpush1.msra.mxu0 %v2199
    %2308 = vmatprep.subr.mxu0 %v2204
    %2309 = vmatpush1.msra.mxu0 %v2203
    %2310 = vmatprep.subr.mxu0 %v2208
    %2311 = vmatpush1.msra.mxu0 %v2207
    %2312 = vmatprep.subr.mxu0 0.0
    %2313 = vmatpush1.msra.mxu0 0.0
    %2314 = vmatprep.subr.mxu0 0.0
    %2315 = vmatpush1.msra.mxu0 0.0
    %2316 = vmatprep.subr.mxu0 0.0
    %2317 = vmatpush1.msra.mxu0 0.0
    %2318 = vmatprep.subr.mxu0 0.0
    %2319 = vmatpush1.msra.mxu0 0.0
    %2320 = vmatprep.subr.mxu0 0.0
    %2321 = vmatpush1.msra.mxu0 0.0
    %2322 = vmatprep.subr.mxu0 0.0
    %2323 = vmatpush1.msra.mxu0 0.0
    %2324 = vmatprep.subr.mxu0 0.0
    %2325 = vmatpush1.msra.mxu0 0.0
    %2326 = vmatprep.subr.mxu0 0.0
    %2327 = vmatpush1.msra.mxu0 0.0
    %2328 = vmatprep.subr.mxu0 0.0
    %2329 = vmatpush1.msra.mxu0 0.0
    %2330 = vmatprep.subr.mxu0 0.0
    %2331 = vmatpush1.msra.mxu0 0.0
    %2332 = vmatprep.subr.mxu0 0.0
    %2333 = vmatpush1.msra.mxu0 0.0
    %2334 = vmatprep.subr.mxu0 0.0
    %2335 = vmatpush1.msra.mxu0 0.0
    %2336 = vmatprep.subr.mxu0 0.0
    %2337 = vmatpush1.msra.mxu0 0.0
    %2338 = vmatprep.subr.mxu0 0.0
    %2339 = vmatpush1.msra.mxu0 0.0
    %2340 = vmatprep.subr.mxu0 0.0
    %2341 = vmatpush1.msra.mxu0 0.0
    %2342 = vmatprep.subr.mxu0 0.0
    %2343 = vmatpush1.msra.mxu0 0.0
    %2344 = vmatprep.mubr.f32.mxu0 0.0
    %2345 = vmatmul.mubr.f32.gmra.mrb[0].mxu0 %v2142
    %v2346 = vpop.f32.mrb[0].mxu0
    %v2347 = vadd.f32 0.0, %v2346
    %v2348 = vpop.f32.mrb[0].mxu0
    %v2349 = vadd.f32 0.0, %v2348
    %2350 = vdwg.mxu0
    %v2351 = vadd.f32 %v1428, %v2276
    %v2352 = vadd.f32 %v1429, %v2278
    %v2353 = vadd.f32 %v1430, %v2347
    %v2354 = vadd.f32 %v1431, %v2349
    %v2355 = vmax.f32 %v2351, 0.0
    %v2356 = vmax.f32 %v2352, 0.0
    %v2357 = vmax.f32 %v2353, 0.0
    %v2358 = vmax.f32 %v2354, 0.0
    %2359 = vst [vmem:[#allocation13] sm:$0xff] %v2355
    %2360 = vst [vmem:[#allocation13 + $0x8] sm:$0xff] %v2356
    %2361 = vst [vmem:[#allocation13 + $0x10] sm:$0xff] %v2357
    %2362 = vst [vmem:[#allocation13 + $0x18] sm:$0xff] %v2358
    %v2363 = vld [vmem:[%s8] sm:$0xff]
    %v2364 = vld [vmem:[%s8 + $0x8] sm:$0xff]
    %v2365 = vld [vmem:[%s9] sm:$0xff]
    %v2366 = vld [vmem:[%s9 + $0x8] sm:$0xff]
    %2367 = vrot.lane.b32.xlu0 %v1428, 17
    %v2368 = vpop.permute.xlu0 %2367
    %2369 = vrot.lane.b32.xlu0 %v1429, 17
    %v2370 = vpop.permute.xlu0 %2369
    %2371 = vrot.lane.b32.xlu0 %v1430, 17
    %v2372 = vpop.permute.xlu0 %2371
    %2373 = vrot.lane.b32.xlu0 %v1431, 17
    %v2374 = vpop.permute.xlu0 %2373
    %v2375 = vsel %vm155, %v2372, %v2374
    %v2376 = vsel %vm155, %v2370, %v2372
    %v2377 = vsel %vm155, %v2368, %v2370
    %v2378 = vsel %vm155, %v2374, %v2368
    %v2379 = vmul.f32 %v2378, %v163
    %v2380 = vmul.f32 %v2377, %v167
    %v2381 = vmul.f32 %v2376, %v171
    %v2382 = vmul.f32 %v2375, %v175
    %2383 = vrot.lane.b32.xlu0 %v1428, 16
    %v2384 = vpop.permute.xlu0 %2383
    %2385 = vrot.lane.b32.xlu0 %v1429, 16
    %v2386 = vpop.permute.xlu0 %2385
    %2387 = vrot.lane.b32.xlu0 %v1430, 16
    %v2388 = vpop.permute.xlu0 %2387
    %2389 = vrot.lane.b32.xlu0 %v1431, 16
    %v2390 = vpop.permute.xlu0 %2389
    %v2391 = vsel %vm188, %v2388, %v2390
    %v2392 = vsel %vm188, %v2386, %v2388
    %v2393 = vsel %vm188, %v2384, %v2386
    %v2394 = vsel %vm188, %v2390, %v2384
    %v2395 = vmul.f32 %v2394, %v196
    %v2396 = vmul.f32 %v2393, %v200
    %v2397 = vmul.f32 %v2392, %v204
    %v2398 = vmul.f32 %v2391, %v208
    %2399 = vrot.lane.b32.xlu0 %v1428, 15
    %v2400 = vpop.permute.xlu0 %2399
    %2401 = vrot.lane.b32.xlu0 %v1429, 15
    %v2402 = vpop.permute.xlu0 %2401
    %2403 = vrot.lane.b32.xlu0 %v1430, 15
    %v2404 = vpop.permute.xlu0 %2403
    %2405 = vrot.lane.b32.xlu0 %v1431, 15
    %v2406 = vpop.permute.xlu0 %2405
    %v2407 = vsel %vm221, %v2404, %v2406
    %v2408 = vsel %vm221, %v2402, %v2404
    %v2409 = vsel %vm221, %v2400, %v2402
    %v2410 = vsel %vm221, %v2406, %v2400
    %v2411 = vmul.f32 %v2410, %v229
    %v2412 = vmul.f32 %v2409, %v233
    %v2413 = vmul.f32 %v2408, %v237
    %v2414 = vmul.f32 %v2407, %v241
    %2415 = vrot.lane.b32.xlu0 %v1428, 1
    %v2416 = vpop.permute.xlu0 %2415
    %2417 = vrot.lane.b32.xlu0 %v1429, 1
    %v2418 = vpop.permute.xlu0 %2417
    %2419 = vrot.lane.b32.xlu0 %v1430, 1
    %v2420 = vpop.permute.xlu0 %2419
    %2421 = vrot.lane.b32.xlu0 %v1431, 1
    %v2422 = vpop.permute.xlu0 %2421
    %v2423 = vsel %vm254, %v2420, %v2422
    %v2424 = vsel %vm254, %v2418, %v2420
    %v2425 = vsel %vm254, %v2416, %v2418
    %v2426 = vsel %vm254, %v2422, %v2416
    %v2427 = vmul.f32 %v2426, %v262
    %v2428 = vmul.f32 %v2425, %v266
    %v2429 = vmul.f32 %v2424, %v270
    %v2430 = vmul.f32 %v2423, %v274
    %2431 = vrot.lane.b32.xlu0 %v1428, 127
    %v2432 = vpop.permute.xlu0 %2431
    %2433 = vrot.lane.b32.xlu0 %v1429, 127
    %v2434 = vpop.permute.xlu0 %2433
    %2435 = vrot.lane.b32.xlu0 %v1430, 127
    %v2436 = vpop.permute.xlu0 %2435
    %2437 = vrot.lane.b32.xlu0 %v1431, 127
    %v2438 = vpop.permute.xlu0 %2437
    %v2439 = vsel %vm287, %v2436, %v2438
    %v2440 = vsel %vm287, %v2434, %v2436
    %v2441 = vsel %vm287, %v2432, %v2434
    %v2442 = vsel %vm287, %v2438, %v2432
    %v2443 = vmul.f32 %v2441, %v295
    %v2444 = vmul.f32 %v2440, %v299
    %v2445 = vmul.f32 %v2439, %v303
    %v2446 = vmul.f32 %v2442, %v307
    %2447 = vrot.lane.b32.xlu0 %v1428, 113
    %v2448 = vpop.permute.xlu0 %2447
    %2449 = vrot.lane.b32.xlu0 %v1429, 113
    %v2450 = vpop.permute.xlu0 %2449
    %2451 = vrot.lane.b32.xlu0 %v1430, 113
    %v2452 = vpop.permute.xlu0 %2451
    %2453 = vrot.lane.b32.xlu0 %v1431, 113
    %v2454 = vpop.permute.xlu0 %2453
    %v2455 = vsel %vm320, %v2452, %v2454
    %v2456 = vsel %vm320, %v2450, %v2452
    %v2457 = vsel %vm320, %v2448, %v2450
    %v2458 = vsel %vm320, %v2454, %v2448
    %v2459 = vmul.f32 %v2457, %v328
    %v2460 = vmul.f32 %v2456, %v332
    %v2461 = vmul.f32 %v2455, %v336
    %v2462 = vmul.f32 %v2458, %v340
    %2463 = vrot.lane.b32.xlu0 %v1428, 112
    %v2464 = vpop.permute.xlu0 %2463
    %2465 = vrot.lane.b32.xlu0 %v1429, 112
    %v2466 = vpop.permute.xlu0 %2465
    %2467 = vrot.lane.b32.xlu0 %v1430, 112
    %v2468 = vpop.permute.xlu0 %2467
    %2469 = vrot.lane.b32.xlu0 %v1431, 112
    %v2470 = vpop.permute.xlu0 %2469
    %v2471 = vsel %vm353, %v2468, %v2470
    %v2472 = vsel %vm353, %v2466, %v2468
    %v2473 = vsel %vm353, %v2464, %v2466
    %v2474 = vsel %vm353, %v2470, %v2464
    %v2475 = vmul.f32 %v2473, %v361
    %v2476 = vmul.f32 %v2472, %v365
    %v2477 = vmul.f32 %v2471, %v369
    %v2478 = vmul.f32 %v2474, %v373
    %2479 = vrot.lane.b32.xlu0 %v1428, 111
    %v2480 = vpop.permute.xlu0 %2479
    %2481 = vrot.lane.b32.xlu0 %v1429, 111
    %v2482 = vpop.permute.xlu0 %2481
    %2483 = vrot.lane.b32.xlu0 %v1430, 111
    %v2484 = vpop.permute.xlu0 %2483
    %2485 = vrot.lane.b32.xlu0 %v1431, 111
    %v2486 = vpop.permute.xlu0 %2485
    %v2487 = vsel %vm386, %v2484, %v2486
    %v2488 = vsel %vm386, %v2482, %v2484
    %v2489 = vsel %vm386, %v2480, %v2482
    %v2490 = vsel %vm386, %v2486, %v2480
    %v2491 = vmul.f32 %v2489, %v394
    %v2492 = vmul.f32 %v2488, %v398
    %v2493 = vmul.f32 %v2487, %v402
    %v2494 = vmul.f32 %v2490, %v406
    %2496 = vset.pattern.permute.xlu0 0
    %2497 = vperm.xlu0 %2496, %v2365
    %v2498 = vpop.permute.xlu0 %2497
    %2501 = vset.pattern.permute.xlu0 0
    %2502 = vperm.xlu0 %2501, %v2366
    %v2503 = vpop.permute.xlu0 %2502
    %v2506 = vsel %vm416, %v2363, 0
    %v2509 = vsel %vm416, %v2364, 0
    %2511 = vmatprep.subr.mxu0 %v2380
    %2512 = vmatpush1.msra.mxu0 %v2379
    %2513 = vmatprep.subr.mxu0 %v2396
    %2514 = vmatpush1.msra.mxu0 %v2395
    %2515 = vmatprep.subr.mxu0 %v2412
    %2516 = vmatpush1.msra.mxu0 %v2411
    %2517 = vmatprep.subr.mxu0 %v2428
    %2518 = vmatpush1.msra.mxu0 %v2427
    %2519 = vmatprep.subr.mxu0 %v1429
    %2520 = vmatpush1.msra.mxu0 %v1428
    %2521 = vmatprep.subr.mxu0 %v2444
    %2522 = vmatpush1.msra.mxu0 %v2443
    %2523 = vmatprep.subr.mxu0 %v2460
    %2524 = vmatpush1.msra.mxu0 %v2459
    %2525 = vmatprep.subr.mxu0 %v2476
    %2526 = vmatpush1.msra.mxu0 %v2475
    %2527 = vmatprep.subr.mxu0 %v2492
    %2528 = vmatpush1.msra.mxu0 %v2491
    %2529 = vmatprep.subr.mxu0 0.0
    %2530 = vmatpush1.msra.mxu0 0.0
    %2531 = vmatprep.subr.mxu0 0.0
    %2532 = vmatpush1.msra.mxu0 0.0
    %2533 = vmatprep.subr.mxu0 0.0
    %2534 = vmatpush1.msra.mxu0 0.0
    %2535 = vmatprep.subr.mxu0 0.0
    %2536 = vmatpush1.msra.mxu0 0.0
    %2537 = vmatprep.subr.mxu0 0.0
    %2538 = vmatpush1.msra.mxu0 0.0
    %2539 = vmatprep.subr.mxu0 0.0
    %2540 = vmatpush1.msra.mxu0 0.0
    %2541 = vmatprep.subr.mxu0 0.0
    %2542 = vmatpush1.msra.mxu0 0.0
    %2543 = vmatprep.subr.mxu0 0.0
    %2544 = vmatpush1.msra.mxu0 0.0
    %2545 = vmatprep.subr.mxu0 0.0
    %2546 = vmatpush1.msra.mxu0 0.0
    %2547 = vmatprep.subr.mxu0 0.0
    %2548 = vmatpush1.msra.mxu0 0.0
    %2549 = vmatprep.subr.mxu0 0.0
    %2550 = vmatpush1.msra.mxu0 0.0
    %2551 = vmatprep.subr.mxu0 0.0
    %2552 = vmatpush1.msra.mxu0 0.0
    %2553 = vmatprep.subr.mxu0 0.0
    %2554 = vmatpush1.msra.mxu0 0.0
    %2555 = vmatprep.subr.mxu0 0.0
    %2556 = vmatpush1.msra.mxu0 0.0
    %2557 = vmatprep.subr.mxu0 0.0
    %2558 = vmatpush1.msra.mxu0 0.0
    %2559 = vmatprep.subr.mxu0 0.0
    %2560 = vmatpush1.msra.mxu0 0.0
    %2561 = vmatprep.subr.mxu0 0.0
    %2562 = vmatpush1.msra.mxu0 0.0
    %2563 = vmatprep.subr.mxu0 0.0
    %2564 = vmatpush1.msra.mxu0 0.0
    %2565 = vmatprep.subr.mxu0 0.0
    %2566 = vmatpush1.msra.mxu0 0.0
    %2567 = vmatprep.subr.mxu0 0.0
    %2568 = vmatpush1.msra.mxu0 0.0
    %2569 = vmatprep.subr.mxu0 0.0
    %2570 = vmatpush1.msra.mxu0 0.0
    %2571 = vmatprep.subr.mxu0 0.0
    %2572 = vmatpush1.msra.mxu0 0.0
    %2573 = vmatprep.subr.mxu0 0.0
    %2574 = vmatpush1.msra.mxu0 0.0
    %2575 = vmatprep.mubr.f32.mxu0 0.0
    %2576 = vmatmul.mubr.f32.gmra.mrb[0].mxu0 %v2506
    %v2577 = vpop.f32.mrb[0].mxu0
    %v2578 = vadd.f32 %v2498, %v2577
    %v2579 = vpop.f32.mrb[0].mxu0
    %v2580 = vadd.f32 %v2498, %v2579
    %2581 = vmatprep.mubr.f32.mxu0 0.0
    %2582 = vmatmul.mubr.f32.gmra.mrb[0].mxu0 %v2509
    %v2583 = vpop.f32.mrb[0].mxu0
    %v2584 = vadd.f32 %v2503, %v2583
    %v2585 = vpop.f32.mrb[0].mxu0
    %v2586 = vadd.f32 %v2503, %v2585
    %2587 = vdwg.mxu0
    %2588 = vmatprep.subr.mxu0 %v2382
    %2589 = vmatpush1.msra.mxu0 %v2381
    %2590 = vmatprep.subr.mxu0 %v2398
    %2591 = vmatpush1.msra.mxu0 %v2397
    %2592 = vmatprep.subr.mxu0 %v2414
    %2593 = vmatpush1.msra.mxu0 %v2413
    %2594 = vmatprep.subr.mxu0 %v2430
    %2595 = vmatpush1.msra.mxu0 %v2429
    %2596 = vmatprep.subr.mxu0 %v1431
    %2597 = vmatpush1.msra.mxu0 %v1430
    %2598 = vmatprep.subr.mxu0 %v2446
    %2599 = vmatpush1.msra.mxu0 %v2445
    %2600 = vmatprep.subr.mxu0 %v2462
    %2601 = vmatpush1.msra.mxu0 %v2461
    %2602 = vmatprep.subr.mxu0 %v2478
    %2603 = vmatpush1.msra.mxu0 %v2477
    %2604 = vmatprep.subr.mxu0 %v2494
    %2605 = vmatpush1.msra.mxu0 %v2493
    %2606 = vmatprep.subr.mxu0 0.0
    %2607 = vmatpush1.msra.mxu0 0.0
    %2608 = vmatprep.subr.mxu0 0.0
    %2609 = vmatpush1.msra.mxu0 0.0
    %2610 = vmatprep.subr.mxu0 0.0
    %2611 = vmatpush1.msra.mxu0 0.0
    %2612 = vmatprep.subr.mxu0 0.0
    %2613 = vmatpush1.msra.mxu0 0.0
    %2614 = vmatprep.subr.mxu0 0.0
    %2615 = vmatpush1.msra.mxu0 0.0
    %2616 = vmatprep.subr.mxu0 0.0
    %2617 = vmatpush1.msra.mxu0 0.0
    %2618 = vmatprep.subr.mxu0 0.0
    %2619 = vmatpush1.msra.mxu0 0.0
    %2620 = vmatprep.subr.mxu0 0.0
    %2621 = vmatpush1.msra.mxu0 0.0
    %2622 = vmatprep.subr.mxu0 0.0
    %2623 = vmatpush1.msra.mxu0 0.0
    %2624 = vmatprep.subr.mxu0 0.0
    %2625 = vmatpush1.msra.mxu0 0.0
    %2626 = vmatprep.subr.mxu0 0.0
    %2627 = vmatpush1.msra.mxu0 0.0
    %2628 = vmatprep.subr.mxu0 0.0
    %2629 = vmatpush1.msra.mxu0 0.0
    %2630 = vmatprep.subr.mxu0 0.0
    %2631 = vmatpush1.msra.mxu0 0.0
    %2632 = vmatprep.subr.mxu0 0.0
    %2633 = vmatpush1.msra.mxu0 0.0
    %2634 = vmatprep.subr.mxu0 0.0
    %2635 = vmatpush1.msra.mxu0 0.0
    %2636 = vmatprep.subr.mxu0 0.0
    %2637 = vmatpush1.msra.mxu0 0.0
    %2638 = vmatprep.subr.mxu0 0.0
    %2639 = vmatpush1.msra.mxu0 0.0
    %2640 = vmatprep.subr.mxu0 0.0
    %2641 = vmatpush1.msra.mxu0 0.0
    %2642 = vmatprep.subr.mxu0 0.0
    %2643 = vmatpush1.msra.mxu0 0.0
    %2644 = vmatprep.subr.mxu0 0.0
    %2645 = vmatpush1.msra.mxu0 0.0
    %2646 = vmatprep.subr.mxu0 0.0
    %2647 = vmatpush1.msra.mxu0 0.0
    %2648 = vmatprep.subr.mxu0 0.0
    %2649 = vmatpush1.msra.mxu0 0.0
    %2650 = vmatprep.subr.mxu0 0.0
    %2651 = vmatpush1.msra.mxu0 0.0
    %2652 = vmatprep.mubr.f32.mxu0 0.0
    %2653 = vmatmul.mubr.f32.gmra.mrb[0].mxu0 %v2506
    %v2654 = vpop.f32.mrb[0].mxu0
    %v2655 = vadd.f32 %v2498, %v2654
    %v2656 = vpop.f32.mrb[0].mxu0
    %v2657 = vadd.f32 %v2498, %v2656
    %2658 = vmatprep.mubr.f32.mxu0 0.0
    %2659 = vmatmul.mubr.f32.gmra.mrb[0].mxu0 %v2509
    %v2660 = vpop.f32.mrb[0].mxu0
    %v2661 = vadd.f32 %v2503, %v2660
    %v2662 = vpop.f32.mrb[0].mxu0
    %v2663 = vadd.f32 %v2503, %v2662
    %2664 = vdwg.mxu0
    %v2665 = vld [vmem:[#allocation10] sm:$0xff]
    %v2666 = vld [vmem:[#allocation10 + $0x8] sm:$0xff]
    %v2667 = vld [vmem:[#allocation10 + $0x10] sm:$0xff]
    %v2668 = vld [vmem:[#allocation10 + $0x18] sm:$0xff]
    %v2669 = vld [vmem:[#allocation10 + $0x20] sm:$0xff]
    %v2670 = vld [vmem:[#allocation10 + $0x28] sm:$0xff]
    %v2671 = vld [vmem:[#allocation10 + $0x30] sm:$0xff]
    %v2672 = vld [vmem:[#allocation10 + $0x38] sm:$0xff]
    %v2673 = vld [vmem:[#allocation10 + $0x40] sm:$0xff]
    %v2674 = vld [vmem:[#allocation10 + $0x48] sm:$0xff]
    %v2675 = vld [vmem:[#allocation10 + $0x50] sm:$0xff]
    %v2676 = vld [vmem:[#allocation10 + $0x58] sm:$0xff]
    %v2677 = vld [vmem:[#allocation10 + $0x60] sm:$0xff]
    %v2678 = vld [vmem:[#allocation10 + $0x68] sm:$0xff]
    %v2679 = vld [vmem:[#allocation10 + $0x70] sm:$0xff]
    %v2680 = vld [vmem:[#allocation10 + $0x78] sm:$0xff]
    %v2681 = vld [vmem:[#allocation10 + $0x80] sm:$0xff]
    %v2682 = vld [vmem:[#allocation10 + $0x88] sm:$0xff]
    %v2683 = vld [vmem:[#allocation10 + $0x90] sm:$0xff]
    %v2684 = vld [vmem:[#allocation10 + $0x98] sm:$0xff]
    %v2685 = vld [vmem:[#allocation10 + $0xa0] sm:$0xff]
    %v2686 = vld [vmem:[#allocation10 + $0xa8] sm:$0xff]
    %v2687 = vld [vmem:[#allocation10 + $0xb0] sm:$0xff]
    %v2688 = vld [vmem:[#allocation10 + $0xb8] sm:$0xff]
    %v2689 = vld [vmem:[#allocation10 + $0xc0] sm:$0xff]
    %v2690 = vld [vmem:[#allocation10 + $0xc8] sm:$0xff]
    %v2691 = vld [vmem:[#allocation10 + $0xd0] sm:$0xff]
    %v2692 = vld [vmem:[#allocation10 + $0xd8] sm:$0xff]
    %v2693 = vld [vmem:[#allocation10 + $0xe0] sm:$0xff]
    %v2694 = vld [vmem:[#allocation10 + $0xe8] sm:$0xff]
    %v2695 = vld [vmem:[#allocation10 + $0xf0] sm:$0xff]
    %v2696 = vld [vmem:[#allocation10 + $0xf8] sm:$0xff]
    %v2697 = vld [vmem:[#allocation10 + $0x100] sm:$0xff]
    %v2698 = vld [vmem:[#allocation10 + $0x108] sm:$0xff]
    %v2699 = vld [vmem:[#allocation10 + $0x110] sm:$0xff]
    %v2700 = vld [vmem:[#allocation10 + $0x118] sm:$0xff]
    %v2701 = vld [vmem:[#allocation10 + $0x120] sm:$0xff]
    %v2702 = vld [vmem:[#allocation10 + $0x128] sm:$0xff]
    %v2703 = vld [vmem:[#allocation10 + $0x130] sm:$0xff]
    %v2704 = vld [vmem:[#allocation10 + $0x138] sm:$0xff]
    %v2705 = vld [vmem:[#allocation10 + $0x140] sm:$0xff]
    %v2706 = vld [vmem:[#allocation10 + $0x148] sm:$0xff]
    %v2707 = vld [vmem:[#allocation10 + $0x150] sm:$0xff]
    %v2708 = vld [vmem:[#allocation10 + $0x158] sm:$0xff]
    %v2709 = vld [vmem:[#allocation10 + $0x160] sm:$0xff]
    %v2710 = vld [vmem:[#allocation10 + $0x168] sm:$0xff]
    %v2711 = vld [vmem:[#allocation10 + $0x170] sm:$0xff]
    %v2712 = vld [vmem:[#allocation10 + $0x178] sm:$0xff]
    %v2713 = vld [vmem:[#allocation10 + $0x180] sm:$0xff]
    %v2714 = vld [vmem:[#allocation10 + $0x188] sm:$0xff]
    %v2715 = vld [vmem:[#allocation10 + $0x190] sm:$0xff]
    %v2716 = vld [vmem:[#allocation10 + $0x198] sm:$0xff]
    %v2717 = vld [vmem:[#allocation10 + $0x1a0] sm:$0xff]
    %v2718 = vld [vmem:[#allocation10 + $0x1a8] sm:$0xff]
    %v2719 = vld [vmem:[#allocation10 + $0x1b0] sm:$0xff]
    %v2720 = vld [vmem:[#allocation10 + $0x1b8] sm:$0xff]
    %v2721 = vld [vmem:[#allocation10 + $0x1c0] sm:$0xff]
    %v2722 = vld [vmem:[#allocation10 + $0x1c8] sm:$0xff]
    %v2723 = vld [vmem:[#allocation10 + $0x1d0] sm:$0xff]
    %v2724 = vld [vmem:[#allocation10 + $0x1d8] sm:$0xff]
    %v2725 = vld [vmem:[#allocation10 + $0x1e0] sm:$0xff]
    %v2726 = vld [vmem:[#allocation10 + $0x1e8] sm:$0xff]
    %v2727 = vld [vmem:[#allocation10 + $0x1f0] sm:$0xff]
    %v2728 = vld [vmem:[#allocation10 + $0x1f8] sm:$0xff]
    %2729 = vmatprep.subr.mxu0 0.0
    %2730 = vmatpush1.msra.mxu0 %v2665
    %2731 = vmatprep.subr.mxu0 0.0
    %2732 = vmatpush1.msra.mxu0 %v2666
    %2733 = vmatprep.subr.mxu0 0.0
    %2734 = vmatpush1.msra.mxu0 %v2667
    %2735 = vmatprep.subr.mxu0 0.0
    %2736 = vmatpush1.msra.mxu0 %v2668
    %2737 = vmatprep.subr.mxu0 0.0
    %2738 = vmatpush1.msra.mxu0 %v2669
    %2739 = vmatprep.subr.mxu0 0.0
    %2740 = vmatpush1.msra.mxu0 %v2670
    %2741 = vmatprep.subr.mxu0 0.0
    %2742 = vmatpush1.msra.mxu0 %v2671
    %2743 = vmatprep.subr.mxu0 0.0
    %2744 = vmatpush1.msra.mxu0 %v2672
    %2745 = vmatprep.subr.mxu0 0.0
    %2746 = vmatpush1.msra.mxu0 %v2673
    %2747 = vmatprep.subr.mxu0 0.0
    %2748 = vmatpush1.msra.mxu0 %v2674
    %2749 = vmatprep.subr.mxu0 0.0
    %2750 = vmatpush1.msra.mxu0 %v2675
    %2751 = vmatprep.subr.mxu0 0.0
    %2752 = vmatpush1.msra.mxu0 %v2676
    %2753 = vmatprep.subr.mxu0 0.0
    %2754 = vmatpush1.msra.mxu0 %v2677
    %2755 = vmatprep.subr.mxu0 0.0
    %2756 = vmatpush1.msra.mxu0 %v2678
    %2757 = vmatprep.subr.mxu0 0.0
    %2758 = vmatpush1.msra.mxu0 %v2679
    %2759 = vmatprep.subr.mxu0 0.0
    %2760 = vmatpush1.msra.mxu0 %v2680
    %2761 = vmatprep.subr.mxu0 0.0
    %2762 = vmatpush1.msra.mxu0 %v2681
    %2763 = vmatprep.subr.mxu0 0.0
    %2764 = vmatpush1.msra.mxu0 %v2682
    %2765 = vmatprep.subr.mxu0 0.0
    %2766 = vmatpush1.msra.mxu0 %v2683
    %2767 = vmatprep.subr.mxu0 0.0
    %2768 = vmatpush1.msra.mxu0 %v2684
    %2769 = vmatprep.subr.mxu0 0.0
    %2770 = vmatpush1.msra.mxu0 %v2685
    %2771 = vmatprep.subr.mxu0 0.0
    %2772 = vmatpush1.msra.mxu0 %v2686
    %2773 = vmatprep.subr.mxu0 0.0
    %2774 = vmatpush1.msra.mxu0 %v2687
    %2775 = vmatprep.subr.mxu0 0.0
    %2776 = vmatpush1.msra.mxu0 %v2688
    %2777 = vmatprep.subr.mxu0 0.0
    %2778 = vmatpush1.msra.mxu0 %v2689
    %2779 = vmatprep.subr.mxu0 0.0
    %2780 = vmatpush1.msra.mxu0 %v2690
    %2781 = vmatprep.subr.mxu0 0.0
    %2782 = vmatpush1.msra.mxu0 %v2691
    %2783 = vmatprep.subr.mxu0 0.0
    %2784 = vmatpush1.msra.mxu0 %v2692
    %2785 = vmatprep.subr.mxu0 0.0
    %2786 = vmatpush1.msra.mxu0 %v2693
    %2787 = vmatprep.subr.mxu0 0.0
    %2788 = vmatpush1.msra.mxu0 %v2694
    %2789 = vmatprep.subr.mxu0 0.0
    %2790 = vmatpush1.msra.mxu0 %v2695
    %2791 = vmatprep.subr.mxu0 0.0
    %2792 = vmatpush1.msra.mxu0 %v2696
    %2793 = vmatprep.mubr.f32.mxu0 %v2580
    %2794 = vmatmul.mubr.f32.gmra.mrb[0].mxu0 %v2578
    %v2795 = vpop.f32.mrb[0].mxu0
    %v2796 = vadd.f32 %v2063, %v2795
    %v2797 = vpop.f32.mrb[0].mxu0
    %2798 = vmatprep.mubr.f32.mxu0 %v2586
    %2799 = vmatmul.mubr.f32.gmra.mrb[0].mxu0 %v2584
    %v2800 = vpop.f32.mrb[0].mxu0
    %v2801 = vadd.f32 %v2064, %v2800
    %v2802 = vpop.f32.mrb[0].mxu0
    %2803 = vdwg.mxu0
    %2804 = vmatprep.subr.mxu0 0.0
    %2805 = vmatpush1.msra.mxu0 %v2697
    %2806 = vmatprep.subr.mxu0 0.0
    %2807 = vmatpush1.msra.mxu0 %v2698
    %2808 = vmatprep.subr.mxu0 0.0
    %2809 = vmatpush1.msra.mxu0 %v2699
    %2810 = vmatprep.subr.mxu0 0.0
    %2811 = vmatpush1.msra.mxu0 %v2700
    %2812 = vmatprep.subr.mxu0 0.0
    %2813 = vmatpush1.msra.mxu0 %v2701
    %2814 = vmatprep.subr.mxu0 0.0
    %2815 = vmatpush1.msra.mxu0 %v2702
    %2816 = vmatprep.subr.mxu0 0.0
    %2817 = vmatpush1.msra.mxu0 %v2703
    %2818 = vmatprep.subr.mxu0 0.0
    %2819 = vmatpush1.msra.mxu0 %v2704
    %2820 = vmatprep.subr.mxu0 0.0
    %2821 = vmatpush1.msra.mxu0 %v2705
    %2822 = vmatprep.subr.mxu0 0.0
    %2823 = vmatpush1.msra.mxu0 %v2706
    %2824 = vmatprep.subr.mxu0 0.0
    %2825 = vmatpush1.msra.mxu0 %v2707
    %2826 = vmatprep.subr.mxu0 0.0
    %2827 = vmatpush1.msra.mxu0 %v2708
    %2828 = vmatprep.subr.mxu0 0.0
    %2829 = vmatpush1.msra.mxu0 %v2709
    %2830 = vmatprep.subr.mxu0 0.0
    %2831 = vmatpush1.msra.mxu0 %v2710
    %2832 = vmatprep.subr.mxu0 0.0
    %2833 = vmatpush1.msra.mxu0 %v2711
    %2834 = vmatprep.subr.mxu0 0.0
    %2835 = vmatpush1.msra.mxu0 %v2712
    %2836 = vmatprep.subr.mxu0 0.0
    %2837 = vmatpush1.msra.mxu0 %v2713
    %2838 = vmatprep.subr.mxu0 0.0
    %2839 = vmatpush1.msra.mxu0 %v2714
    %2840 = vmatprep.subr.mxu0 0.0
    %2841 = vmatpush1.msra.mxu0 %v2715
    %2842 = vmatprep.subr.mxu0 0.0
    %2843 = vmatpush1.msra.mxu0 %v2716
    %2844 = vmatprep.subr.mxu0 0.0
    %2845 = vmatpush1.msra.mxu0 %v2717
    %2846 = vmatprep.subr.mxu0 0.0
    %2847 = vmatpush1.msra.mxu0 %v2718
    %2848 = vmatprep.subr.mxu0 0.0
    %2849 = vmatpush1.msra.mxu0 %v2719
    %2850 = vmatprep.subr.mxu0 0.0
    %2851 = vmatpush1.msra.mxu0 %v2720
    %2852 = vmatprep.subr.mxu0 0.0
    %2853 = vmatpush1.msra.mxu0 %v2721
    %2854 = vmatprep.subr.mxu0 0.0
    %2855 = vmatpush1.msra.mxu0 %v2722
    %2856 = vmatprep.subr.mxu0 0.0
    %2857 = vmatpush1.msra.mxu0 %v2723
    %2858 = vmatprep.subr.mxu0 0.0
    %2859 = vmatpush1.msra.mxu0 %v2724
    %2860 = vmatprep.subr.mxu0 0.0
    %2861 = vmatpush1.msra.mxu0 %v2725
    %2862 = vmatprep.subr.mxu0 0.0
    %2863 = vmatpush1.msra.mxu0 %v2726
    %2864 = vmatprep.subr.mxu0 0.0
    %2865 = vmatpush1.msra.mxu0 %v2727
    %2866 = vmatprep.subr.mxu0 0.0
    %2867 = vmatpush1.msra.mxu0 %v2728
    %2868 = vmatprep.mubr.f32.mxu0 %v2657
    %2869 = vmatmul.mubr.f32.gmra.mrb[0].mxu0 %v2655
    %v2870 = vpop.f32.mrb[0].mxu0
    %v2871 = vadd.f32 %v2796, %v2870
    %v2872 = vpop.f32.mrb[0].mxu0
    %2873 = vmatprep.mubr.f32.mxu0 %v2663
    %2874 = vmatmul.mubr.f32.gmra.mrb[0].mxu0 %v2661
    %v2875 = vpop.f32.mrb[0].mxu0
    %v2876 = vadd.f32 %v2801, %v2875
    %v2877 = vpop.f32.mrb[0].mxu0
    %2878 = vdwg.mxu0
    %v2879 = vmax.f32 %v2871, 0.0
    %v2880 = vmax.f32 %v2876, 0.0
    %2881 = vst [vmem:[#allocation14] sm:$0xff] %v2879
    %2882 = vst [vmem:[#allocation14 + $0x8] sm:$0xff] %v2880
    // Predicated region
    $region82: #{tpu_custom_call.1} parent=1 // pred_check
      _
    $region83: #{tpu_custom_call.1} parent=1 // pred_check_branch
      %2884 = sbr.rel (0) target = $region85
    $region84: #{tpu_custom_call.1} parent=1 // pred_region
      %s2886 = ssub.s32 512, 512
      %2887 = vsyncadd [#allocation4], %s2886
      %s2889 = sshll.u32 [#allocation13], 4
      %s2890 = int_to_ptr.vmem [resolvable:$true] %s2889
      %2892 = dma.vmem_to_hbm [thread:$0]  %s2890, 512, %s14, [#allocation4]
    $region85: #{tpu_custom_call.1} parent=1 // pred_fallthru
      _
    // Predicated region
    $region86: #{tpu_custom_call.1} parent=1 // pred_check
      _
    $region87: #{tpu_custom_call.1} parent=1 // pred_check_branch
      %2894 = sbr.rel (0) target = $region89
    $region88: #{tpu_custom_call.1} parent=1 // pred_region
      %s2896 = ssub.s32 256, 256
      %2897 = vsyncadd [#allocation15], %s2896
      %s2898 = sshll.u32 [#allocation14], 4
      %s2899 = int_to_ptr.vmem [resolvable:$true] %s2898
      %2904 = dma.vmem_to_hbm [thread:$0]  %s2899, 256, %s15, [#allocation15], 128, 128, 8
    $region89: #{tpu_custom_call.1} parent=1 // pred_fallthru
      _
    // Predicated region
    $region90: #{tpu_custom_call.1} parent=1 // pred_check
      _
    $region91: #{tpu_custom_call.1} parent=1 // pred_check_branch
      %2906 = sbr.rel (0) target = $region93
    $region92: #{tpu_custom_call.1} parent=1 // pred_region
      %2907 = dma.done [#allocation4], 512
    $region93: #{tpu_custom_call.1} parent=1 // pred_fallthru
      _
    // Predicated region
    $region94: #{tpu_custom_call.1} parent=1 // pred_check
      _
    $region95: #{tpu_custom_call.1} parent=1 // pred_check_branch
      %2909 = sbr.rel (0) target = $region97
    $region96: #{tpu_custom_call.1} parent=1 // pred_region
      %2910 = dma.done [#allocation15], 256
    $region97: #{tpu_custom_call.1} parent=1 // pred_fallthru
      _
    %2911 = vsyncpa [#allocation3], 1
    %2912 = vsyncpa [#allocation6], 1
    %2913 = vsyncpa [#allocation9], 1
    %2914 = vsyncpa [#allocation12], 1
    %2915 = vsyncpa [#allocation4], 1
    %2916 = vsyncpa [#allocation15], 1

</llo_original>
